<compile_context>
chip_gen: v7x
topology: tpu7x:2x2x1
jax: 0.10.0
libtpu: 0.0.40
codegen_flags: <defaults>
</compile_context>

<pallas_src>
import functools

import jax
import jax.numpy as jnp
from jax import lax
from jax.experimental import pallas as pl
from jax.experimental.pallas import tpu as pltpu


# ----------------------------------------------------------------------------
# Fused Pallas kernel: all LSTM layers + FC head, no grid.
# ----------------------------------------------------------------------------
def _fused_lstm_classifier_kernel(*refs, T, Bp, Hp, L, Tc, n_gx, n_hseq):
    n_in = 3 + 3 * L
    x_ref = refs[0]                               # (T*Bp, D0)   bf16
    layer_refs = refs[1:1 + 3 * L]                # (wih_t, whh_t, bias) * L
    fcw_ref = refs[n_in - 2]                      # (Hp, O)      bf16
    fcb_ref = refs[n_in - 1]                      # (1, O)       f32
    out_ref = refs[n_in]                          # (Bp, O)      f32
    scr = refs[n_in + 1:]
    gx = list(scr[:n_gx])                         # n_gx x (Tc*Bp, 4Hp) f32
    hs = list(scr[n_gx:n_gx + n_hseq])            # n_hseq x (T*Bp, Hp) f32

    nchunks = -(-T // Tc)
    csize = [min(Tc, T - k * Tc) for k in range(nchunks)]
    cstart = [k * Tc for k in range(nchunks)]

    h_last = jnp.zeros((Bp, Hp), jnp.float32)
    for layer in range(L):
        wih_ref = layer_refs[3 * layer + 0]       # (D_in_pad, 4Hp) bf16
        whh_ref = layer_refs[3 * layer + 1]       # (Hp, 4Hp)       bf16
        bias = layer_refs[3 * layer + 2][...]     # (1, 4Hp)        f32
        is_last = layer == L - 1
        nslab = max(1, len(hs))
        read_slab = None if layer == 0 else hs[(layer - 1) % nslab]
        write_slab = None if is_last else hs[layer % nslab]

        # Off the serial critical path: input->gate contribution for one time
        # chunk as a single big MXU matmul (bf16 operands, f32 accumulate),
        # bias folded in, landed lane-dense in a VMEM slab.
        def gx_chunk(k, slab, wih_ref=wih_ref, bias=bias,
                     read_slab=read_slab, layer=layer):
            rows = csize[k] * Bp
            r0 = cstart[k] * Bp
            if layer == 0:
                seq = x_ref[pl.ds(r0, rows), :]                     # bf16
            else:
                seq = read_slab[pl.ds(r0, rows), :].astype(jnp.bfloat16)
            slab[pl.ds(0, rows), :] = (
                jnp.dot(seq, wih_ref[...],
                        preferred_element_type=jnp.float32) + bias)

        gx_chunk(0, gx[0])                        # prime chunk 0

        h = jnp.zeros((Bp, Hp), jnp.float32)
        c = jnp.zeros((Bp, Hp), jnp.float32)
        for k in range(nchunks):
            cur = gx[k % n_gx]
            if k + 1 < nchunks:                   # pipeline: issue next chunk
                gx_chunk(k + 1, gx[(k + 1) % n_gx])
            t0 = cstart[k]
            Tk = csize[k]

            def step(tl, carry, cur=cur, whh_ref=whh_ref, t0=t0,
                     write_slab=write_slab):
                h, c = carry
                row = pl.multiple_of(tl * Bp, 8)
                # Only ONE small matmul on the h_t -> h_{t+1} critical chain.
                gates = cur[pl.ds(row, Bp), :] + jnp.dot(
                    h.astype(jnp.bfloat16), whh_ref[...],
                    preferred_element_type=jnp.float32)       # (Bp, 4Hp) f32
                ifo = jax.nn.sigmoid(gates[:, :3 * Hp])       # i, f, o at once
                i_g = ifo[:, 0 * Hp:1 * Hp]
                f_g = ifo[:, 1 * Hp:2 * Hp]
                o_g = ifo[:, 2 * Hp:3 * Hp]
                g_g = jnp.tanh(gates[:, 3 * Hp:])
                c_new = f_g * c + i_g * g_g
                h_new = o_g * jnp.tanh(c_new)
                if write_slab is not None:
                    wr = pl.multiple_of((t0 + tl) * Bp, 8)
                    write_slab[pl.ds(wr, Bp), :] = h_new      # stays in VMEM
                return h_new, c_new

            unroll = Tk if Tk <= 16 else 8        # bounded unroll
            h, c = lax.fori_loop(0, Tk, step, (h, c), unroll=unroll)
        h_last = h

    # FC head fused in: only the logits leave the kernel.
    out_ref[...] = (
        jnp.dot(h_last.astype(jnp.bfloat16), fcw_ref[...],
                preferred_element_type=jnp.float32)
        + fcb_ref[...]).astype(out_ref.dtype)


# ----------------------------------------------------------------------------
# Wrapper: pack/pad weights (gate order [i,f,o,g], lane-padded), build specs.
# ----------------------------------------------------------------------------
def lstm_classifier_forward(x, params):
    """x: (B, T, input_dim) — batch_first, like the PyTorch module."""
    B, T, D = x.shape
    L = len(params["lstm"])
    H = params["lstm"][0][1].shape[1]             # w_hh: (4H, H)
    O = params["fc_w"].shape[0]
    Bp = ((B + 7) // 8) * 8                       # sublane-pad the batch
    Hp = ((H + 127) // 128) * 128                 # lane-pad each gate block

    # time-major, batch-padded, flattened rows (t*Bp + b); bf16 MXU operand.
    x_tbd = jnp.transpose(x, (1, 0, 2)).astype(jnp.float32)
    if Bp != B:
        x_tbd = jnp.pad(x_tbd, ((0, 0), (0, Bp - B), (0, 0)))
    x_flat = x_tbd.reshape(T * Bp, D).astype(jnp.bfloat16)

    def pack_cols(w):
        # w: (4H, K) PyTorch rows [i,f,g,o] -> (K, 4*Hp) columns [i,f,o,g].
        i, f, g, o = w[0:H], w[H:2 * H], w[2 * H:3 * H], w[3 * H:4 * H]
        blocks = []
        for blk in (i, f, o, g):
            bt = blk.T                                       # (K, H)
            if Hp != H:
                bt = jnp.pad(bt, ((0, 0), (0, Hp - H)))
            blocks.append(bt)
        return jnp.concatenate(blocks, axis=1)               # (K, 4Hp)

    def pack_bias(b):
        i, f, g, o = b[0:H], b[H:2 * H], b[2 * H:3 * H], b[3 * H:4 * H]
        blocks = []
        for blk in (i, f, o, g):
            if Hp != H:
                blk = jnp.pad(blk, (0, Hp - H))
            blocks.append(blk)
        return jnp.concatenate(blocks).reshape(1, 4 * Hp)

    inputs = [x_flat]
    for li, (w_ih, w_hh, b_ih, b_hh) in enumerate(params["lstm"]):
        wih_t = pack_cols(w_ih)                              # (D_in, 4Hp)
        if li > 0 and Hp != H:                               # h is Hp-wide
            wih_t = jnp.pad(wih_t, ((0, Hp - H), (0, 0)))
        whh_t = pack_cols(w_hh)                              # (H, 4Hp)
        if Hp != H:
            whh_t = jnp.pad(whh_t, ((0, Hp - H), (0, 0)))
        bias = pack_bias(b_ih + b_hh).astype(jnp.float32)
        inputs.extend([wih_t.astype(jnp.bfloat16),
                       whh_t.astype(jnp.bfloat16), bias])
    fc_w_t = params["fc_w"].T                                # (H, O)
    if Hp != H:
        fc_w_t = jnp.pad(fc_w_t, ((0, Hp - H), (0, 0)))
    inputs.append(fc_w_t.astype(jnp.bfloat16))
    inputs.append(params["fc_b"].reshape(1, O).astype(jnp.float32))

    # Time-chunk size for the gate-preact slab (~2 MiB per slab).
    bytes_per_step = Bp * 4 * Hp * 4
    Tc = max(1, min(T, (2 << 20) // bytes_per_step))
    if 1 < Tc < T:
        Tc -= Tc % 2                              # keep chunk starts 16-row aligned
    nchunks = -(-T // Tc)
    n_gx = 1 if nchunks == 1 else 2
    n_hseq = 0 if L == 1 else (1 if L == 2 else 2)

    scratch = [pltpu.VMEM((Tc * Bp, 4 * Hp), jnp.float32) for _ in range(n_gx)]
    scratch += [pltpu.VMEM((T * Bp, Hp), jnp.float32) for _ in range(n_hseq)]

    # Scoped-VMEM budget: padded-tile footprint of everything + headroom.
    def vbytes(shape, itemsize):
        r = shape[0] if len(shape) > 1 else 1
        c = shape[-1]
        return ((r + 7) // 8 * 8) * ((c + 127) // 128 * 128) * itemsize

    footprint = sum(vbytes(a.shape, a.dtype.itemsize) for a in inputs)
    footprint += vbytes((Bp, O), 4)
    footprint += n_gx * vbytes((Tc * Bp, 4 * Hp), 4)
    footprint += n_hseq * vbytes((T * Bp, Hp), 4)
    vmem_limit = min(100 << 20, max(32 << 20, int(1.5 * footprint) + (4 << 20)))

    kernel = functools.partial(_fused_lstm_classifier_kernel,
                               T=T, Bp=Bp, Hp=Hp, L=L, Tc=Tc,
                               n_gx=n_gx, n_hseq=n_hseq)

    vmem_spec = pl.BlockSpec(memory_space=pltpu.MemorySpace.VMEM)
    logits = pl.pallas_call(
        kernel,
        out_shape=jax.ShapeDtypeStruct((Bp, O), jnp.float32),
        in_specs=[vmem_spec] * len(inputs),
        out_specs=vmem_spec,
        scratch_shapes=scratch,
        compiler_params=pltpu.CompilerParams(vmem_limit_bytes=vmem_limit),
    )(*inputs)
    return logits[:B]


# ----------------------------------------------------------------------------
# Deterministic parameter init (PyTorch layout: rows [i,f,g,o], uniform ±1/√H)
# ----------------------------------------------------------------------------
def init_params(key, input_dim, hidden_dim, layer_dim, output_dim):
    k = 1.0 / jnp.sqrt(hidden_dim)
    params = {"lstm": []}
    for layer in range(layer_dim):
        d_in = input_dim if layer == 0 else hidden_dim
        key, k1, k2, k3, k4 = jax.random.split(key, 5)
        w_ih = jax.random.uniform(k1, (4 * hidden_dim, d_in),
                                  minval=-k, maxval=k, dtype=jnp.float32)
        w_hh = jax.random.uniform(k2, (4 * hidden_dim, hidden_dim),
                                  minval=-k, maxval=k, dtype=jnp.float32)
        b_ih = jax.random.uniform(k3, (4 * hidden_dim,),
                                  minval=-k, maxval=k, dtype=jnp.float32)
        b_hh = jax.random.uniform(k4, (4 * hidden_dim,),
                                  minval=-k, maxval=k, dtype=jnp.float32)
        params["lstm"].append((w_ih, w_hh, b_ih, b_hh))
    key, k5, k6 = jax.random.split(key, 3)
    params["fc_w"] = jax.random.uniform(k5, (output_dim, hidden_dim),
                                        minval=-k, maxval=k, dtype=jnp.float32)
    params["fc_b"] = jax.random.uniform(k6, (output_dim,),
                                        minval=-k, maxval=k, dtype=jnp.float32)
    return params


# ----------------------------------------------------------------------------
# Pure-JAX reference (exact PyTorch nn.LSTM math, f32) for correctness check.
# ----------------------------------------------------------------------------
def reference_forward(x, params):
    B = x.shape[0]
    h_seq = jnp.transpose(x, (1, 0, 2)).astype(jnp.float32)   # (T, B, D)
    for (w_ih, w_hh, b_ih, b_hh) in params["lstm"]:
        H = w_hh.shape[1]

        def step(carry, x_t):
            h, c = carry
            gates = x_t @ w_ih.T + h @ w_hh.T + b_ih + b_hh
            i = jax.nn.sigmoid(gates[:, 0 * H:1 * H])
            f = jax.nn.sigmoid(gates[:, 1 * H:2 * H])
            g = jnp.tanh(gates[:, 2 * H:3 * H])
            o = jax.nn.sigmoid(gates[:, 3 * H:4 * H])
            c = f * c + i * g
            h = o * jnp.tanh(c)
            return (h, c), h

        init = (jnp.zeros((B, H), jnp.float32), jnp.zeros((B, H), jnp.float32))
        _, h_seq = lax.scan(step, init, h_seq)
    return h_seq[-1] @ params["fc_w"].T + params["fc_b"]


# ----------------------------------------------------------------------------
if __name__ == "__main__":
    B, T = 2, 8
    input_dim, hidden_dim, layer_dim, output_dim = 16, 32, 2, 4

    key = jax.random.PRNGKey(0)
    key, xkey, pkey = jax.random.split(key, 3)
    x = jax.random.normal(xkey, (B, T, input_dim), dtype=jnp.float32)
    params = init_params(pkey, input_dim, hidden_dim, layer_dim, output_dim)

    out = lstm_classifier_forward(x, params)
    out = jax.block_until_ready(out)

    ref = reference_forward(x, params)
    assert out.shape == (B, output_dim)
    assert bool(jnp.all(jnp.isfinite(out)))
    # bf16 MXU operands with f32 accumulation -> slightly looser tolerance
    # than the pure-f32 reference.
    assert jnp.allclose(out, ref, rtol=5e-2, atol=5e-2), "mismatch vs reference"

    print("KERNEL_OK")
</pallas_src>

<mosaic_0001>
module attributes {stable_mosaic.version = 11 : i64} {
  func.func @_fused_lstm_classifier_kernel(%arg0: memref<64x16xbf16, #tpu.memory_space<vmem>>, %arg1: memref<16x512xbf16, #tpu.memory_space<vmem>>, %arg2: memref<128x512xbf16, #tpu.memory_space<vmem>>, %arg3: memref<1x512xf32, #tpu.memory_space<vmem>>, %arg4: memref<128x512xbf16, #tpu.memory_space<vmem>>, %arg5: memref<128x512xbf16, #tpu.memory_space<vmem>>, %arg6: memref<1x512xf32, #tpu.memory_space<vmem>>, %arg7: memref<128x4xbf16, #tpu.memory_space<vmem>>, %arg8: memref<1x4xf32, #tpu.memory_space<vmem>>, %arg9: memref<8x4xf32, #tpu.memory_space<vmem>>, %arg10: memref<64x512xf32, #tpu.memory_space<vmem>>, %arg11: memref<64x128xf32, #tpu.memory_space<vmem>>) attributes {dimension_semantics = [], scalar_prefetch = 0 : i64, scratch_operands = 2 : i64, tpu.core_type = #tpu.core_type<tc>} {
    %c0 = arith.constant 0 : index
    %c0_0 = arith.constant 0 : index
    %0 = vector.load %arg3[%c0, %c0_0] : memref<1x512xf32, #tpu.memory_space<vmem>>, vector<1x512xf32>
    %c0_1 = arith.constant 0 : index
    %c0_2 = arith.constant 0 : index
    %1 = vector.load %arg0[%c0_1, %c0_2] : memref<64x16xbf16, #tpu.memory_space<vmem>>, vector<64x16xbf16>
    %c0_3 = arith.constant 0 : index
    %c0_4 = arith.constant 0 : index
    %2 = vector.load %arg1[%c0_3, %c0_4] : memref<16x512xbf16, #tpu.memory_space<vmem>>, vector<16x512xbf16>
    %cst = arith.constant dense<0.000000e+00> : vector<64x512xf32>
    %3 = tpu.matmul %1, %2, %cst {dimension_numbers = #tpu.dot_dimension_numbers<[1], [0], [0], [1], [0, 0, 1, 1], [], []>} : vector<64x16xbf16>, vector<16x512xbf16>, vector<64x512xf32> -> vector<64x512xf32>
    %4 = vector.broadcast %0 : vector<1x512xf32> to vector<64x512xf32>
    %5 = arith.addf %3, %4 : vector<64x512xf32>
    %c0_5 = arith.constant 0 : index
    %c0_6 = arith.constant 0 : index
    %6 = vector.load %arg10[%c0_5, %c0_6] : memref<64x512xf32, #tpu.memory_space<vmem>>, vector<64x512xf32>
    tpu.vector_store %arg10[%c0_5, %c0_6], %5 {strides = array<i32>} : memref<64x512xf32, #tpu.memory_space<vmem>>, vector<64x512xf32>,
    %cst_7 = arith.constant 0.000000e+00 : f32
    %7 = vector.broadcast %cst_7 : f32 to vector<8x128xf32>
    %cst_8 = arith.constant 0.000000e+00 : f32
    %8 = vector.broadcast %cst_8 : f32 to vector<8x128xf32>
    %c0_i32 = arith.constant 0 : i32
    %c8_i32 = arith.constant 8 : i32
    %9 = arith.muli %c0_i32, %c8_i32 : i32
    %10 = tpu.assume_multiple %9, 8 : i32
    %11 = arith.index_cast %10 : i32 to index
    %c0_9 = arith.constant 0 : index
    %12 = vector.load %arg10[%11, %c0_9] : memref<64x512xf32, #tpu.memory_space<vmem>>, vector<8x512xf32>
    %13 = arith.truncf %7 : vector<8x128xf32> to vector<8x128xbf16>
    %c0_10 = arith.constant 0 : index
    %c0_11 = arith.constant 0 : index
    %14 = vector.load %arg2[%c0_10, %c0_11] : memref<128x512xbf16, #tpu.memory_space<vmem>>, vector<128x512xbf16>
    %cst_12 = arith.constant dense<0.000000e+00> : vector<8x512xf32>
    %15 = tpu.matmul %13, %14, %cst_12 {dimension_numbers = #tpu.dot_dimension_numbers<[1], [0], [0], [1], [0, 0, 1, 1], [], []>} : vector<8x128xbf16>, vector<128x512xbf16>, vector<8x512xf32> -> vector<8x512xf32>
    %16 = arith.addf %12, %15 : vector<8x512xf32>
    %17 = vector.extract_strided_slice %16 {offsets = [0, 0], sizes = [8, 384], strides = [1, 1]} : vector<8x512xf32> to vector<8x384xf32>
    %18 = arith.negf %17 : vector<8x384xf32>
    %19 = math.exp %18 : vector<8x384xf32>
    %cst_13 = arith.constant 1.000000e+00 : f32
    %20 = vector.broadcast %cst_13 : f32 to vector<8x384xf32>
    %21 = arith.addf %20, %19 : vector<8x384xf32>
    %22 = arith.divf %20, %21 : vector<8x384xf32>
    %23 = vector.extract_strided_slice %22 {offsets = [0, 0], sizes = [8, 128], strides = [1, 1]} : vector<8x384xf32> to vector<8x128xf32>
    %24 = vector.extract_strided_slice %22 {offsets = [0, 128], sizes = [8, 128], strides = [1, 1]} : vector<8x384xf32> to vector<8x128xf32>
    %25 = vector.extract_strided_slice %22 {offsets = [0, 256], sizes = [8, 128], strides = [1, 1]} : vector<8x384xf32> to vector<8x128xf32>
    %26 = vector.extract_strided_slice %16 {offsets = [0, 384], sizes = [8, 128], strides = [1, 1]} : vector<8x512xf32> to vector<8x128xf32>
    %27 = math.tanh %26 : vector<8x128xf32>
    %28 = arith.mulf %24, %8 : vector<8x128xf32>
    %29 = arith.mulf %23, %27 : vector<8x128xf32>
    %30 = arith.addf %28, %29 : vector<8x128xf32>
    %31 = math.tanh %30 : vector<8x128xf32>
    %32 = arith.mulf %25, %31 : vector<8x128xf32>
    %c0_i32_14 = arith.constant 0 : i32
    %33 = arith.addi %c0_i32_14, %c0_i32 : i32
    %c8_i32_15 = arith.constant 8 : i32
    %34 = arith.muli %33, %c8_i32_15 : i32
    %35 = tpu.assume_multiple %34, 8 : i32
    %36 = arith.index_cast %35 : i32 to index
    %c0_16 = arith.constant 0 : index
    %37 = vector.load %arg11[%36, %c0_16] : memref<64x128xf32, #tpu.memory_space<vmem>>, vector<8x128xf32>
    tpu.vector_store %arg11[%36, %c0_16], %32 {strides = array<i32>} : memref<64x128xf32, #tpu.memory_space<vmem>>, vector<8x128xf32>,
    %c1_i32 = arith.constant 1 : i32
    %c8_i32_17 = arith.constant 8 : i32
    %38 = arith.muli %c1_i32, %c8_i32_17 : i32
    %39 = tpu.assume_multiple %38, 8 : i32
    %40 = arith.index_cast %39 : i32 to index
    %c0_18 = arith.constant 0 : index
    %41 = vector.load %arg10[%40, %c0_18] : memref<64x512xf32, #tpu.memory_space<vmem>>, vector<8x512xf32>
    %42 = arith.truncf %32 : vector<8x128xf32> to vector<8x128xbf16>
    %c0_19 = arith.constant 0 : index
    %c0_20 = arith.constant 0 : index
    %43 = vector.load %arg2[%c0_19, %c0_20] : memref<128x512xbf16, #tpu.memory_space<vmem>>, vector<128x512xbf16>
    %cst_21 = arith.constant dense<0.000000e+00> : vector<8x512xf32>
    %44 = tpu.matmul %42, %43, %cst_21 {dimension_numbers = #tpu.dot_dimension_numbers<[1], [0], [0], [1], [0, 0, 1, 1], [], []>} : vector<8x128xbf16>, vector<128x512xbf16>, vector<8x512xf32> -> vector<8x512xf32>
    %45 = arith.addf %41, %44 : vector<8x512xf32>
    %46 = vector.extract_strided_slice %45 {offsets = [0, 0], sizes = [8, 384], strides = [1, 1]} : vector<8x512xf32> to vector<8x384xf32>
    %47 = arith.negf %46 : vector<8x384xf32>
    %48 = math.exp %47 : vector<8x384xf32>
    %cst_22 = arith.constant 1.000000e+00 : f32
    %49 = vector.broadcast %cst_22 : f32 to vector<8x384xf32>
    %50 = arith.addf %49, %48 : vector<8x384xf32>
    %51 = arith.divf %49, %50 : vector<8x384xf32>
    %52 = vector.extract_strided_slice %51 {offsets = [0, 0], sizes = [8, 128], strides = [1, 1]} : vector<8x384xf32> to vector<8x128xf32>
    %53 = vector.extract_strided_slice %51 {offsets = [0, 128], sizes = [8, 128], strides = [1, 1]} : vector<8x384xf32> to vector<8x128xf32>
    %54 = vector.extract_strided_slice %51 {offsets = [0, 256], sizes = [8, 128], strides = [1, 1]} : vector<8x384xf32> to vector<8x128xf32>
    %55 = vector.extract_strided_slice %45 {offsets = [0, 384], sizes = [8, 128], strides = [1, 1]} : vector<8x512xf32> to vector<8x128xf32>
    %56 = math.tanh %55 : vector<8x128xf32>
    %57 = arith.mulf %53, %30 : vector<8x128xf32>
    %58 = arith.mulf %52, %56 : vector<8x128xf32>
    %59 = arith.addf %57, %58 : vector<8x128xf32>
    %60 = math.tanh %59 : vector<8x128xf32>
    %61 = arith.mulf %54, %60 : vector<8x128xf32>
    %c0_i32_23 = arith.constant 0 : i32
    %62 = arith.addi %c0_i32_23, %c1_i32 : i32
    %c8_i32_24 = arith.constant 8 : i32
    %63 = arith.muli %62, %c8_i32_24 : i32
    %64 = tpu.assume_multiple %63, 8 : i32
    %65 = arith.index_cast %64 : i32 to index
    %c0_25 = arith.constant 0 : index
    %66 = vector.load %arg11[%65, %c0_25] : memref<64x128xf32, #tpu.memory_space<vmem>>, vector<8x128xf32>
    tpu.vector_store %arg11[%65, %c0_25], %61 {strides = array<i32>} : memref<64x128xf32, #tpu.memory_space<vmem>>, vector<8x128xf32>,
    %c2_i32 = arith.constant 2 : i32
    %c8_i32_26 = arith.constant 8 : i32
    %67 = arith.muli %c2_i32, %c8_i32_26 : i32
    %68 = tpu.assume_multiple %67, 8 : i32
    %69 = arith.index_cast %68 : i32 to index
    %c0_27 = arith.constant 0 : index
    %70 = vector.load %arg10[%69, %c0_27] : memref<64x512xf32, #tpu.memory_space<vmem>>, vector<8x512xf32>
    %71 = arith.truncf %61 : vector<8x128xf32> to vector<8x128xbf16>
    %c0_28 = arith.constant 0 : index
    %c0_29 = arith.constant 0 : index
    %72 = vector.load %arg2[%c0_28, %c0_29] : memref<128x512xbf16, #tpu.memory_space<vmem>>, vector<128x512xbf16>
    %cst_30 = arith.constant dense<0.000000e+00> : vector<8x512xf32>
    %73 = tpu.matmul %71, %72, %cst_30 {dimension_numbers = #tpu.dot_dimension_numbers<[1], [0], [0], [1], [0, 0, 1, 1], [], []>} : vector<8x128xbf16>, vector<128x512xbf16>, vector<8x512xf32> -> vector<8x512xf32>
    %74 = arith.addf %70, %73 : vector<8x512xf32>
    %75 = vector.extract_strided_slice %74 {offsets = [0, 0], sizes = [8, 384], strides = [1, 1]} : vector<8x512xf32> to vector<8x384xf32>
    %76 = arith.negf %75 : vector<8x384xf32>
    %77 = math.exp %76 : vector<8x384xf32>
    %cst_31 = arith.constant 1.000000e+00 : f32
    %78 = vector.broadcast %cst_31 : f32 to vector<8x384xf32>
    %79 = arith.addf %78, %77 : vector<8x384xf32>
    %80 = arith.divf %78, %79 : vector<8x384xf32>
    %81 = vector.extract_strided_slice %80 {offsets = [0, 0], sizes = [8, 128], strides = [1, 1]} : vector<8x384xf32> to vector<8x128xf32>
    %82 = vector.extract_strided_slice %80 {offsets = [0, 128], sizes = [8, 128], strides = [1, 1]} : vector<8x384xf32> to vector<8x128xf32>
    %83 = vector.extract_strided_slice %80 {offsets = [0, 256], sizes = [8, 128], strides = [1, 1]} : vector<8x384xf32> to vector<8x128xf32>
    %84 = vector.extract_strided_slice %74 {offsets = [0, 384], sizes = [8, 128], strides = [1, 1]} : vector<8x512xf32> to vector<8x128xf32>
    %85 = math.tanh %84 : vector<8x128xf32>
    %86 = arith.mulf %82, %59 : vector<8x128xf32>
    %87 = arith.mulf %81, %85 : vector<8x128xf32>
    %88 = arith.addf %86, %87 : vector<8x128xf32>
    %89 = math.tanh %88 : vector<8x128xf32>
    %90 = arith.mulf %83, %89 : vector<8x128xf32>
    %c0_i32_32 = arith.constant 0 : i32
    %91 = arith.addi %c0_i32_32, %c2_i32 : i32
    %c8_i32_33 = arith.constant 8 : i32
    %92 = arith.muli %91, %c8_i32_33 : i32
    %93 = tpu.assume_multiple %92, 8 : i32
    %94 = arith.index_cast %93 : i32 to index
    %c0_34 = arith.constant 0 : index
    %95 = vector.load %arg11[%94, %c0_34] : memref<64x128xf32, #tpu.memory_space<vmem>>, vector<8x128xf32>
    tpu.vector_store %arg11[%94, %c0_34], %90 {strides = array<i32>} : memref<64x128xf32, #tpu.memory_space<vmem>>, vector<8x128xf32>,
    %c3_i32 = arith.constant 3 : i32
    %c8_i32_35 = arith.constant 8 : i32
    %96 = arith.muli %c3_i32, %c8_i32_35 : i32
    %97 = tpu.assume_multiple %96, 8 : i32
    %98 = arith.index_cast %97 : i32 to index
    %c0_36 = arith.constant 0 : index
    %99 = vector.load %arg10[%98, %c0_36] : memref<64x512xf32, #tpu.memory_space<vmem>>, vector<8x512xf32>
    %100 = arith.truncf %90 : vector<8x128xf32> to vector<8x128xbf16>
    %c0_37 = arith.constant 0 : index
    %c0_38 = arith.constant 0 : index
    %101 = vector.load %arg2[%c0_37, %c0_38] : memref<128x512xbf16, #tpu.memory_space<vmem>>, vector<128x512xbf16>
    %cst_39 = arith.constant dense<0.000000e+00> : vector<8x512xf32>
    %102 = tpu.matmul %100, %101, %cst_39 {dimension_numbers = #tpu.dot_dimension_numbers<[1], [0], [0], [1], [0, 0, 1, 1], [], []>} : vector<8x128xbf16>, vector<128x512xbf16>, vector<8x512xf32> -> vector<8x512xf32>
    %103 = arith.addf %99, %102 : vector<8x512xf32>
    %104 = vector.extract_strided_slice %103 {offsets = [0, 0], sizes = [8, 384], strides = [1, 1]} : vector<8x512xf32> to vector<8x384xf32>
    %105 = arith.negf %104 : vector<8x384xf32>
    %106 = math.exp %105 : vector<8x384xf32>
    %cst_40 = arith.constant 1.000000e+00 : f32
    %107 = vector.broadcast %cst_40 : f32 to vector<8x384xf32>
    %108 = arith.addf %107, %106 : vector<8x384xf32>
    %109 = arith.divf %107, %108 : vector<8x384xf32>
    %110 = vector.extract_strided_slice %109 {offsets = [0, 0], sizes = [8, 128], strides = [1, 1]} : vector<8x384xf32> to vector<8x128xf32>
    %111 = vector.extract_strided_slice %109 {offsets = [0, 128], sizes = [8, 128], strides = [1, 1]} : vector<8x384xf32> to vector<8x128xf32>
    %112 = vector.extract_strided_slice %109 {offsets = [0, 256], sizes = [8, 128], strides = [1, 1]} : vector<8x384xf32> to vector<8x128xf32>
    %113 = vector.extract_strided_slice %103 {offsets = [0, 384], sizes = [8, 128], strides = [1, 1]} : vector<8x512xf32> to vector<8x128xf32>
    %114 = math.tanh %113 : vector<8x128xf32>
    %115 = arith.mulf %111, %88 : vector<8x128xf32>
    %116 = arith.mulf %110, %114 : vector<8x128xf32>
    %117 = arith.addf %115, %116 : vector<8x128xf32>
    %118 = math.tanh %117 : vector<8x128xf32>
    %119 = arith.mulf %112, %118 : vector<8x128xf32>
    %c0_i32_41 = arith.constant 0 : i32
    %120 = arith.addi %c0_i32_41, %c3_i32 : i32
    %c8_i32_42 = arith.constant 8 : i32
    %121 = arith.muli %120, %c8_i32_42 : i32
    %122 = tpu.assume_multiple %121, 8 : i32
    %123 = arith.index_cast %122 : i32 to index
    %c0_43 = arith.constant 0 : index
    %124 = vector.load %arg11[%123, %c0_43] : memref<64x128xf32, #tpu.memory_space<vmem>>, vector<8x128xf32>
    tpu.vector_store %arg11[%123, %c0_43], %119 {strides = array<i32>} : memref<64x128xf32, #tpu.memory_space<vmem>>, vector<8x128xf32>,
    %c4_i32 = arith.constant 4 : i32
    %c8_i32_44 = arith.constant 8 : i32
    %125 = arith.muli %c4_i32, %c8_i32_44 : i32
    %126 = tpu.assume_multiple %125, 8 : i32
    %127 = arith.index_cast %126 : i32 to index
    %c0_45 = arith.constant 0 : index
    %128 = vector.load %arg10[%127, %c0_45] : memref<64x512xf32, #tpu.memory_space<vmem>>, vector<8x512xf32>
    %129 = arith.truncf %119 : vector<8x128xf32> to vector<8x128xbf16>
    %c0_46 = arith.constant 0 : index
    %c0_47 = arith.constant 0 : index
    %130 = vector.load %arg2[%c0_46, %c0_47] : memref<128x512xbf16, #tpu.memory_space<vmem>>, vector<128x512xbf16>
    %cst_48 = arith.constant dense<0.000000e+00> : vector<8x512xf32>
    %131 = tpu.matmul %129, %130, %cst_48 {dimension_numbers = #tpu.dot_dimension_numbers<[1], [0], [0], [1], [0, 0, 1, 1], [], []>} : vector<8x128xbf16>, vector<128x512xbf16>, vector<8x512xf32> -> vector<8x512xf32>
    %132 = arith.addf %128, %131 : vector<8x512xf32>
    %133 = vector.extract_strided_slice %132 {offsets = [0, 0], sizes = [8, 384], strides = [1, 1]} : vector<8x512xf32> to vector<8x384xf32>
    %134 = arith.negf %133 : vector<8x384xf32>
    %135 = math.exp %134 : vector<8x384xf32>
    %cst_49 = arith.constant 1.000000e+00 : f32
    %136 = vector.broadcast %cst_49 : f32 to vector<8x384xf32>
    %137 = arith.addf %136, %135 : vector<8x384xf32>
    %138 = arith.divf %136, %137 : vector<8x384xf32>
    %139 = vector.extract_strided_slice %138 {offsets = [0, 0], sizes = [8, 128], strides = [1, 1]} : vector<8x384xf32> to vector<8x128xf32>
    %140 = vector.extract_strided_slice %138 {offsets = [0, 128], sizes = [8, 128], strides = [1, 1]} : vector<8x384xf32> to vector<8x128xf32>
    %141 = vector.extract_strided_slice %138 {offsets = [0, 256], sizes = [8, 128], strides = [1, 1]} : vector<8x384xf32> to vector<8x128xf32>
    %142 = vector.extract_strided_slice %132 {offsets = [0, 384], sizes = [8, 128], strides = [1, 1]} : vector<8x512xf32> to vector<8x128xf32>
    %143 = math.tanh %142 : vector<8x128xf32>
    %144 = arith.mulf %140, %117 : vector<8x128xf32>
    %145 = arith.mulf %139, %143 : vector<8x128xf32>
    %146 = arith.addf %144, %145 : vector<8x128xf32>
    %147 = math.tanh %146 : vector<8x128xf32>
    %148 = arith.mulf %141, %147 : vector<8x128xf32>
    %c0_i32_50 = arith.constant 0 : i32
    %149 = arith.addi %c0_i32_50, %c4_i32 : i32
    %c8_i32_51 = arith.constant 8 : i32
    %150 = arith.muli %149, %c8_i32_51 : i32
    %151 = tpu.assume_multiple %150, 8 : i32
    %152 = arith.index_cast %151 : i32 to index
    %c0_52 = arith.constant 0 : index
    %153 = vector.load %arg11[%152, %c0_52] : memref<64x128xf32, #tpu.memory_space<vmem>>, vector<8x128xf32>
    tpu.vector_store %arg11[%152, %c0_52], %148 {strides = array<i32>} : memref<64x128xf32, #tpu.memory_space<vmem>>, vector<8x128xf32>,
    %c5_i32 = arith.constant 5 : i32
    %c8_i32_53 = arith.constant 8 : i32
    %154 = arith.muli %c5_i32, %c8_i32_53 : i32
    %155 = tpu.assume_multiple %154, 8 : i32
    %156 = arith.index_cast %155 : i32 to index
    %c0_54 = arith.constant 0 : index
    %157 = vector.load %arg10[%156, %c0_54] : memref<64x512xf32, #tpu.memory_space<vmem>>, vector<8x512xf32>
    %158 = arith.truncf %148 : vector<8x128xf32> to vector<8x128xbf16>
    %c0_55 = arith.constant 0 : index
    %c0_56 = arith.constant 0 : index
    %159 = vector.load %arg2[%c0_55, %c0_56] : memref<128x512xbf16, #tpu.memory_space<vmem>>, vector<128x512xbf16>
    %cst_57 = arith.constant dense<0.000000e+00> : vector<8x512xf32>
    %160 = tpu.matmul %158, %159, %cst_57 {dimension_numbers = #tpu.dot_dimension_numbers<[1], [0], [0], [1], [0, 0, 1, 1], [], []>} : vector<8x128xbf16>, vector<128x512xbf16>, vector<8x512xf32> -> vector<8x512xf32>
    %161 = arith.addf %157, %160 : vector<8x512xf32>
    %162 = vector.extract_strided_slice %161 {offsets = [0, 0], sizes = [8, 384], strides = [1, 1]} : vector<8x512xf32> to vector<8x384xf32>
    %163 = arith.negf %162 : vector<8x384xf32>
    %164 = math.exp %163 : vector<8x384xf32>
    %cst_58 = arith.constant 1.000000e+00 : f32
    %165 = vector.broadcast %cst_58 : f32 to vector<8x384xf32>
    %166 = arith.addf %165, %164 : vector<8x384xf32>
    %167 = arith.divf %165, %166 : vector<8x384xf32>
    %168 = vector.extract_strided_slice %167 {offsets = [0, 0], sizes = [8, 128], strides = [1, 1]} : vector<8x384xf32> to vector<8x128xf32>
    %169 = vector.extract_strided_slice %167 {offsets = [0, 128], sizes = [8, 128], strides = [1, 1]} : vector<8x384xf32> to vector<8x128xf32>
    %170 = vector.extract_strided_slice %167 {offsets = [0, 256], sizes = [8, 128], strides = [1, 1]} : vector<8x384xf32> to vector<8x128xf32>
    %171 = vector.extract_strided_slice %161 {offsets = [0, 384], sizes = [8, 128], strides = [1, 1]} : vector<8x512xf32> to vector<8x128xf32>
    %172 = math.tanh %171 : vector<8x128xf32>
    %173 = arith.mulf %169, %146 : vector<8x128xf32>
    %174 = arith.mulf %168, %172 : vector<8x128xf32>
    %175 = arith.addf %173, %174 : vector<8x128xf32>
    %176 = math.tanh %175 : vector<8x128xf32>
    %177 = arith.mulf %170, %176 : vector<8x128xf32>
    %c0_i32_59 = arith.constant 0 : i32
    %178 = arith.addi %c0_i32_59, %c5_i32 : i32
    %c8_i32_60 = arith.constant 8 : i32
    %179 = arith.muli %178, %c8_i32_60 : i32
    %180 = tpu.assume_multiple %179, 8 : i32
    %181 = arith.index_cast %180 : i32 to index
    %c0_61 = arith.constant 0 : index
    %182 = vector.load %arg11[%181, %c0_61] : memref<64x128xf32, #tpu.memory_space<vmem>>, vector<8x128xf32>
    tpu.vector_store %arg11[%181, %c0_61], %177 {strides = array<i32>} : memref<64x128xf32, #tpu.memory_space<vmem>>, vector<8x128xf32>,
    %c6_i32 = arith.constant 6 : i32
    %c8_i32_62 = arith.constant 8 : i32
    %183 = arith.muli %c6_i32, %c8_i32_62 : i32
    %184 = tpu.assume_multiple %183, 8 : i32
    %185 = arith.index_cast %184 : i32 to index
    %c0_63 = arith.constant 0 : index
    %186 = vector.load %arg10[%185, %c0_63] : memref<64x512xf32, #tpu.memory_space<vmem>>, vector<8x512xf32>
    %187 = arith.truncf %177 : vector<8x128xf32> to vector<8x128xbf16>
    %c0_64 = arith.constant 0 : index
    %c0_65 = arith.constant 0 : index
    %188 = vector.load %arg2[%c0_64, %c0_65] : memref<128x512xbf16, #tpu.memory_space<vmem>>, vector<128x512xbf16>
    %cst_66 = arith.constant dense<0.000000e+00> : vector<8x512xf32>
    %189 = tpu.matmul %187, %188, %cst_66 {dimension_numbers = #tpu.dot_dimension_numbers<[1], [0], [0], [1], [0, 0, 1, 1], [], []>} : vector<8x128xbf16>, vector<128x512xbf16>, vector<8x512xf32> -> vector<8x512xf32>
    %190 = arith.addf %186, %189 : vector<8x512xf32>
    %191 = vector.extract_strided_slice %190 {offsets = [0, 0], sizes = [8, 384], strides = [1, 1]} : vector<8x512xf32> to vector<8x384xf32>
    %192 = arith.negf %191 : vector<8x384xf32>
    %193 = math.exp %192 : vector<8x384xf32>
    %cst_67 = arith.constant 1.000000e+00 : f32
    %194 = vector.broadcast %cst_67 : f32 to vector<8x384xf32>
    %195 = arith.addf %194, %193 : vector<8x384xf32>
    %196 = arith.divf %194, %195 : vector<8x384xf32>
    %197 = vector.extract_strided_slice %196 {offsets = [0, 0], sizes = [8, 128], strides = [1, 1]} : vector<8x384xf32> to vector<8x128xf32>
    %198 = vector.extract_strided_slice %196 {offsets = [0, 128], sizes = [8, 128], strides = [1, 1]} : vector<8x384xf32> to vector<8x128xf32>
    %199 = vector.extract_strided_slice %196 {offsets = [0, 256], sizes = [8, 128], strides = [1, 1]} : vector<8x384xf32> to vector<8x128xf32>
    %200 = vector.extract_strided_slice %190 {offsets = [0, 384], sizes = [8, 128], strides = [1, 1]} : vector<8x512xf32> to vector<8x128xf32>
    %201 = math.tanh %200 : vector<8x128xf32>
    %202 = arith.mulf %198, %175 : vector<8x128xf32>
    %203 = arith.mulf %197, %201 : vector<8x128xf32>
    %204 = arith.addf %202, %203 : vector<8x128xf32>
    %205 = math.tanh %204 : vector<8x128xf32>
    %206 = arith.mulf %199, %205 : vector<8x128xf32>
    %c0_i32_68 = arith.constant 0 : i32
    %207 = arith.addi %c0_i32_68, %c6_i32 : i32
    %c8_i32_69 = arith.constant 8 : i32
    %208 = arith.muli %207, %c8_i32_69 : i32
    %209 = tpu.assume_multiple %208, 8 : i32
    %210 = arith.index_cast %209 : i32 to index
    %c0_70 = arith.constant 0 : index
    %211 = vector.load %arg11[%210, %c0_70] : memref<64x128xf32, #tpu.memory_space<vmem>>, vector<8x128xf32>
    tpu.vector_store %arg11[%210, %c0_70], %206 {strides = array<i32>} : memref<64x128xf32, #tpu.memory_space<vmem>>, vector<8x128xf32>,
    %c7_i32 = arith.constant 7 : i32
    %c8_i32_71 = arith.constant 8 : i32
    %212 = arith.muli %c7_i32, %c8_i32_71 : i32
    %213 = tpu.assume_multiple %212, 8 : i32
    %214 = arith.index_cast %213 : i32 to index
    %c0_72 = arith.constant 0 : index
    %215 = vector.load %arg10[%214, %c0_72] : memref<64x512xf32, #tpu.memory_space<vmem>>, vector<8x512xf32>
    %216 = arith.truncf %206 : vector<8x128xf32> to vector<8x128xbf16>
    %c0_73 = arith.constant 0 : index
    %c0_74 = arith.constant 0 : index
    %217 = vector.load %arg2[%c0_73, %c0_74] : memref<128x512xbf16, #tpu.memory_space<vmem>>, vector<128x512xbf16>
    %cst_75 = arith.constant dense<0.000000e+00> : vector<8x512xf32>
    %218 = tpu.matmul %216, %217, %cst_75 {dimension_numbers = #tpu.dot_dimension_numbers<[1], [0], [0], [1], [0, 0, 1, 1], [], []>} : vector<8x128xbf16>, vector<128x512xbf16>, vector<8x512xf32> -> vector<8x512xf32>
    %219 = arith.addf %215, %218 : vector<8x512xf32>
    %220 = vector.extract_strided_slice %219 {offsets = [0, 0], sizes = [8, 384], strides = [1, 1]} : vector<8x512xf32> to vector<8x384xf32>
    %221 = arith.negf %220 : vector<8x384xf32>
    %222 = math.exp %221 : vector<8x384xf32>
    %cst_76 = arith.constant 1.000000e+00 : f32
    %223 = vector.broadcast %cst_76 : f32 to vector<8x384xf32>
    %224 = arith.addf %223, %222 : vector<8x384xf32>
    %225 = arith.divf %223, %224 : vector<8x384xf32>
    %226 = vector.extract_strided_slice %225 {offsets = [0, 0], sizes = [8, 128], strides = [1, 1]} : vector<8x384xf32> to vector<8x128xf32>
    %227 = vector.extract_strided_slice %225 {offsets = [0, 128], sizes = [8, 128], strides = [1, 1]} : vector<8x384xf32> to vector<8x128xf32>
    %228 = vector.extract_strided_slice %225 {offsets = [0, 256], sizes = [8, 128], strides = [1, 1]} : vector<8x384xf32> to vector<8x128xf32>
    %229 = vector.extract_strided_slice %219 {offsets = [0, 384], sizes = [8, 128], strides = [1, 1]} : vector<8x512xf32> to vector<8x128xf32>
    %230 = math.tanh %229 : vector<8x128xf32>
    %231 = arith.mulf %227, %204 : vector<8x128xf32>
    %232 = arith.mulf %226, %230 : vector<8x128xf32>
    %233 = arith.addf %231, %232 : vector<8x128xf32>
    %234 = math.tanh %233 : vector<8x128xf32>
    %235 = arith.mulf %228, %234 : vector<8x128xf32>
    %c0_i32_77 = arith.constant 0 : i32
    %236 = arith.addi %c0_i32_77, %c7_i32 : i32
    %c8_i32_78 = arith.constant 8 : i32
    %237 = arith.muli %236, %c8_i32_78 : i32
    %238 = tpu.assume_multiple %237, 8 : i32
    %239 = arith.index_cast %238 : i32 to index
    %c0_79 = arith.constant 0 : index
    %240 = vector.load %arg11[%239, %c0_79] : memref<64x128xf32, #tpu.memory_space<vmem>>, vector<8x128xf32>
    tpu.vector_store %arg11[%239, %c0_79], %235 {strides = array<i32>} : memref<64x128xf32, #tpu.memory_space<vmem>>, vector<8x128xf32>,
    %c8_i32_80 = arith.constant 8 : i32
    %c0_81 = arith.constant 0 : index
    %c0_82 = arith.constant 0 : index
    %241 = vector.load %arg6[%c0_81, %c0_82] : memref<1x512xf32, #tpu.memory_space<vmem>>, vector<1x512xf32>
    %c0_83 = arith.constant 0 : index
    %c0_84 = arith.constant 0 : index
    %242 = vector.load %arg11[%c0_83, %c0_84] : memref<64x128xf32, #tpu.memory_space<vmem>>, vector<64x128xf32>
    %243 = arith.truncf %242 : vector<64x128xf32> to vector<64x128xbf16>
    %c0_85 = arith.constant 0 : index
    %c0_86 = arith.constant 0 : index
    %244 = vector.load %arg4[%c0_85, %c0_86] : memref<128x512xbf16, #tpu.memory_space<vmem>>, vector<128x512xbf16>
    %cst_87 = arith.constant dense<0.000000e+00> : vector<64x512xf32>
    %245 = tpu.matmul %243, %244, %cst_87 {dimension_numbers = #tpu.dot_dimension_numbers<[1], [0], [0], [1], [0, 0, 1, 1], [], []>} : vector<64x128xbf16>, vector<128x512xbf16>, vector<64x512xf32> -> vector<64x512xf32>
    %246 = vector.broadcast %241 : vector<1x512xf32> to vector<64x512xf32>
    %247 = arith.addf %245, %246 : vector<64x512xf32>
    %c0_88 = arith.constant 0 : index
    %c0_89 = arith.constant 0 : index
    %248 = vector.load %arg10[%c0_88, %c0_89] : memref<64x512xf32, #tpu.memory_space<vmem>>, vector<64x512xf32>
    tpu.vector_store %arg10[%c0_88, %c0_89], %247 {strides = array<i32>} : memref<64x512xf32, #tpu.memory_space<vmem>>, vector<64x512xf32>,
    %cst_90 = arith.constant 0.000000e+00 : f32
    %249 = vector.broadcast %cst_90 : f32 to vector<8x128xf32>
    %cst_91 = arith.constant 0.000000e+00 : f32
    %250 = vector.broadcast %cst_91 : f32 to vector<8x128xf32>
    %c0_i32_92 = arith.constant 0 : i32
    %c8_i32_93 = arith.constant 8 : i32
    %251 = arith.muli %c0_i32_92, %c8_i32_93 : i32
    %252 = tpu.assume_multiple %251, 8 : i32
    %253 = arith.index_cast %252 : i32 to index
    %c0_94 = arith.constant 0 : index
    %254 = vector.load %arg10[%253, %c0_94] : memref<64x512xf32, #tpu.memory_space<vmem>>, vector<8x512xf32>
    %255 = arith.truncf %249 : vector<8x128xf32> to vector<8x128xbf16>
    %c0_95 = arith.constant 0 : index
    %c0_96 = arith.constant 0 : index
    %256 = vector.load %arg5[%c0_95, %c0_96] : memref<128x512xbf16, #tpu.memory_space<vmem>>, vector<128x512xbf16>
    %cst_97 = arith.constant dense<0.000000e+00> : vector<8x512xf32>
    %257 = tpu.matmul %255, %256, %cst_97 {dimension_numbers = #tpu.dot_dimension_numbers<[1], [0], [0], [1], [0, 0, 1, 1], [], []>} : vector<8x128xbf16>, vector<128x512xbf16>, vector<8x512xf32> -> vector<8x512xf32>
    %258 = arith.addf %254, %257 : vector<8x512xf32>
    %259 = vector.extract_strided_slice %258 {offsets = [0, 0], sizes = [8, 384], strides = [1, 1]} : vector<8x512xf32> to vector<8x384xf32>
    %260 = arith.negf %259 : vector<8x384xf32>
    %261 = math.exp %260 : vector<8x384xf32>
    %cst_98 = arith.constant 1.000000e+00 : f32
    %262 = vector.broadcast %cst_98 : f32 to vector<8x384xf32>
    %263 = arith.addf %262, %261 : vector<8x384xf32>
    %264 = arith.divf %262, %263 : vector<8x384xf32>
    %265 = vector.extract_strided_slice %264 {offsets = [0, 0], sizes = [8, 128], strides = [1, 1]} : vector<8x384xf32> to vector<8x128xf32>
    %266 = vector.extract_strided_slice %264 {offsets = [0, 128], sizes = [8, 128], strides = [1, 1]} : vector<8x384xf32> to vector<8x128xf32>
    %267 = vector.extract_strided_slice %264 {offsets = [0, 256], sizes = [8, 128], strides = [1, 1]} : vector<8x384xf32> to vector<8x128xf32>
    %268 = vector.extract_strided_slice %258 {offsets = [0, 384], sizes = [8, 128], strides = [1, 1]} : vector<8x512xf32> to vector<8x128xf32>
    %269 = math.tanh %268 : vector<8x128xf32>
    %270 = arith.mulf %266, %250 : vector<8x128xf32>
    %271 = arith.mulf %265, %269 : vector<8x128xf32>
    %272 = arith.addf %270, %271 : vector<8x128xf32>
    %273 = math.tanh %272 : vector<8x128xf32>
    %274 = arith.mulf %267, %273 : vector<8x128xf32>
    %c1_i32_99 = arith.constant 1 : i32
    %c8_i32_100 = arith.constant 8 : i32
    %275 = arith.muli %c1_i32_99, %c8_i32_100 : i32
    %276 = tpu.assume_multiple %275, 8 : i32
    %277 = arith.index_cast %276 : i32 to index
    %c0_101 = arith.constant 0 : index
    %278 = vector.load %arg10[%277, %c0_101] : memref<64x512xf32, #tpu.memory_space<vmem>>, vector<8x512xf32>
    %279 = arith.truncf %274 : vector<8x128xf32> to vector<8x128xbf16>
    %c0_102 = arith.constant 0 : index
    %c0_103 = arith.constant 0 : index
    %280 = vector.load %arg5[%c0_102, %c0_103] : memref<128x512xbf16, #tpu.memory_space<vmem>>, vector<128x512xbf16>
    %cst_104 = arith.constant dense<0.000000e+00> : vector<8x512xf32>
    %281 = tpu.matmul %279, %280, %cst_104 {dimension_numbers = #tpu.dot_dimension_numbers<[1], [0], [0], [1], [0, 0, 1, 1], [], []>} : vector<8x128xbf16>, vector<128x512xbf16>, vector<8x512xf32> -> vector<8x512xf32>
    %282 = arith.addf %278, %281 : vector<8x512xf32>
    %283 = vector.extract_strided_slice %282 {offsets = [0, 0], sizes = [8, 384], strides = [1, 1]} : vector<8x512xf32> to vector<8x384xf32>
    %284 = arith.negf %283 : vector<8x384xf32>
    %285 = math.exp %284 : vector<8x384xf32>
    %cst_105 = arith.constant 1.000000e+00 : f32
    %286 = vector.broadcast %cst_105 : f32 to vector<8x384xf32>
    %287 = arith.addf %286, %285 : vector<8x384xf32>
    %288 = arith.divf %286, %287 : vector<8x384xf32>
    %289 = vector.extract_strided_slice %288 {offsets = [0, 0], sizes = [8, 128], strides = [1, 1]} : vector<8x384xf32> to vector<8x128xf32>
    %290 = vector.extract_strided_slice %288 {offsets = [0, 128], sizes = [8, 128], strides = [1, 1]} : vector<8x384xf32> to vector<8x128xf32>
    %291 = vector.extract_strided_slice %288 {offsets = [0, 256], sizes = [8, 128], strides = [1, 1]} : vector<8x384xf32> to vector<8x128xf32>
    %292 = vector.extract_strided_slice %282 {offsets = [0, 384], sizes = [8, 128], strides = [1, 1]} : vector<8x512xf32> to vector<8x128xf32>
    %293 = math.tanh %292 : vector<8x128xf32>
    %294 = arith.mulf %290, %272 : vector<8x128xf32>
    %295 = arith.mulf %289, %293 : vector<8x128xf32>
    %296 = arith.addf %294, %295 : vector<8x128xf32>
    %297 = math.tanh %296 : vector<8x128xf32>
    %298 = arith.mulf %291, %297 : vector<8x128xf32>
    %c2_i32_106 = arith.constant 2 : i32
    %c8_i32_107 = arith.constant 8 : i32
    %299 = arith.muli %c2_i32_106, %c8_i32_107 : i32
    %300 = tpu.assume_multiple %299, 8 : i32
    %301 = arith.index_cast %300 : i32 to index
    %c0_108 = arith.constant 0 : index
    %302 = vector.load %arg10[%301, %c0_108] : memref<64x512xf32, #tpu.memory_space<vmem>>, vector<8x512xf32>
    %303 = arith.truncf %298 : vector<8x128xf32> to vector<8x128xbf16>
    %c0_109 = arith.constant 0 : index
    %c0_110 = arith.constant 0 : index
    %304 = vector.load %arg5[%c0_109, %c0_110] : memref<128x512xbf16, #tpu.memory_space<vmem>>, vector<128x512xbf16>
    %cst_111 = arith.constant dense<0.000000e+00> : vector<8x512xf32>
    %305 = tpu.matmul %303, %304, %cst_111 {dimension_numbers = #tpu.dot_dimension_numbers<[1], [0], [0], [1], [0, 0, 1, 1], [], []>} : vector<8x128xbf16>, vector<128x512xbf16>, vector<8x512xf32> -> vector<8x512xf32>
    %306 = arith.addf %302, %305 : vector<8x512xf32>
    %307 = vector.extract_strided_slice %306 {offsets = [0, 0], sizes = [8, 384], strides = [1, 1]} : vector<8x512xf32> to vector<8x384xf32>
    %308 = arith.negf %307 : vector<8x384xf32>
    %309 = math.exp %308 : vector<8x384xf32>
    %cst_112 = arith.constant 1.000000e+00 : f32
    %310 = vector.broadcast %cst_112 : f32 to vector<8x384xf32>
    %311 = arith.addf %310, %309 : vector<8x384xf32>
    %312 = arith.divf %310, %311 : vector<8x384xf32>
    %313 = vector.extract_strided_slice %312 {offsets = [0, 0], sizes = [8, 128], strides = [1, 1]} : vector<8x384xf32> to vector<8x128xf32>
    %314 = vector.extract_strided_slice %312 {offsets = [0, 128], sizes = [8, 128], strides = [1, 1]} : vector<8x384xf32> to vector<8x128xf32>
    %315 = vector.extract_strided_slice %312 {offsets = [0, 256], sizes = [8, 128], strides = [1, 1]} : vector<8x384xf32> to vector<8x128xf32>
    %316 = vector.extract_strided_slice %306 {offsets = [0, 384], sizes = [8, 128], strides = [1, 1]} : vector<8x512xf32> to vector<8x128xf32>
    %317 = math.tanh %316 : vector<8x128xf32>
    %318 = arith.mulf %314, %296 : vector<8x128xf32>
    %319 = arith.mulf %313, %317 : vector<8x128xf32>
    %320 = arith.addf %318, %319 : vector<8x128xf32>
    %321 = math.tanh %320 : vector<8x128xf32>
    %322 = arith.mulf %315, %321 : vector<8x128xf32>
    %c3_i32_113 = arith.constant 3 : i32
    %c8_i32_114 = arith.constant 8 : i32
    %323 = arith.muli %c3_i32_113, %c8_i32_114 : i32
    %324 = tpu.assume_multiple %323, 8 : i32
    %325 = arith.index_cast %324 : i32 to index
    %c0_115 = arith.constant 0 : index
    %326 = vector.load %arg10[%325, %c0_115] : memref<64x512xf32, #tpu.memory_space<vmem>>, vector<8x512xf32>
    %327 = arith.truncf %322 : vector<8x128xf32> to vector<8x128xbf16>
    %c0_116 = arith.constant 0 : index
    %c0_117 = arith.constant 0 : index
    %328 = vector.load %arg5[%c0_116, %c0_117] : memref<128x512xbf16, #tpu.memory_space<vmem>>, vector<128x512xbf16>
    %cst_118 = arith.constant dense<0.000000e+00> : vector<8x512xf32>
    %329 = tpu.matmul %327, %328, %cst_118 {dimension_numbers = #tpu.dot_dimension_numbers<[1], [0], [0], [1], [0, 0, 1, 1], [], []>} : vector<8x128xbf16>, vector<128x512xbf16>, vector<8x512xf32> -> vector<8x512xf32>
    %330 = arith.addf %326, %329 : vector<8x512xf32>
    %331 = vector.extract_strided_slice %330 {offsets = [0, 0], sizes = [8, 384], strides = [1, 1]} : vector<8x512xf32> to vector<8x384xf32>
    %332 = arith.negf %331 : vector<8x384xf32>
    %333 = math.exp %332 : vector<8x384xf32>
    %cst_119 = arith.constant 1.000000e+00 : f32
    %334 = vector.broadcast %cst_119 : f32 to vector<8x384xf32>
    %335 = arith.addf %334, %333 : vector<8x384xf32>
    %336 = arith.divf %334, %335 : vector<8x384xf32>
    %337 = vector.extract_strided_slice %336 {offsets = [0, 0], sizes = [8, 128], strides = [1, 1]} : vector<8x384xf32> to vector<8x128xf32>
    %338 = vector.extract_strided_slice %336 {offsets = [0, 128], sizes = [8, 128], strides = [1, 1]} : vector<8x384xf32> to vector<8x128xf32>
    %339 = vector.extract_strided_slice %336 {offsets = [0, 256], sizes = [8, 128], strides = [1, 1]} : vector<8x384xf32> to vector<8x128xf32>
    %340 = vector.extract_strided_slice %330 {offsets = [0, 384], sizes = [8, 128], strides = [1, 1]} : vector<8x512xf32> to vector<8x128xf32>
    %341 = math.tanh %340 : vector<8x128xf32>
    %342 = arith.mulf %338, %320 : vector<8x128xf32>
    %343 = arith.mulf %337, %341 : vector<8x128xf32>
    %344 = arith.addf %342, %343 : vector<8x128xf32>
    %345 = math.tanh %344 : vector<8x128xf32>
    %346 = arith.mulf %339, %345 : vector<8x128xf32>
    %c4_i32_120 = arith.constant 4 : i32
    %c8_i32_121 = arith.constant 8 : i32
    %347 = arith.muli %c4_i32_120, %c8_i32_121 : i32
    %348 = tpu.assume_multiple %347, 8 : i32
    %349 = arith.index_cast %348 : i32 to index
    %c0_122 = arith.constant 0 : index
    %350 = vector.load %arg10[%349, %c0_122] : memref<64x512xf32, #tpu.memory_space<vmem>>, vector<8x512xf32>
    %351 = arith.truncf %346 : vector<8x128xf32> to vector<8x128xbf16>
    %c0_123 = arith.constant 0 : index
    %c0_124 = arith.constant 0 : index
    %352 = vector.load %arg5[%c0_123, %c0_124] : memref<128x512xbf16, #tpu.memory_space<vmem>>, vector<128x512xbf16>
    %cst_125 = arith.constant dense<0.000000e+00> : vector<8x512xf32>
    %353 = tpu.matmul %351, %352, %cst_125 {dimension_numbers = #tpu.dot_dimension_numbers<[1], [0], [0], [1], [0, 0, 1, 1], [], []>} : vector<8x128xbf16>, vector<128x512xbf16>, vector<8x512xf32> -> vector<8x512xf32>
    %354 = arith.addf %350, %353 : vector<8x512xf32>
    %355 = vector.extract_strided_slice %354 {offsets = [0, 0], sizes = [8, 384], strides = [1, 1]} : vector<8x512xf32> to vector<8x384xf32>
    %356 = arith.negf %355 : vector<8x384xf32>
    %357 = math.exp %356 : vector<8x384xf32>
    %cst_126 = arith.constant 1.000000e+00 : f32
    %358 = vector.broadcast %cst_126 : f32 to vector<8x384xf32>
    %359 = arith.addf %358, %357 : vector<8x384xf32>
    %360 = arith.divf %358, %359 : vector<8x384xf32>
    %361 = vector.extract_strided_slice %360 {offsets = [0, 0], sizes = [8, 128], strides = [1, 1]} : vector<8x384xf32> to vector<8x128xf32>
    %362 = vector.extract_strided_slice %360 {offsets = [0, 128], sizes = [8, 128], strides = [1, 1]} : vector<8x384xf32> to vector<8x128xf32>
    %363 = vector.extract_strided_slice %360 {offsets = [0, 256], sizes = [8, 128], strides = [1, 1]} : vector<8x384xf32> to vector<8x128xf32>
    %364 = vector.extract_strided_slice %354 {offsets = [0, 384], sizes = [8, 128], strides = [1, 1]} : vector<8x512xf32> to vector<8x128xf32>
    %365 = math.tanh %364 : vector<8x128xf32>
    %366 = arith.mulf %362, %344 : vector<8x128xf32>
    %367 = arith.mulf %361, %365 : vector<8x128xf32>
    %368 = arith.addf %366, %367 : vector<8x128xf32>
    %369 = math.tanh %368 : vector<8x128xf32>
    %370 = arith.mulf %363, %369 : vector<8x128xf32>
    %c5_i32_127 = arith.constant 5 : i32
    %c8_i32_128 = arith.constant 8 : i32
    %371 = arith.muli %c5_i32_127, %c8_i32_128 : i32
    %372 = tpu.assume_multiple %371, 8 : i32
    %373 = arith.index_cast %372 : i32 to index
    %c0_129 = arith.constant 0 : index
    %374 = vector.load %arg10[%373, %c0_129] : memref<64x512xf32, #tpu.memory_space<vmem>>, vector<8x512xf32>
    %375 = arith.truncf %370 : vector<8x128xf32> to vector<8x128xbf16>
    %c0_130 = arith.constant 0 : index
    %c0_131 = arith.constant 0 : index
    %376 = vector.load %arg5[%c0_130, %c0_131] : memref<128x512xbf16, #tpu.memory_space<vmem>>, vector<128x512xbf16>
    %cst_132 = arith.constant dense<0.000000e+00> : vector<8x512xf32>
    %377 = tpu.matmul %375, %376, %cst_132 {dimension_numbers = #tpu.dot_dimension_numbers<[1], [0], [0], [1], [0, 0, 1, 1], [], []>} : vector<8x128xbf16>, vector<128x512xbf16>, vector<8x512xf32> -> vector<8x512xf32>
    %378 = arith.addf %374, %377 : vector<8x512xf32>
    %379 = vector.extract_strided_slice %378 {offsets = [0, 0], sizes = [8, 384], strides = [1, 1]} : vector<8x512xf32> to vector<8x384xf32>
    %380 = arith.negf %379 : vector<8x384xf32>
    %381 = math.exp %380 : vector<8x384xf32>
    %cst_133 = arith.constant 1.000000e+00 : f32
    %382 = vector.broadcast %cst_133 : f32 to vector<8x384xf32>
    %383 = arith.addf %382, %381 : vector<8x384xf32>
    %384 = arith.divf %382, %383 : vector<8x384xf32>
    %385 = vector.extract_strided_slice %384 {offsets = [0, 0], sizes = [8, 128], strides = [1, 1]} : vector<8x384xf32> to vector<8x128xf32>
    %386 = vector.extract_strided_slice %384 {offsets = [0, 128], sizes = [8, 128], strides = [1, 1]} : vector<8x384xf32> to vector<8x128xf32>
    %387 = vector.extract_strided_slice %384 {offsets = [0, 256], sizes = [8, 128], strides = [1, 1]} : vector<8x384xf32> to vector<8x128xf32>
    %388 = vector.extract_strided_slice %378 {offsets = [0, 384], sizes = [8, 128], strides = [1, 1]} : vector<8x512xf32> to vector<8x128xf32>
    %389 = math.tanh %388 : vector<8x128xf32>
    %390 = arith.mulf %386, %368 : vector<8x128xf32>
    %391 = arith.mulf %385, %389 : vector<8x128xf32>
    %392 = arith.addf %390, %391 : vector<8x128xf32>
    %393 = math.tanh %392 : vector<8x128xf32>
    %394 = arith.mulf %387, %393 : vector<8x128xf32>
    %c6_i32_134 = arith.constant 6 : i32
    %c8_i32_135 = arith.constant 8 : i32
    %395 = arith.muli %c6_i32_134, %c8_i32_135 : i32
    %396 = tpu.assume_multiple %395, 8 : i32
    %397 = arith.index_cast %396 : i32 to index
    %c0_136 = arith.constant 0 : index
    %398 = vector.load %arg10[%397, %c0_136] : memref<64x512xf32, #tpu.memory_space<vmem>>, vector<8x512xf32>
    %399 = arith.truncf %394 : vector<8x128xf32> to vector<8x128xbf16>
    %c0_137 = arith.constant 0 : index
    %c0_138 = arith.constant 0 : index
    %400 = vector.load %arg5[%c0_137, %c0_138] : memref<128x512xbf16, #tpu.memory_space<vmem>>, vector<128x512xbf16>
    %cst_139 = arith.constant dense<0.000000e+00> : vector<8x512xf32>
    %401 = tpu.matmul %399, %400, %cst_139 {dimension_numbers = #tpu.dot_dimension_numbers<[1], [0], [0], [1], [0, 0, 1, 1], [], []>} : vector<8x128xbf16>, vector<128x512xbf16>, vector<8x512xf32> -> vector<8x512xf32>
    %402 = arith.addf %398, %401 : vector<8x512xf32>
    %403 = vector.extract_strided_slice %402 {offsets = [0, 0], sizes = [8, 384], strides = [1, 1]} : vector<8x512xf32> to vector<8x384xf32>
    %404 = arith.negf %403 : vector<8x384xf32>
    %405 = math.exp %404 : vector<8x384xf32>
    %cst_140 = arith.constant 1.000000e+00 : f32
    %406 = vector.broadcast %cst_140 : f32 to vector<8x384xf32>
    %407 = arith.addf %406, %405 : vector<8x384xf32>
    %408 = arith.divf %406, %407 : vector<8x384xf32>
    %409 = vector.extract_strided_slice %408 {offsets = [0, 0], sizes = [8, 128], strides = [1, 1]} : vector<8x384xf32> to vector<8x128xf32>
    %410 = vector.extract_strided_slice %408 {offsets = [0, 128], sizes = [8, 128], strides = [1, 1]} : vector<8x384xf32> to vector<8x128xf32>
    %411 = vector.extract_strided_slice %408 {offsets = [0, 256], sizes = [8, 128], strides = [1, 1]} : vector<8x384xf32> to vector<8x128xf32>
    %412 = vector.extract_strided_slice %402 {offsets = [0, 384], sizes = [8, 128], strides = [1, 1]} : vector<8x512xf32> to vector<8x128xf32>
    %413 = math.tanh %412 : vector<8x128xf32>
    %414 = arith.mulf %410, %392 : vector<8x128xf32>
    %415 = arith.mulf %409, %413 : vector<8x128xf32>
    %416 = arith.addf %414, %415 : vector<8x128xf32>
    %417 = math.tanh %416 : vector<8x128xf32>
    %418 = arith.mulf %411, %417 : vector<8x128xf32>
    %c7_i32_141 = arith.constant 7 : i32
    %c8_i32_142 = arith.constant 8 : i32
    %419 = arith.muli %c7_i32_141, %c8_i32_142 : i32
    %420 = tpu.assume_multiple %419, 8 : i32
    %421 = arith.index_cast %420 : i32 to index
    %c0_143 = arith.constant 0 : index
    %422 = vector.load %arg10[%421, %c0_143] : memref<64x512xf32, #tpu.memory_space<vmem>>, vector<8x512xf32>
    %423 = arith.truncf %418 : vector<8x128xf32> to vector<8x128xbf16>
    %c0_144 = arith.constant 0 : index
    %c0_145 = arith.constant 0 : index
    %424 = vector.load %arg5[%c0_144, %c0_145] : memref<128x512xbf16, #tpu.memory_space<vmem>>, vector<128x512xbf16>
    %cst_146 = arith.constant dense<0.000000e+00> : vector<8x512xf32>
    %425 = tpu.matmul %423, %424, %cst_146 {dimension_numbers = #tpu.dot_dimension_numbers<[1], [0], [0], [1], [0, 0, 1, 1], [], []>} : vector<8x128xbf16>, vector<128x512xbf16>, vector<8x512xf32> -> vector<8x512xf32>
    %426 = arith.addf %422, %425 : vector<8x512xf32>
    %427 = vector.extract_strided_slice %426 {offsets = [0, 0], sizes = [8, 384], strides = [1, 1]} : vector<8x512xf32> to vector<8x384xf32>
    %428 = arith.negf %427 : vector<8x384xf32>
    %429 = math.exp %428 : vector<8x384xf32>
    %cst_147 = arith.constant 1.000000e+00 : f32
    %430 = vector.broadcast %cst_147 : f32 to vector<8x384xf32>
    %431 = arith.addf %430, %429 : vector<8x384xf32>
    %432 = arith.divf %430, %431 : vector<8x384xf32>
    %433 = vector.extract_strided_slice %432 {offsets = [0, 0], sizes = [8, 128], strides = [1, 1]} : vector<8x384xf32> to vector<8x128xf32>
    %434 = vector.extract_strided_slice %432 {offsets = [0, 128], sizes = [8, 128], strides = [1, 1]} : vector<8x384xf32> to vector<8x128xf32>
    %435 = vector.extract_strided_slice %432 {offsets = [0, 256], sizes = [8, 128], strides = [1, 1]} : vector<8x384xf32> to vector<8x128xf32>
    %436 = vector.extract_strided_slice %426 {offsets = [0, 384], sizes = [8, 128], strides = [1, 1]} : vector<8x512xf32> to vector<8x128xf32>
    %437 = math.tanh %436 : vector<8x128xf32>
    %438 = arith.mulf %434, %416 : vector<8x128xf32>
    %439 = arith.mulf %433, %437 : vector<8x128xf32>
    %440 = arith.addf %438, %439 : vector<8x128xf32>
    %441 = math.tanh %440 : vector<8x128xf32>
    %442 = arith.mulf %435, %441 : vector<8x128xf32>
    %c8_i32_148 = arith.constant 8 : i32
    %443 = arith.truncf %442 : vector<8x128xf32> to vector<8x128xbf16>
    %c0_149 = arith.constant 0 : index
    %c0_150 = arith.constant 0 : index
    %444 = vector.load %arg7[%c0_149, %c0_150] : memref<128x4xbf16, #tpu.memory_space<vmem>>, vector<128x4xbf16>
    %cst_151 = arith.constant dense<0.000000e+00> : vector<8x4xf32>
    %445 = tpu.matmul %443, %444, %cst_151 {dimension_numbers = #tpu.dot_dimension_numbers<[1], [0], [0], [1], [0, 0, 1, 1], [], []>} : vector<8x128xbf16>, vector<128x4xbf16>, vector<8x4xf32> -> vector<8x4xf32>
    %c0_152 = arith.constant 0 : index
    %c0_153 = arith.constant 0 : index
    %446 = vector.load %arg8[%c0_152, %c0_153] : memref<1x4xf32, #tpu.memory_space<vmem>>, vector<1x4xf32>
    %447 = vector.broadcast %446 : vector<1x4xf32> to vector<8x4xf32>
    %448 = arith.addf %445, %447 : vector<8x4xf32>
    %c0_154 = arith.constant 0 : index
    %c0_155 = arith.constant 0 : index
    %449 = vector.load %arg9[%c0_154, %c0_155] : memref<8x4xf32, #tpu.memory_space<vmem>>, vector<8x4xf32>
    tpu.vector_store %arg9[%c0_154, %c0_155], %448 {strides = array<i32>} : memref<8x4xf32, #tpu.memory_space<vmem>>, vector<8x4xf32>,
    return
  }
}

</mosaic_0001>

<llo_original>
// kernel: tpu_custom_call.1
$region0: #{tpu_custom_call.1}
  #allocation0 [shape = 'u32[]', space=smem, size = 0x4, offset = 0x4, fixed_abs, tag = 'smem constant byte address 0x4 - core index']
  #allocation1 [shape = 'u32[144,128]{1,0:T(1,128)}', space=vmem, size = 0x12000, scoped, tag = 'internal scratch']
  #allocation2 [shape = 'f32[64,512]{1,0:T(8,128)}', space=vmem, size = 0x20000, scoped, tag = 'scratch operand']
  #allocation3 [shape = 'f32[64,128]{1,0:T(8,128)}', space=vmem, size = 0x8000, scoped, tag = 'scratch operand']
  %s0 = inlined_call_operand.vmem [shape: bf16[64,16], index: 0, kind: input, shape index: {}]
  %s1 = inlined_call_operand.vmem [shape: bf16[16,512], index: 1, kind: input, shape index: {}]
  %s2 = inlined_call_operand.hbm [shape: bf16[128,512], index: 2, kind: input, shape index: {}]
  %s3 = inlined_call_operand.vmem [shape: f32[1,512], index: 3, kind: input, shape index: {}]
  %s4 = inlined_call_operand.hbm [shape: bf16[128,512], index: 4, kind: input, shape index: {}]
  %s5 = inlined_call_operand.hbm [shape: bf16[128,512], index: 5, kind: input, shape index: {}]
  %s6 = inlined_call_operand.vmem [shape: f32[1,512], index: 6, kind: input, shape index: {}]
  %s7 = inlined_call_operand.vmem [shape: bf16[128,4], index: 7, kind: input, shape index: {}]
  %s8 = inlined_call_operand.vmem [shape: f32[1,4], index: 8, kind: input, shape index: {}]
  %s9 = inlined_call_operand.vmem [shape: f32[8,4], index: 9, kind: output, shape index: {}]
  %s10 = sld [smem:[#allocation0]]
  $region58: #{tpu_custom_call.1} parent=0
    _
  %s12 = ssub.s32 1, %s10
  %s13 = scalar_select 0, %s12, %s10
  $region1: #{tpu_custom_call.1} parent=0
    #allocation4 [shape = 'u8[131072]{0}', space=vmem, size = 0x20000, scoped, tag = 'input window, operand 2, single buffered']
    #allocation5 [shape = 's32[1]{0}', space=sflag, size = 0x4, scoped, tag = 'scoped memory for tpu_custom_call.1']
    #allocation6 [shape = 'u8[131072]{0}', space=vmem, size = 0x20000, scoped, tag = 'input window, operand 4, single buffered']
    #allocation7 [shape = 's32[1]{0}', space=sflag, size = 0x4, scoped, tag = 'scoped memory for tpu_custom_call.1']
    #allocation8 [shape = 'u8[131072]{0}', space=vmem, size = 0x20000, scoped, tag = 'input window, operand 5, single buffered']
    %14 = vsyncpa [#allocation5], 0
    %15 = vsyncpa [#allocation7], 0
    // Predicated region
    $region2: #{tpu_custom_call.1} parent=1 // pred_check
      _
    $region3: #{tpu_custom_call.1} parent=1 // pred_check_branch
      %17 = sbr.rel (0) target = $region5
    $region4: #{tpu_custom_call.1} parent=1 // pred_region
      _
    $region5: #{tpu_custom_call.1} parent=1 // pred_fallthru
      _
    // Predicated region
    $region6: #{tpu_custom_call.1} parent=1 // pred_check
      _
    $region7: #{tpu_custom_call.1} parent=1 // pred_check_branch
      %19 = sbr.rel (0) target = $region9
    $region8: #{tpu_custom_call.1} parent=1 // pred_region
      _
    $region9: #{tpu_custom_call.1} parent=1 // pred_fallthru
      _
    // Predicated region
    $region10: #{tpu_custom_call.1} parent=1 // pred_check
      _
    $region11: #{tpu_custom_call.1} parent=1 // pred_check_branch
      %21 = sbr.rel (0) target = $region13
    $region12: #{tpu_custom_call.1} parent=1 // pred_region
      %s23 = ssub.s32 4096, 4096
      %24 = vsyncadd [#allocation5], %s23
      %s25 = sshll.u32 [#allocation4], 4
      %s26 = int_to_ptr.vmem [resolvable:$true] %s25
      %31 = dma.hbm_to_vmem [thread:$0]  %s2, 4096, %s26, [#allocation5], 256, 256, 16
    $region13: #{tpu_custom_call.1} parent=1 // pred_fallthru
      _
    // Predicated region
    $region14: #{tpu_custom_call.1} parent=1 // pred_check
      _
    $region15: #{tpu_custom_call.1} parent=1 // pred_check_branch
      %33 = sbr.rel (0) target = $region17
    $region16: #{tpu_custom_call.1} parent=1 // pred_region
      _
    $region17: #{tpu_custom_call.1} parent=1 // pred_fallthru
      _
    // Predicated region
    $region18: #{tpu_custom_call.1} parent=1 // pred_check
      _
    $region19: #{tpu_custom_call.1} parent=1 // pred_check_branch
      %35 = sbr.rel (0) target = $region21
    $region20: #{tpu_custom_call.1} parent=1 // pred_region
      %s37 = ssub.s32 4096, 4096
      %38 = vsyncadd [#allocation7], %s37
      %s39 = sshll.u32 [#allocation6], 4
      %s40 = int_to_ptr.vmem [resolvable:$true] %s39
      %45 = dma.hbm_to_vmem [thread:$0]  %s4, 4096, %s40, [#allocation7], 256, 256, 16
    $region21: #{tpu_custom_call.1} parent=1 // pred_fallthru
      _
    // Predicated region
    $region22: #{tpu_custom_call.1} parent=1 // pred_check
      _
    $region23: #{tpu_custom_call.1} parent=1 // pred_check_branch
      %47 = sbr.rel (0) target = $region25
    $region24: #{tpu_custom_call.1} parent=1 // pred_region
      %s49 = ssub.s32 4096, 4096
      %50 = vsyncadd [#allocation7], %s49
      %s51 = sshll.u32 [#allocation8], 4
      %s52 = int_to_ptr.vmem [resolvable:$true] %s51
      %57 = dma.hbm_to_vmem [thread:$0]  %s5, 4096, %s52, [#allocation7], 256, 256, 16
    $region25: #{tpu_custom_call.1} parent=1 // pred_fallthru
      _
    // Predicated region
    $region26: #{tpu_custom_call.1} parent=1 // pred_check
      _
    $region27: #{tpu_custom_call.1} parent=1 // pred_check_branch
      %59 = sbr.rel (0) target = $region29
    $region28: #{tpu_custom_call.1} parent=1 // pred_region
      _
    $region29: #{tpu_custom_call.1} parent=1 // pred_fallthru
      _
    // Predicated region
    $region30: #{tpu_custom_call.1} parent=1 // pred_check
      _
    $region31: #{tpu_custom_call.1} parent=1 // pred_check_branch
      %61 = sbr.rel (0) target = $region33
    $region32: #{tpu_custom_call.1} parent=1 // pred_region
      _
    $region33: #{tpu_custom_call.1} parent=1 // pred_fallthru
      _
    // Predicated region
    $region34: #{tpu_custom_call.1} parent=1 // pred_check
      _
    $region35: #{tpu_custom_call.1} parent=1 // pred_check_branch
      %63 = sbr.rel (0) target = $region37
    $region36: #{tpu_custom_call.1} parent=1 // pred_region
      _
    $region37: #{tpu_custom_call.1} parent=1 // pred_fallthru
      _
    // Predicated region
    $region38: #{tpu_custom_call.1} parent=1 // pred_check
      _
    $region39: #{tpu_custom_call.1} parent=1 // pred_check_branch
      %65 = sbr.rel (0) target = $region41
    $region40: #{tpu_custom_call.1} parent=1 // pred_region
      %66 = dma.done [#allocation5], 4096
    $region41: #{tpu_custom_call.1} parent=1 // pred_fallthru
      _
    // Predicated region
    $region42: #{tpu_custom_call.1} parent=1 // pred_check
      _
    $region43: #{tpu_custom_call.1} parent=1 // pred_check_branch
      %68 = sbr.rel (0) target = $region45
    $region44: #{tpu_custom_call.1} parent=1 // pred_region
      %69 = dma.done [#allocation7], 4096
    $region45: #{tpu_custom_call.1} parent=1 // pred_fallthru
      _
    // Predicated region
    $region46: #{tpu_custom_call.1} parent=1 // pred_check
      _
    $region47: #{tpu_custom_call.1} parent=1 // pred_check_branch
      %71 = sbr.rel (0) target = $region49
    $region48: #{tpu_custom_call.1} parent=1 // pred_region
      %72 = dma.done [#allocation7], 4096
    $region49: #{tpu_custom_call.1} parent=1 // pred_fallthru
      _
    %v74 = vld [vmem:[%s3] sm:$0xf]
    %v75 = vld [vmem:[%s0] sm:$0xf]
    %v76 = vld [vmem:[%s0 + $0x4] sm:$0xf]
    %v77 = vld [vmem:[%s0 + $0x8] sm:$0xf]
    %v78 = vld [vmem:[%s0 + $0xc] sm:$0xf]
    %v79 = vld [vmem:[%s0 + $0x10] sm:$0xf]
    %v80 = vld [vmem:[%s0 + $0x14] sm:$0xf]
    %v81 = vld [vmem:[%s0 + $0x18] sm:$0xf]
    %v82 = vld [vmem:[%s0 + $0x1c] sm:$0xf]
    %v83 = vld [vmem:[%s1] sm:$0xff]
    %v84 = vld [vmem:[%s1 + $0x8] sm:$0xff]
    %v85 = vld [vmem:[%s1 + $0x10] sm:$0xff]
    %v86 = vld [vmem:[%s1 + $0x18] sm:$0xff]
    %v88 = vlaneseq
    %v89 = vshrl.u32 %v88, 7
    %v90 = vsub.s32 0, %v89
    %v91 = vrot.slane %v74, %v90
    %v92 = vlaneseq
    %v93 = vshrl.u32 %v92, 7
    %v94 = vsub.s32 1, %v93
    %v95 = vrot.slane %v74, %v94
    %v96 = vlaneseq
    %v97 = vshrl.u32 %v96, 7
    %v98 = vsub.s32 2, %v97
    %v99 = vrot.slane %v74, %v98
    %v100 = vlaneseq
    %v101 = vshrl.u32 %v100, 7
    %v102 = vsub.s32 3, %v101
    %v103 = vrot.slane %v74, %v102
    %v116 = vunpack.c.l.b16 %v75
    %v117 = vunpack.c.l.b16 %v76
    %v118 = vunpack.c.l.b16 %v77
    %v119 = vunpack.c.l.b16 %v78
    %v120 = vunpack.c.l.b16 %v79
    %v121 = vunpack.c.l.b16 %v80
    %v122 = vunpack.c.l.b16 %v81
    %v123 = vunpack.c.l.b16 %v82
    %v124 = vpack.c.b16 %v117, %v116
    %v125 = vpack.c.b16 %v119, %v118
    %v126 = vpack.c.b16 %v121, %v120
    %v127 = vpack.c.b16 %v123, %v122
    %v132 = vunpack.c.l.b16 %v83
    %v133 = vunpack.c.h.b16 %v83
    %v134 = vunpack.c.l.b16 %v84
    %v135 = vunpack.c.h.b16 %v84
    %v136 = vunpack.c.l.b16 %v85
    %v137 = vunpack.c.h.b16 %v85
    %v138 = vunpack.c.l.b16 %v86
    %v139 = vunpack.c.h.b16 %v86
    %v140 = vpack.c.b16 %v136, %v132
    %v141 = vpack.c.b16 %v137, %v133
    %v142 = vpack.c.b16 %v138, %v134
    %v143 = vpack.c.b16 %v139, %v135
    %vm148 = vcmask 130048
    %v150 = vsel %vm148, %v124, 0
    %v153 = vsel %vm148, %v125, 0
    %v156 = vsel %vm148, %v126, 0
    %v159 = vsel %vm148, %v127, 0
    %161 = vmatprep.subr.bf16.mxu0 %v141
    %162 = vmatpush1.bf16.msra.mxu0 %v140
    %163 = vmatprep.subr.bf16.mxu0 0
    %164 = vmatpush1.bf16.msra.mxu0 0
    %165 = vmatprep.subr.bf16.mxu0 0
    %166 = vmatpush1.bf16.msra.mxu0 0
    %167 = vmatprep.subr.bf16.mxu0 0
    %168 = vmatpush1.bf16.msra.mxu0 0
    %169 = vmatprep.subr.bf16.mxu0 0
    %170 = vmatpush1.bf16.msra.mxu0 0
    %171 = vmatprep.subr.bf16.mxu0 0
    %172 = vmatpush1.bf16.msra.mxu0 0
    %173 = vmatprep.subr.bf16.mxu0 0
    %174 = vmatpush1.bf16.msra.mxu0 0
    %175 = vmatprep.subr.bf16.mxu0 0
    %176 = vmatpush1.bf16.msra.mxu0 0
    %177 = vmatprep.subr.bf16.mxu0 0
    %178 = vmatpush1.bf16.msra.mxu0 0
    %179 = vmatprep.subr.bf16.mxu0 0
    %180 = vmatpush1.bf16.msra.mxu0 0
    %181 = vmatprep.subr.bf16.mxu0 0
    %182 = vmatpush1.bf16.msra.mxu0 0
    %183 = vmatprep.subr.bf16.mxu0 0
    %184 = vmatpush1.bf16.msra.mxu0 0
    %185 = vmatprep.subr.bf16.mxu0 0
    %186 = vmatpush1.bf16.msra.mxu0 0
    %187 = vmatprep.subr.bf16.mxu0 0
    %188 = vmatpush1.bf16.msra.mxu0 0
    %189 = vmatprep.subr.bf16.mxu0 0
    %190 = vmatpush1.bf16.msra.mxu0 0
    %191 = vmatprep.subr.bf16.mxu0 0
    %192 = vmatpush1.bf16.msra.mxu0 0
    %193 = vmatprep.mubr.bf16.mxu0 0
    %194 = vmatmul.mubr.bf16.gmra.mrb[0].mxu0 %v150
    %v195 = vpop.f32.mrb[0].mxu0
    %v196 = vadd.f32 %v91, %v195
    %v197 = vpop.f32.mrb[0].mxu0
    %v198 = vadd.f32 %v95, %v197
    %v199 = vpop.f32.mrb[0].mxu0
    %v200 = vadd.f32 %v91, %v199
    %v201 = vpop.f32.mrb[0].mxu0
    %v202 = vadd.f32 %v95, %v201
    %203 = vmatprep.mubr.bf16.mxu0 0
    %204 = vmatmul.mubr.bf16.gmra.mrb[0].mxu0 %v153
    %v205 = vpop.f32.mrb[0].mxu0
    %v206 = vadd.f32 %v91, %v205
    %v207 = vpop.f32.mrb[0].mxu0
    %v208 = vadd.f32 %v95, %v207
    %v209 = vpop.f32.mrb[0].mxu0
    %v210 = vadd.f32 %v91, %v209
    %v211 = vpop.f32.mrb[0].mxu0
    %v212 = vadd.f32 %v95, %v211
    %213 = vmatprep.mubr.bf16.mxu0 0
    %214 = vmatmul.mubr.bf16.gmra.mrb[0].mxu0 %v156
    %v215 = vpop.f32.mrb[0].mxu0
    %v216 = vadd.f32 %v91, %v215
    %v217 = vpop.f32.mrb[0].mxu0
    %v218 = vadd.f32 %v95, %v217
    %v219 = vpop.f32.mrb[0].mxu0
    %v220 = vadd.f32 %v91, %v219
    %v221 = vpop.f32.mrb[0].mxu0
    %v222 = vadd.f32 %v95, %v221
    %223 = vmatprep.mubr.bf16.mxu0 0
    %224 = vmatmul.mubr.bf16.gmra.mrb[0].mxu0 %v159
    %v225 = vpop.f32.mrb[0].mxu0
    %v226 = vadd.f32 %v91, %v225
    %v227 = vpop.f32.mrb[0].mxu0
    %v228 = vadd.f32 %v95, %v227
    %v229 = vpop.f32.mrb[0].mxu0
    %v230 = vadd.f32 %v91, %v229
    %v231 = vpop.f32.mrb[0].mxu0
    %v232 = vadd.f32 %v95, %v231
    %233 = vdwg.mxu0
    %234 = vmatprep.subr.bf16.mxu0 %v143
    %235 = vmatpush1.bf16.msra.mxu0 %v142
    %236 = vmatprep.subr.bf16.mxu0 0
    %237 = vmatpush1.bf16.msra.mxu0 0
    %238 = vmatprep.subr.bf16.mxu0 0
    %239 = vmatpush1.bf16.msra.mxu0 0
    %240 = vmatprep.subr.bf16.mxu0 0
    %241 = vmatpush1.bf16.msra.mxu0 0
    %242 = vmatprep.subr.bf16.mxu0 0
    %243 = vmatpush1.bf16.msra.mxu0 0
    %244 = vmatprep.subr.bf16.mxu0 0
    %245 = vmatpush1.bf16.msra.mxu0 0
    %246 = vmatprep.subr.bf16.mxu0 0
    %247 = vmatpush1.bf16.msra.mxu0 0
    %248 = vmatprep.subr.bf16.mxu0 0
    %249 = vmatpush1.bf16.msra.mxu0 0
    %250 = vmatprep.subr.bf16.mxu0 0
    %251 = vmatpush1.bf16.msra.mxu0 0
    %252 = vmatprep.subr.bf16.mxu0 0
    %253 = vmatpush1.bf16.msra.mxu0 0
    %254 = vmatprep.subr.bf16.mxu0 0
    %255 = vmatpush1.bf16.msra.mxu0 0
    %256 = vmatprep.subr.bf16.mxu0 0
    %257 = vmatpush1.bf16.msra.mxu0 0
    %258 = vmatprep.subr.bf16.mxu0 0
    %259 = vmatpush1.bf16.msra.mxu0 0
    %260 = vmatprep.subr.bf16.mxu0 0
    %261 = vmatpush1.bf16.msra.mxu0 0
    %262 = vmatprep.subr.bf16.mxu0 0
    %263 = vmatpush1.bf16.msra.mxu0 0
    %264 = vmatprep.subr.bf16.mxu0 0
    %265 = vmatpush1.bf16.msra.mxu0 0
    %266 = vmatprep.mubr.bf16.mxu0 0
    %267 = vmatmul.mubr.bf16.gmra.mrb[0].mxu0 %v150
    %v268 = vpop.f32.mrb[0].mxu0
    %v269 = vadd.f32 %v99, %v268
    %v270 = vpop.f32.mrb[0].mxu0
    %v271 = vadd.f32 %v103, %v270
    %v272 = vpop.f32.mrb[0].mxu0
    %v273 = vadd.f32 %v99, %v272
    %v274 = vpop.f32.mrb[0].mxu0
    %v275 = vadd.f32 %v103, %v274
    %276 = vmatprep.mubr.bf16.mxu0 0
    %277 = vmatmul.mubr.bf16.gmra.mrb[0].mxu0 %v153
    %v278 = vpop.f32.mrb[0].mxu0
    %v279 = vadd.f32 %v99, %v278
    %v280 = vpop.f32.mrb[0].mxu0
    %v281 = vadd.f32 %v103, %v280
    %v282 = vpop.f32.mrb[0].mxu0
    %v283 = vadd.f32 %v99, %v282
    %v284 = vpop.f32.mrb[0].mxu0
    %v285 = vadd.f32 %v103, %v284
    %286 = vmatprep.mubr.bf16.mxu0 0
    %287 = vmatmul.mubr.bf16.gmra.mrb[0].mxu0 %v156
    %v288 = vpop.f32.mrb[0].mxu0
    %v289 = vadd.f32 %v99, %v288
    %v290 = vpop.f32.mrb[0].mxu0
    %v291 = vadd.f32 %v103, %v290
    %v292 = vpop.f32.mrb[0].mxu0
    %v293 = vadd.f32 %v99, %v292
    %v294 = vpop.f32.mrb[0].mxu0
    %v295 = vadd.f32 %v103, %v294
    %296 = vmatprep.mubr.bf16.mxu0 0
    %297 = vmatmul.mubr.bf16.gmra.mrb[0].mxu0 %v159
    %v298 = vpop.f32.mrb[0].mxu0
    %v299 = vadd.f32 %v99, %v298
    %v300 = vpop.f32.mrb[0].mxu0
    %v301 = vadd.f32 %v103, %v300
    %v302 = vpop.f32.mrb[0].mxu0
    %v303 = vadd.f32 %v99, %v302
    %v304 = vpop.f32.mrb[0].mxu0
    %v305 = vadd.f32 %v103, %v304
    %306 = vdwg.mxu0
    %307 = vst [vmem:[#allocation2] sm:$0xff] %v196
    %308 = vst [vmem:[#allocation2 + $0x8] sm:$0xff] %v198
    %309 = vst [vmem:[#allocation2 + $0x10] sm:$0xff] %v269
    %310 = vst [vmem:[#allocation2 + $0x18] sm:$0xff] %v271
    %311 = vst [vmem:[#allocation2 + $0x20] sm:$0xff] %v200
    %312 = vst [vmem:[#allocation2 + $0x28] sm:$0xff] %v202
    %313 = vst [vmem:[#allocation2 + $0x30] sm:$0xff] %v273
    %314 = vst [vmem:[#allocation2 + $0x38] sm:$0xff] %v275
    %315 = vst [vmem:[#allocation2 + $0x40] sm:$0xff] %v206
    %316 = vst [vmem:[#allocation2 + $0x48] sm:$0xff] %v208
    %317 = vst [vmem:[#allocation2 + $0x50] sm:$0xff] %v279
    %318 = vst [vmem:[#allocation2 + $0x58] sm:$0xff] %v281
    %319 = vst [vmem:[#allocation2 + $0x60] sm:$0xff] %v210
    %320 = vst [vmem:[#allocation2 + $0x68] sm:$0xff] %v212
    %321 = vst [vmem:[#allocation2 + $0x70] sm:$0xff] %v283
    %322 = vst [vmem:[#allocation2 + $0x78] sm:$0xff] %v285
    %323 = vst [vmem:[#allocation2 + $0x80] sm:$0xff] %v216
    %324 = vst [vmem:[#allocation2 + $0x88] sm:$0xff] %v218
    %325 = vst [vmem:[#allocation2 + $0x90] sm:$0xff] %v289
    %326 = vst [vmem:[#allocation2 + $0x98] sm:$0xff] %v291
    %327 = vst [vmem:[#allocation2 + $0xa0] sm:$0xff] %v220
    %328 = vst [vmem:[#allocation2 + $0xa8] sm:$0xff] %v222
    %329 = vst [vmem:[#allocation2 + $0xb0] sm:$0xff] %v293
    %330 = vst [vmem:[#allocation2 + $0xb8] sm:$0xff] %v295
    %331 = vst [vmem:[#allocation2 + $0xc0] sm:$0xff] %v226
    %332 = vst [vmem:[#allocation2 + $0xc8] sm:$0xff] %v228
    %333 = vst [vmem:[#allocation2 + $0xd0] sm:$0xff] %v299
    %334 = vst [vmem:[#allocation2 + $0xd8] sm:$0xff] %v301
    %335 = vst [vmem:[#allocation2 + $0xe0] sm:$0xff] %v230
    %336 = vst [vmem:[#allocation2 + $0xe8] sm:$0xff] %v232
    %337 = vst [vmem:[#allocation2 + $0xf0] sm:$0xff] %v303
    %338 = vst [vmem:[#allocation2 + $0xf8] sm:$0xff] %v305
    %s339 = smul.u32 0, 4
    %s340 = smul.addr %s339, 8
    %s341 = scalar_lea.vmem [#allocation2], %s340
    %v342 = vld [vmem:[%s341] sm:$0xff]
    %v343 = vld [vmem:[%s341 + $0x8] sm:$0xff]
    %v344 = vld [vmem:[%s341 + $0x10] sm:$0xff]
    %v345 = vld [vmem:[%s341 + $0x18] sm:$0xff]
    %v346 = vld [vmem:[#allocation4] sm:$0xff]
    %v347 = vld [vmem:[#allocation4 + $0x8] sm:$0xff]
    %v348 = vld [vmem:[#allocation4 + $0x10] sm:$0xff]
    %v349 = vld [vmem:[#allocation4 + $0x18] sm:$0xff]
    %v350 = vld [vmem:[#allocation4 + $0x20] sm:$0xff]
    %v351 = vld [vmem:[#allocation4 + $0x28] sm:$0xff]
    %v352 = vld [vmem:[#allocation4 + $0x30] sm:$0xff]
    %v353 = vld [vmem:[#allocation4 + $0x38] sm:$0xff]
    %v354 = vld [vmem:[#allocation4 + $0x40] sm:$0xff]
    %v355 = vld [vmem:[#allocation4 + $0x48] sm:$0xff]
    %v356 = vld [vmem:[#allocation4 + $0x50] sm:$0xff]
    %v357 = vld [vmem:[#allocation4 + $0x58] sm:$0xff]
    %v358 = vld [vmem:[#allocation4 + $0x60] sm:$0xff]
    %v359 = vld [vmem:[#allocation4 + $0x68] sm:$0xff]
    %v360 = vld [vmem:[#allocation4 + $0x70] sm:$0xff]
    %v361 = vld [vmem:[#allocation4 + $0x78] sm:$0xff]
    %v362 = vld [vmem:[#allocation4 + $0x80] sm:$0xff]
    %v363 = vld [vmem:[#allocation4 + $0x88] sm:$0xff]
    %v364 = vld [vmem:[#allocation4 + $0x90] sm:$0xff]
    %v365 = vld [vmem:[#allocation4 + $0x98] sm:$0xff]
    %v366 = vld [vmem:[#allocation4 + $0xa0] sm:$0xff]
    %v367 = vld [vmem:[#allocation4 + $0xa8] sm:$0xff]
    %v368 = vld [vmem:[#allocation4 + $0xb0] sm:$0xff]
    %v369 = vld [vmem:[#allocation4 + $0xb8] sm:$0xff]
    %v370 = vld [vmem:[#allocation4 + $0xc0] sm:$0xff]
    %v371 = vld [vmem:[#allocation4 + $0xc8] sm:$0xff]
    %v372 = vld [vmem:[#allocation4 + $0xd0] sm:$0xff]
    %v373 = vld [vmem:[#allocation4 + $0xd8] sm:$0xff]
    %v374 = vld [vmem:[#allocation4 + $0xe0] sm:$0xff]
    %v375 = vld [vmem:[#allocation4 + $0xe8] sm:$0xff]
    %v376 = vld [vmem:[#allocation4 + $0xf0] sm:$0xff]
    %v377 = vld [vmem:[#allocation4 + $0xf8] sm:$0xff]
    %v410 = vunpack.c.l.b16 %v346
    %v411 = vunpack.c.h.b16 %v346
    %v412 = vunpack.c.l.b16 %v347
    %v413 = vunpack.c.h.b16 %v347
    %v414 = vunpack.c.l.b16 %v348
    %v415 = vunpack.c.h.b16 %v348
    %v416 = vunpack.c.l.b16 %v349
    %v417 = vunpack.c.h.b16 %v349
    %v418 = vunpack.c.l.b16 %v350
    %v419 = vunpack.c.h.b16 %v350
    %v420 = vunpack.c.l.b16 %v351
    %v421 = vunpack.c.h.b16 %v351
    %v422 = vunpack.c.l.b16 %v352
    %v423 = vunpack.c.h.b16 %v352
    %v424 = vunpack.c.l.b16 %v353
    %v425 = vunpack.c.h.b16 %v353
    %v426 = vunpack.c.l.b16 %v354
    %v427 = vunpack.c.h.b16 %v354
    %v428 = vunpack.c.l.b16 %v355
    %v429 = vunpack.c.h.b16 %v355
    %v430 = vunpack.c.l.b16 %v356
    %v431 = vunpack.c.h.b16 %v356
    %v432 = vunpack.c.l.b16 %v357
    %v433 = vunpack.c.h.b16 %v357
    %v434 = vunpack.c.l.b16 %v358
    %v435 = vunpack.c.h.b16 %v358
    %v436 = vunpack.c.l.b16 %v359
    %v437 = vunpack.c.h.b16 %v359
    %v438 = vunpack.c.l.b16 %v360
    %v439 = vunpack.c.h.b16 %v360
    %v440 = vunpack.c.l.b16 %v361
    %v441 = vunpack.c.h.b16 %v361
    %v442 = vunpack.c.l.b16 %v362
    %v443 = vunpack.c.h.b16 %v362
    %v444 = vunpack.c.l.b16 %v363
    %v445 = vunpack.c.h.b16 %v363
    %v446 = vunpack.c.l.b16 %v364
    %v447 = vunpack.c.h.b16 %v364
    %v448 = vunpack.c.l.b16 %v365
    %v449 = vunpack.c.h.b16 %v365
    %v450 = vunpack.c.l.b16 %v366
    %v451 = vunpack.c.h.b16 %v366
    %v452 = vunpack.c.l.b16 %v367
    %v453 = vunpack.c.h.b16 %v367
    %v454 = vunpack.c.l.b16 %v368
    %v455 = vunpack.c.h.b16 %v368
    %v456 = vunpack.c.l.b16 %v369
    %v457 = vunpack.c.h.b16 %v369
    %v458 = vunpack.c.l.b16 %v370
    %v459 = vunpack.c.h.b16 %v370
    %v460 = vunpack.c.l.b16 %v371
    %v461 = vunpack.c.h.b16 %v371
    %v462 = vunpack.c.l.b16 %v372
    %v463 = vunpack.c.h.b16 %v372
    %v464 = vunpack.c.l.b16 %v373
    %v465 = vunpack.c.h.b16 %v373
    %v466 = vunpack.c.l.b16 %v374
    %v467 = vunpack.c.h.b16 %v374
    %v468 = vunpack.c.l.b16 %v375
    %v469 = vunpack.c.h.b16 %v375
    %v470 = vunpack.c.l.b16 %v376
    %v471 = vunpack.c.h.b16 %v376
    %v472 = vunpack.c.l.b16 %v377
    %v473 = vunpack.c.h.b16 %v377
    %v474 = vpack.c.b16 %v414, %v410
    %v475 = vpack.c.b16 %v415, %v411
    %v476 = vpack.c.b16 %v416, %v412
    %v477 = vpack.c.b16 %v417, %v413
    %v478 = vpack.c.b16 %v422, %v418
    %v479 = vpack.c.b16 %v423, %v419
    %v480 = vpack.c.b16 %v424, %v420
    %v481 = vpack.c.b16 %v425, %v421
    %v482 = vpack.c.b16 %v430, %v426
    %v483 = vpack.c.b16 %v431, %v427
    %v484 = vpack.c.b16 %v432, %v428
    %v485 = vpack.c.b16 %v433, %v429
    %v486 = vpack.c.b16 %v438, %v434
    %v487 = vpack.c.b16 %v439, %v435
    %v488 = vpack.c.b16 %v440, %v436
    %v489 = vpack.c.b16 %v441, %v437
    %v490 = vpack.c.b16 %v446, %v442
    %v491 = vpack.c.b16 %v447, %v443
    %v492 = vpack.c.b16 %v448, %v444
    %v493 = vpack.c.b16 %v449, %v445
    %v494 = vpack.c.b16 %v454, %v450
    %v495 = vpack.c.b16 %v455, %v451
    %v496 = vpack.c.b16 %v456, %v452
    %v497 = vpack.c.b16 %v457, %v453
    %v498 = vpack.c.b16 %v462, %v458
    %v499 = vpack.c.b16 %v463, %v459
    %v500 = vpack.c.b16 %v464, %v460
    %v501 = vpack.c.b16 %v465, %v461
    %v502 = vpack.c.b16 %v470, %v466
    %v503 = vpack.c.b16 %v471, %v467
    %v504 = vpack.c.b16 %v472, %v468
    %v505 = vpack.c.b16 %v473, %v469
    %538 = vmatprep.subr.bf16.mxu0 %v475
    %539 = vmatpush1.bf16.msra.mxu0 %v474
    %540 = vmatprep.subr.bf16.mxu0 %v479
    %541 = vmatpush1.bf16.msra.mxu0 %v478
    %542 = vmatprep.subr.bf16.mxu0 %v483
    %543 = vmatpush1.bf16.msra.mxu0 %v482
    %544 = vmatprep.subr.bf16.mxu0 %v487
    %545 = vmatpush1.bf16.msra.mxu0 %v486
    %546 = vmatprep.subr.bf16.mxu0 %v491
    %547 = vmatpush1.bf16.msra.mxu0 %v490
    %548 = vmatprep.subr.bf16.mxu0 %v495
    %549 = vmatpush1.bf16.msra.mxu0 %v494
    %550 = vmatprep.subr.bf16.mxu0 %v499
    %551 = vmatpush1.bf16.msra.mxu0 %v498
    %552 = vmatprep.subr.bf16.mxu0 %v503
    %553 = vmatpush1.bf16.msra.mxu0 %v502
    %554 = vmatprep.subr.bf16.mxu0 0
    %555 = vmatpush1.bf16.msra.mxu0 0
    %556 = vmatprep.subr.bf16.mxu0 0
    %557 = vmatpush1.bf16.msra.mxu0 0
    %558 = vmatprep.subr.bf16.mxu0 0
    %559 = vmatpush1.bf16.msra.mxu0 0
    %560 = vmatprep.subr.bf16.mxu0 0
    %561 = vmatpush1.bf16.msra.mxu0 0
    %562 = vmatprep.subr.bf16.mxu0 0
    %563 = vmatpush1.bf16.msra.mxu0 0
    %564 = vmatprep.subr.bf16.mxu0 0
    %565 = vmatpush1.bf16.msra.mxu0 0
    %566 = vmatprep.subr.bf16.mxu0 0
    %567 = vmatpush1.bf16.msra.mxu0 0
    %568 = vmatprep.subr.bf16.mxu0 0
    %569 = vmatpush1.bf16.msra.mxu0 0
    %570 = vmatprep.mubr.bf16.mxu0 0
    %571 = vmatmul.mubr.bf16.gmra.mrb[0].mxu0 0
    %v572 = vpop.f32.mrb[0].mxu0
    %v573 = vadd.f32 0.0, %v572
    %v574 = vpop.f32.mrb[0].mxu0
    %v575 = vadd.f32 0.0, %v574
    %v576 = vpop.f32.mrb[0].mxu0
    %v577 = vpop.f32.mrb[0].mxu0
    %578 = vdwg.mxu0
    %579 = vmatprep.subr.bf16.mxu0 %v477
    %580 = vmatpush1.bf16.msra.mxu0 %v476
    %581 = vmatprep.subr.bf16.mxu0 %v481
    %582 = vmatpush1.bf16.msra.mxu0 %v480
    %583 = vmatprep.subr.bf16.mxu0 %v485
    %584 = vmatpush1.bf16.msra.mxu0 %v484
    %585 = vmatprep.subr.bf16.mxu0 %v489
    %586 = vmatpush1.bf16.msra.mxu0 %v488
    %587 = vmatprep.subr.bf16.mxu0 %v493
    %588 = vmatpush1.bf16.msra.mxu0 %v492
    %589 = vmatprep.subr.bf16.mxu0 %v497
    %590 = vmatpush1.bf16.msra.mxu0 %v496
    %591 = vmatprep.subr.bf16.mxu0 %v501
    %592 = vmatpush1.bf16.msra.mxu0 %v500
    %593 = vmatprep.subr.bf16.mxu0 %v505
    %594 = vmatpush1.bf16.msra.mxu0 %v504
    %595 = vmatprep.subr.bf16.mxu0 0
    %596 = vmatpush1.bf16.msra.mxu0 0
    %597 = vmatprep.subr.bf16.mxu0 0
    %598 = vmatpush1.bf16.msra.mxu0 0
    %599 = vmatprep.subr.bf16.mxu0 0
    %600 = vmatpush1.bf16.msra.mxu0 0
    %601 = vmatprep.subr.bf16.mxu0 0
    %602 = vmatpush1.bf16.msra.mxu0 0
    %603 = vmatprep.subr.bf16.mxu0 0
    %604 = vmatpush1.bf16.msra.mxu0 0
    %605 = vmatprep.subr.bf16.mxu0 0
    %606 = vmatpush1.bf16.msra.mxu0 0
    %607 = vmatprep.subr.bf16.mxu0 0
    %608 = vmatpush1.bf16.msra.mxu0 0
    %609 = vmatprep.subr.bf16.mxu0 0
    %610 = vmatpush1.bf16.msra.mxu0 0
    %611 = vmatprep.mubr.bf16.mxu0 0
    %612 = vmatmul.mubr.bf16.gmra.mrb[0].mxu0 0
    %v613 = vpop.f32.mrb[0].mxu0
    %v614 = vadd.f32 0.0, %v613
    %v615 = vpop.f32.mrb[0].mxu0
    %v616 = vadd.f32 0.0, %v615
    %v617 = vpop.f32.mrb[0].mxu0
    %v618 = vpop.f32.mrb[0].mxu0
    %619 = vdwg.mxu0
    %v620 = vadd.f32 %v342, %v573
    %v621 = vadd.f32 %v343, %v575
    %v622 = vadd.f32 %v344, %v614
    %v623 = vadd.f32 %v345, %v616
    %v624 = vxor.u32 %v620, 2147483648
    %v625 = vxor.u32 %v621, 2147483648
    %v626 = vxor.u32 %v622, 2147483648
    %v627 = vmul.f32 %v624, 1.442695
    %v628 = vpow.pop %v627
    %v629 = vmul.f32 %v625, 1.442695
    %v630 = vpow.pop %v629
    %v631 = vmul.f32 %v626, 1.442695
    %v632 = vpow.pop %v631
    %v633 = vadd.f32 %v628, 1.0
    %v634 = vadd.f32 %v630, 1.0
    %v635 = vadd.f32 %v632, 1.0
    %v636 = vrcp.pop %v633
    %v637 = vmul.f32 1.0, %v636
    %v638 = vrcp.pop %v634
    %v639 = vmul.f32 1.0, %v638
    %v640 = vrcp.pop %v635
    %v641 = vmul.f32 1.0, %v640
    %v642 = vtanh.pop %v623
    %v643 = vmul.f32 %v639, 0.0
    %v644 = vmul.f32 %v637, %v642
    %v645 = vadd.f32 %v643, %v644
    %v646 = vtanh.pop %v645
    %v647 = vmul.f32 %v641, %v646
    %648 = vst [vmem:[#allocation3] sm:$0xff] %v647
    %s649 = smul.u32 1, 4
    %s650 = smul.addr %s649, 8
    %s651 = scalar_lea.vmem [#allocation2], %s650
    %v652 = vld [vmem:[%s651] sm:$0xff]
    %v653 = vld [vmem:[%s651 + $0x8] sm:$0xff]
    %v654 = vld [vmem:[%s651 + $0x10] sm:$0xff]
    %v655 = vld [vmem:[%s651 + $0x18] sm:$0xff]
    %v656 = vpack.c.bf16 %v647, %v647
    %v657 = vld [vmem:[#allocation4] sm:$0xff]
    %v658 = vld [vmem:[#allocation4 + $0x8] sm:$0xff]
    %v659 = vld [vmem:[#allocation4 + $0x10] sm:$0xff]
    %v660 = vld [vmem:[#allocation4 + $0x18] sm:$0xff]
    %v661 = vld [vmem:[#allocation4 + $0x20] sm:$0xff]
    %v662 = vld [vmem:[#allocation4 + $0x28] sm:$0xff]
    %v663 = vld [vmem:[#allocation4 + $0x30] sm:$0xff]
    %v664 = vld [vmem:[#allocation4 + $0x38] sm:$0xff]
    %v665 = vld [vmem:[#allocation4 + $0x40] sm:$0xff]
    %v666 = vld [vmem:[#allocation4 + $0x48] sm:$0xff]
    %v667 = vld [vmem:[#allocation4 + $0x50] sm:$0xff]
    %v668 = vld [vmem:[#allocation4 + $0x58] sm:$0xff]
    %v669 = vld [vmem:[#allocation4 + $0x60] sm:$0xff]
    %v670 = vld [vmem:[#allocation4 + $0x68] sm:$0xff]
    %v671 = vld [vmem:[#allocation4 + $0x70] sm:$0xff]
    %v672 = vld [vmem:[#allocation4 + $0x78] sm:$0xff]
    %v673 = vld [vmem:[#allocation4 + $0x80] sm:$0xff]
    %v674 = vld [vmem:[#allocation4 + $0x88] sm:$0xff]
    %v675 = vld [vmem:[#allocation4 + $0x90] sm:$0xff]
    %v676 = vld [vmem:[#allocation4 + $0x98] sm:$0xff]
    %v677 = vld [vmem:[#allocation4 + $0xa0] sm:$0xff]
    %v678 = vld [vmem:[#allocation4 + $0xa8] sm:$0xff]
    %v679 = vld [vmem:[#allocation4 + $0xb0] sm:$0xff]
    %v680 = vld [vmem:[#allocation4 + $0xb8] sm:$0xff]
    %v681 = vld [vmem:[#allocation4 + $0xc0] sm:$0xff]
    %v682 = vld [vmem:[#allocation4 + $0xc8] sm:$0xff]
    %v683 = vld [vmem:[#allocation4 + $0xd0] sm:$0xff]
    %v684 = vld [vmem:[#allocation4 + $0xd8] sm:$0xff]
    %v685 = vld [vmem:[#allocation4 + $0xe0] sm:$0xff]
    %v686 = vld [vmem:[#allocation4 + $0xe8] sm:$0xff]
    %v687 = vld [vmem:[#allocation4 + $0xf0] sm:$0xff]
    %v688 = vld [vmem:[#allocation4 + $0xf8] sm:$0xff]
    %v721 = vunpack.c.l.b16 %v657
    %v722 = vunpack.c.h.b16 %v657
    %v723 = vunpack.c.l.b16 %v658
    %v724 = vunpack.c.h.b16 %v658
    %v725 = vunpack.c.l.b16 %v659
    %v726 = vunpack.c.h.b16 %v659
    %v727 = vunpack.c.l.b16 %v660
    %v728 = vunpack.c.h.b16 %v660
    %v729 = vunpack.c.l.b16 %v661
    %v730 = vunpack.c.h.b16 %v661
    %v731 = vunpack.c.l.b16 %v662
    %v732 = vunpack.c.h.b16 %v662
    %v733 = vunpack.c.l.b16 %v663
    %v734 = vunpack.c.h.b16 %v663
    %v735 = vunpack.c.l.b16 %v664
    %v736 = vunpack.c.h.b16 %v664
    %v737 = vunpack.c.l.b16 %v665
    %v738 = vunpack.c.h.b16 %v665
    %v739 = vunpack.c.l.b16 %v666
    %v740 = vunpack.c.h.b16 %v666
    %v741 = vunpack.c.l.b16 %v667
    %v742 = vunpack.c.h.b16 %v667
    %v743 = vunpack.c.l.b16 %v668
    %v744 = vunpack.c.h.b16 %v668
    %v745 = vunpack.c.l.b16 %v669
    %v746 = vunpack.c.h.b16 %v669
    %v747 = vunpack.c.l.b16 %v670
    %v748 = vunpack.c.h.b16 %v670
    %v749 = vunpack.c.l.b16 %v671
    %v750 = vunpack.c.h.b16 %v671
    %v751 = vunpack.c.l.b16 %v672
    %v752 = vunpack.c.h.b16 %v672
    %v753 = vunpack.c.l.b16 %v673
    %v754 = vunpack.c.h.b16 %v673
    %v755 = vunpack.c.l.b16 %v674
    %v756 = vunpack.c.h.b16 %v674
    %v757 = vunpack.c.l.b16 %v675
    %v758 = vunpack.c.h.b16 %v675
    %v759 = vunpack.c.l.b16 %v676
    %v760 = vunpack.c.h.b16 %v676
    %v761 = vunpack.c.l.b16 %v677
    %v762 = vunpack.c.h.b16 %v677
    %v763 = vunpack.c.l.b16 %v678
    %v764 = vunpack.c.h.b16 %v678
    %v765 = vunpack.c.l.b16 %v679
    %v766 = vunpack.c.h.b16 %v679
    %v767 = vunpack.c.l.b16 %v680
    %v768 = vunpack.c.h.b16 %v680
    %v769 = vunpack.c.l.b16 %v681
    %v770 = vunpack.c.h.b16 %v681
    %v771 = vunpack.c.l.b16 %v682
    %v772 = vunpack.c.h.b16 %v682
    %v773 = vunpack.c.l.b16 %v683
    %v774 = vunpack.c.h.b16 %v683
    %v775 = vunpack.c.l.b16 %v684
    %v776 = vunpack.c.h.b16 %v684
    %v777 = vunpack.c.l.b16 %v685
    %v778 = vunpack.c.h.b16 %v685
    %v779 = vunpack.c.l.b16 %v686
    %v780 = vunpack.c.h.b16 %v686
    %v781 = vunpack.c.l.b16 %v687
    %v782 = vunpack.c.h.b16 %v687
    %v783 = vunpack.c.l.b16 %v688
    %v784 = vunpack.c.h.b16 %v688
    %v785 = vpack.c.b16 %v725, %v721
    %v786 = vpack.c.b16 %v726, %v722
    %v787 = vpack.c.b16 %v727, %v723
    %v788 = vpack.c.b16 %v728, %v724
    %v789 = vpack.c.b16 %v733, %v729
    %v790 = vpack.c.b16 %v734, %v730
    %v791 = vpack.c.b16 %v735, %v731
    %v792 = vpack.c.b16 %v736, %v732
    %v793 = vpack.c.b16 %v741, %v737
    %v794 = vpack.c.b16 %v742, %v738
    %v795 = vpack.c.b16 %v743, %v739
    %v796 = vpack.c.b16 %v744, %v740
    %v797 = vpack.c.b16 %v749, %v745
    %v798 = vpack.c.b16 %v750, %v746
    %v799 = vpack.c.b16 %v751, %v747
    %v800 = vpack.c.b16 %v752, %v748
    %v801 = vpack.c.b16 %v757, %v753
    %v802 = vpack.c.b16 %v758, %v754
    %v803 = vpack.c.b16 %v759, %v755
    %v804 = vpack.c.b16 %v760, %v756
    %v805 = vpack.c.b16 %v765, %v761
    %v806 = vpack.c.b16 %v766, %v762
    %v807 = vpack.c.b16 %v767, %v763
    %v808 = vpack.c.b16 %v768, %v764
    %v809 = vpack.c.b16 %v773, %v769
    %v810 = vpack.c.b16 %v774, %v770
    %v811 = vpack.c.b16 %v775, %v771
    %v812 = vpack.c.b16 %v776, %v772
    %v813 = vpack.c.b16 %v781, %v777
    %v814 = vpack.c.b16 %v782, %v778
    %v815 = vpack.c.b16 %v783, %v779
    %v816 = vpack.c.b16 %v784, %v780
    %849 = vmatprep.subr.bf16.mxu0 %v786
    %850 = vmatpush1.bf16.msra.mxu0 %v785
    %851 = vmatprep.subr.bf16.mxu0 %v790
    %852 = vmatpush1.bf16.msra.mxu0 %v789
    %853 = vmatprep.subr.bf16.mxu0 %v794
    %854 = vmatpush1.bf16.msra.mxu0 %v793
    %855 = vmatprep.subr.bf16.mxu0 %v798
    %856 = vmatpush1.bf16.msra.mxu0 %v797
    %857 = vmatprep.subr.bf16.mxu0 %v802
    %858 = vmatpush1.bf16.msra.mxu0 %v801
    %859 = vmatprep.subr.bf16.mxu0 %v806
    %860 = vmatpush1.bf16.msra.mxu0 %v805
    %861 = vmatprep.subr.bf16.mxu0 %v810
    %862 = vmatpush1.bf16.msra.mxu0 %v809
    %863 = vmatprep.subr.bf16.mxu0 %v814
    %864 = vmatpush1.bf16.msra.mxu0 %v813
    %865 = vmatprep.subr.bf16.mxu0 0
    %866 = vmatpush1.bf16.msra.mxu0 0
    %867 = vmatprep.subr.bf16.mxu0 0
    %868 = vmatpush1.bf16.msra.mxu0 0
    %869 = vmatprep.subr.bf16.mxu0 0
    %870 = vmatpush1.bf16.msra.mxu0 0
    %871 = vmatprep.subr.bf16.mxu0 0
    %872 = vmatpush1.bf16.msra.mxu0 0
    %873 = vmatprep.subr.bf16.mxu0 0
    %874 = vmatpush1.bf16.msra.mxu0 0
    %875 = vmatprep.subr.bf16.mxu0 0
    %876 = vmatpush1.bf16.msra.mxu0 0
    %877 = vmatprep.subr.bf16.mxu0 0
    %878 = vmatpush1.bf16.msra.mxu0 0
    %879 = vmatprep.subr.bf16.mxu0 0
    %880 = vmatpush1.bf16.msra.mxu0 0
    %881 = vmatprep.mubr.bf16.mxu0 0
    %882 = vmatmul.mubr.bf16.gmra.mrb[0].mxu0 %v656
    %v883 = vpop.f32.mrb[0].mxu0
    %v884 = vadd.f32 0.0, %v883
    %v885 = vpop.f32.mrb[0].mxu0
    %v886 = vadd.f32 0.0, %v885
    %v887 = vpop.f32.mrb[0].mxu0
    %v888 = vpop.f32.mrb[0].mxu0
    %889 = vdwg.mxu0
    %890 = vmatprep.subr.bf16.mxu0 %v788
    %891 = vmatpush1.bf16.msra.mxu0 %v787
    %892 = vmatprep.subr.bf16.mxu0 %v792
    %893 = vmatpush1.bf16.msra.mxu0 %v791
    %894 = vmatprep.subr.bf16.mxu0 %v796
    %895 = vmatpush1.bf16.msra.mxu0 %v795
    %896 = vmatprep.subr.bf16.mxu0 %v800
    %897 = vmatpush1.bf16.msra.mxu0 %v799
    %898 = vmatprep.subr.bf16.mxu0 %v804
    %899 = vmatpush1.bf16.msra.mxu0 %v803
    %900 = vmatprep.subr.bf16.mxu0 %v808
    %901 = vmatpush1.bf16.msra.mxu0 %v807
    %902 = vmatprep.subr.bf16.mxu0 %v812
    %903 = vmatpush1.bf16.msra.mxu0 %v811
    %904 = vmatprep.subr.bf16.mxu0 %v816
    %905 = vmatpush1.bf16.msra.mxu0 %v815
    %906 = vmatprep.subr.bf16.mxu0 0
    %907 = vmatpush1.bf16.msra.mxu0 0
    %908 = vmatprep.subr.bf16.mxu0 0
    %909 = vmatpush1.bf16.msra.mxu0 0
    %910 = vmatprep.subr.bf16.mxu0 0
    %911 = vmatpush1.bf16.msra.mxu0 0
    %912 = vmatprep.subr.bf16.mxu0 0
    %913 = vmatpush1.bf16.msra.mxu0 0
    %914 = vmatprep.subr.bf16.mxu0 0
    %915 = vmatpush1.bf16.msra.mxu0 0
    %916 = vmatprep.subr.bf16.mxu0 0
    %917 = vmatpush1.bf16.msra.mxu0 0
    %918 = vmatprep.subr.bf16.mxu0 0
    %919 = vmatpush1.bf16.msra.mxu0 0
    %920 = vmatprep.subr.bf16.mxu0 0
    %921 = vmatpush1.bf16.msra.mxu0 0
    %922 = vmatprep.mubr.bf16.mxu0 0
    %923 = vmatmul.mubr.bf16.gmra.mrb[0].mxu0 %v656
    %v924 = vpop.f32.mrb[0].mxu0
    %v925 = vadd.f32 0.0, %v924
    %v926 = vpop.f32.mrb[0].mxu0
    %v927 = vadd.f32 0.0, %v926
    %v928 = vpop.f32.mrb[0].mxu0
    %v929 = vpop.f32.mrb[0].mxu0
    %930 = vdwg.mxu0
    %v931 = vadd.f32 %v652, %v884
    %v932 = vadd.f32 %v653, %v886
    %v933 = vadd.f32 %v654, %v925
    %v934 = vadd.f32 %v655, %v927
    %v935 = vxor.u32 %v931, 2147483648
    %v936 = vxor.u32 %v932, 2147483648
    %v937 = vxor.u32 %v933, 2147483648
    %v938 = vmul.f32 %v935, 1.442695
    %v939 = vpow.pop %v938
    %v940 = vmul.f32 %v936, 1.442695
    %v941 = vpow.pop %v940
    %v942 = vmul.f32 %v937, 1.442695
    %v943 = vpow.pop %v942
    %v944 = vadd.f32 %v939, 1.0
    %v945 = vadd.f32 %v941, 1.0
    %v946 = vadd.f32 %v943, 1.0
    %v947 = vrcp.pop %v944
    %v948 = vmul.f32 1.0, %v947
    %v949 = vrcp.pop %v945
    %v950 = vmul.f32 1.0, %v949
    %v951 = vrcp.pop %v946
    %v952 = vmul.f32 1.0, %v951
    %v953 = vtanh.pop %v934
    %v954 = vmul.f32 %v950, %v645
    %v955 = vmul.f32 %v948, %v953
    %v956 = vadd.f32 %v954, %v955
    %v957 = vtanh.pop %v956
    %v958 = vmul.f32 %v952, %v957
    %s959 = scalar_lea.vmem [#allocation3], 8
    %960 = vst [vmem:[%s959] sm:$0xff] %v958
    %s961 = smul.u32 2, 4
    %s962 = smul.addr %s961, 8
    %s963 = scalar_lea.vmem [#allocation2], %s962
    %v964 = vld [vmem:[%s963] sm:$0xff]
    %v965 = vld [vmem:[%s963 + $0x8] sm:$0xff]
    %v966 = vld [vmem:[%s963 + $0x10] sm:$0xff]
    %v967 = vld [vmem:[%s963 + $0x18] sm:$0xff]
    %v968 = vpack.c.bf16 %v958, %v958
    %v969 = vld [vmem:[#allocation4] sm:$0xff]
    %v970 = vld [vmem:[#allocation4 + $0x8] sm:$0xff]
    %v971 = vld [vmem:[#allocation4 + $0x10] sm:$0xff]
    %v972 = vld [vmem:[#allocation4 + $0x18] sm:$0xff]
    %v973 = vld [vmem:[#allocation4 + $0x20] sm:$0xff]
    %v974 = vld [vmem:[#allocation4 + $0x28] sm:$0xff]
    %v975 = vld [vmem:[#allocation4 + $0x30] sm:$0xff]
    %v976 = vld [vmem:[#allocation4 + $0x38] sm:$0xff]
    %v977 = vld [vmem:[#allocation4 + $0x40] sm:$0xff]
    %v978 = vld [vmem:[#allocation4 + $0x48] sm:$0xff]
    %v979 = vld [vmem:[#allocation4 + $0x50] sm:$0xff]
    %v980 = vld [vmem:[#allocation4 + $0x58] sm:$0xff]
    %v981 = vld [vmem:[#allocation4 + $0x60] sm:$0xff]
    %v982 = vld [vmem:[#allocation4 + $0x68] sm:$0xff]
    %v983 = vld [vmem:[#allocation4 + $0x70] sm:$0xff]
    %v984 = vld [vmem:[#allocation4 + $0x78] sm:$0xff]
    %v985 = vld [vmem:[#allocation4 + $0x80] sm:$0xff]
    %v986 = vld [vmem:[#allocation4 + $0x88] sm:$0xff]
    %v987 = vld [vmem:[#allocation4 + $0x90] sm:$0xff]
    %v988 = vld [vmem:[#allocation4 + $0x98] sm:$0xff]
    %v989 = vld [vmem:[#allocation4 + $0xa0] sm:$0xff]
    %v990 = vld [vmem:[#allocation4 + $0xa8] sm:$0xff]
    %v991 = vld [vmem:[#allocation4 + $0xb0] sm:$0xff]
    %v992 = vld [vmem:[#allocation4 + $0xb8] sm:$0xff]
    %v993 = vld [vmem:[#allocation4 + $0xc0] sm:$0xff]
    %v994 = vld [vmem:[#allocation4 + $0xc8] sm:$0xff]
    %v995 = vld [vmem:[#allocation4 + $0xd0] sm:$0xff]
    %v996 = vld [vmem:[#allocation4 + $0xd8] sm:$0xff]
    %v997 = vld [vmem:[#allocation4 + $0xe0] sm:$0xff]
    %v998 = vld [vmem:[#allocation4 + $0xe8] sm:$0xff]
    %v999 = vld [vmem:[#allocation4 + $0xf0] sm:$0xff]
    %v1000 = vld [vmem:[#allocation4 + $0xf8] sm:$0xff]
    %v1033 = vunpack.c.l.b16 %v969
    %v1034 = vunpack.c.h.b16 %v969
    %v1035 = vunpack.c.l.b16 %v970
    %v1036 = vunpack.c.h.b16 %v970
    %v1037 = vunpack.c.l.b16 %v971
    %v1038 = vunpack.c.h.b16 %v971
    %v1039 = vunpack.c.l.b16 %v972
    %v1040 = vunpack.c.h.b16 %v972
    %v1041 = vunpack.c.l.b16 %v973
    %v1042 = vunpack.c.h.b16 %v973
    %v1043 = vunpack.c.l.b16 %v974
    %v1044 = vunpack.c.h.b16 %v974
    %v1045 = vunpack.c.l.b16 %v975
    %v1046 = vunpack.c.h.b16 %v975
    %v1047 = vunpack.c.l.b16 %v976
    %v1048 = vunpack.c.h.b16 %v976
    %v1049 = vunpack.c.l.b16 %v977
    %v1050 = vunpack.c.h.b16 %v977
    %v1051 = vunpack.c.l.b16 %v978
    %v1052 = vunpack.c.h.b16 %v978
    %v1053 = vunpack.c.l.b16 %v979
    %v1054 = vunpack.c.h.b16 %v979
    %v1055 = vunpack.c.l.b16 %v980
    %v1056 = vunpack.c.h.b16 %v980
    %v1057 = vunpack.c.l.b16 %v981
    %v1058 = vunpack.c.h.b16 %v981
    %v1059 = vunpack.c.l.b16 %v982
    %v1060 = vunpack.c.h.b16 %v982
    %v1061 = vunpack.c.l.b16 %v983
    %v1062 = vunpack.c.h.b16 %v983
    %v1063 = vunpack.c.l.b16 %v984
    %v1064 = vunpack.c.h.b16 %v984
    %v1065 = vunpack.c.l.b16 %v985
    %v1066 = vunpack.c.h.b16 %v985
    %v1067 = vunpack.c.l.b16 %v986
    %v1068 = vunpack.c.h.b16 %v986
    %v1069 = vunpack.c.l.b16 %v987
    %v1070 = vunpack.c.h.b16 %v987
    %v1071 = vunpack.c.l.b16 %v988
    %v1072 = vunpack.c.h.b16 %v988
    %v1073 = vunpack.c.l.b16 %v989
    %v1074 = vunpack.c.h.b16 %v989
    %v1075 = vunpack.c.l.b16 %v990
    %v1076 = vunpack.c.h.b16 %v990
    %v1077 = vunpack.c.l.b16 %v991
    %v1078 = vunpack.c.h.b16 %v991
    %v1079 = vunpack.c.l.b16 %v992
    %v1080 = vunpack.c.h.b16 %v992
    %v1081 = vunpack.c.l.b16 %v993
    %v1082 = vunpack.c.h.b16 %v993
    %v1083 = vunpack.c.l.b16 %v994
    %v1084 = vunpack.c.h.b16 %v994
    %v1085 = vunpack.c.l.b16 %v995
    %v1086 = vunpack.c.h.b16 %v995
    %v1087 = vunpack.c.l.b16 %v996
    %v1088 = vunpack.c.h.b16 %v996
    %v1089 = vunpack.c.l.b16 %v997
    %v1090 = vunpack.c.h.b16 %v997
    %v1091 = vunpack.c.l.b16 %v998
    %v1092 = vunpack.c.h.b16 %v998
    %v1093 = vunpack.c.l.b16 %v999
    %v1094 = vunpack.c.h.b16 %v999
    %v1095 = vunpack.c.l.b16 %v1000
    %v1096 = vunpack.c.h.b16 %v1000
    %v1097 = vpack.c.b16 %v1037, %v1033
    %v1098 = vpack.c.b16 %v1038, %v1034
    %v1099 = vpack.c.b16 %v1039, %v1035
    %v1100 = vpack.c.b16 %v1040, %v1036
    %v1101 = vpack.c.b16 %v1045, %v1041
    %v1102 = vpack.c.b16 %v1046, %v1042
    %v1103 = vpack.c.b16 %v1047, %v1043
    %v1104 = vpack.c.b16 %v1048, %v1044
    %v1105 = vpack.c.b16 %v1053, %v1049
    %v1106 = vpack.c.b16 %v1054, %v1050
    %v1107 = vpack.c.b16 %v1055, %v1051
    %v1108 = vpack.c.b16 %v1056, %v1052
    %v1109 = vpack.c.b16 %v1061, %v1057
    %v1110 = vpack.c.b16 %v1062, %v1058
    %v1111 = vpack.c.b16 %v1063, %v1059
    %v1112 = vpack.c.b16 %v1064, %v1060
    %v1113 = vpack.c.b16 %v1069, %v1065
    %v1114 = vpack.c.b16 %v1070, %v1066
    %v1115 = vpack.c.b16 %v1071, %v1067
    %v1116 = vpack.c.b16 %v1072, %v1068
    %v1117 = vpack.c.b16 %v1077, %v1073
    %v1118 = vpack.c.b16 %v1078, %v1074
    %v1119 = vpack.c.b16 %v1079, %v1075
    %v1120 = vpack.c.b16 %v1080, %v1076
    %v1121 = vpack.c.b16 %v1085, %v1081
    %v1122 = vpack.c.b16 %v1086, %v1082
    %v1123 = vpack.c.b16 %v1087, %v1083
    %v1124 = vpack.c.b16 %v1088, %v1084
    %v1125 = vpack.c.b16 %v1093, %v1089
    %v1126 = vpack.c.b16 %v1094, %v1090
    %v1127 = vpack.c.b16 %v1095, %v1091
    %v1128 = vpack.c.b16 %v1096, %v1092
    %1161 = vmatprep.subr.bf16.mxu0 %v1098
    %1162 = vmatpush1.bf16.msra.mxu0 %v1097
    %1163 = vmatprep.subr.bf16.mxu0 %v1102
    %1164 = vmatpush1.bf16.msra.mxu0 %v1101
    %1165 = vmatprep.subr.bf16.mxu0 %v1106
    %1166 = vmatpush1.bf16.msra.mxu0 %v1105
    %1167 = vmatprep.subr.bf16.mxu0 %v1110
    %1168 = vmatpush1.bf16.msra.mxu0 %v1109
    %1169 = vmatprep.subr.bf16.mxu0 %v1114
    %1170 = vmatpush1.bf16.msra.mxu0 %v1113
    %1171 = vmatprep.subr.bf16.mxu0 %v1118
    %1172 = vmatpush1.bf16.msra.mxu0 %v1117
    %1173 = vmatprep.subr.bf16.mxu0 %v1122
    %1174 = vmatpush1.bf16.msra.mxu0 %v1121
    %1175 = vmatprep.subr.bf16.mxu0 %v1126
    %1176 = vmatpush1.bf16.msra.mxu0 %v1125
    %1177 = vmatprep.subr.bf16.mxu0 0
    %1178 = vmatpush1.bf16.msra.mxu0 0
    %1179 = vmatprep.subr.bf16.mxu0 0
    %1180 = vmatpush1.bf16.msra.mxu0 0
    %1181 = vmatprep.subr.bf16.mxu0 0
    %1182 = vmatpush1.bf16.msra.mxu0 0
    %1183 = vmatprep.subr.bf16.mxu0 0
    %1184 = vmatpush1.bf16.msra.mxu0 0
    %1185 = vmatprep.subr.bf16.mxu0 0
    %1186 = vmatpush1.bf16.msra.mxu0 0
    %1187 = vmatprep.subr.bf16.mxu0 0
    %1188 = vmatpush1.bf16.msra.mxu0 0
    %1189 = vmatprep.subr.bf16.mxu0 0
    %1190 = vmatpush1.bf16.msra.mxu0 0
    %1191 = vmatprep.subr.bf16.mxu0 0
    %1192 = vmatpush1.bf16.msra.mxu0 0
    %1193 = vmatprep.mubr.bf16.mxu0 0
    %1194 = vmatmul.mubr.bf16.gmra.mrb[0].mxu0 %v968
    %v1195 = vpop.f32.mrb[0].mxu0
    %v1196 = vadd.f32 0.0, %v1195
    %v1197 = vpop.f32.mrb[0].mxu0
    %v1198 = vadd.f32 0.0, %v1197
    %v1199 = vpop.f32.mrb[0].mxu0
    %v1200 = vpop.f32.mrb[0].mxu0
    %1201 = vdwg.mxu0
    %1202 = vmatprep.subr.bf16.mxu0 %v1100
    %1203 = vmatpush1.bf16.msra.mxu0 %v1099
    %1204 = vmatprep.subr.bf16.mxu0 %v1104
    %1205 = vmatpush1.bf16.msra.mxu0 %v1103
    %1206 = vmatprep.subr.bf16.mxu0 %v1108
    %1207 = vmatpush1.bf16.msra.mxu0 %v1107
    %1208 = vmatprep.subr.bf16.mxu0 %v1112
    %1209 = vmatpush1.bf16.msra.mxu0 %v1111
    %1210 = vmatprep.subr.bf16.mxu0 %v1116
    %1211 = vmatpush1.bf16.msra.mxu0 %v1115
    %1212 = vmatprep.subr.bf16.mxu0 %v1120
    %1213 = vmatpush1.bf16.msra.mxu0 %v1119
    %1214 = vmatprep.subr.bf16.mxu0 %v1124
    %1215 = vmatpush1.bf16.msra.mxu0 %v1123
    %1216 = vmatprep.subr.bf16.mxu0 %v1128
    %1217 = vmatpush1.bf16.msra.mxu0 %v1127
    %1218 = vmatprep.subr.bf16.mxu0 0
    %1219 = vmatpush1.bf16.msra.mxu0 0
    %1220 = vmatprep.subr.bf16.mxu0 0
    %1221 = vmatpush1.bf16.msra.mxu0 0
    %1222 = vmatprep.subr.bf16.mxu0 0
    %1223 = vmatpush1.bf16.msra.mxu0 0
    %1224 = vmatprep.subr.bf16.mxu0 0
    %1225 = vmatpush1.bf16.msra.mxu0 0
    %1226 = vmatprep.subr.bf16.mxu0 0
    %1227 = vmatpush1.bf16.msra.mxu0 0
    %1228 = vmatprep.subr.bf16.mxu0 0
    %1229 = vmatpush1.bf16.msra.mxu0 0
    %1230 = vmatprep.subr.bf16.mxu0 0
    %1231 = vmatpush1.bf16.msra.mxu0 0
    %1232 = vmatprep.subr.bf16.mxu0 0
    %1233 = vmatpush1.bf16.msra.mxu0 0
    %1234 = vmatprep.mubr.bf16.mxu0 0
    %1235 = vmatmul.mubr.bf16.gmra.mrb[0].mxu0 %v968
    %v1236 = vpop.f32.mrb[0].mxu0
    %v1237 = vadd.f32 0.0, %v1236
    %v1238 = vpop.f32.mrb[0].mxu0
    %v1239 = vadd.f32 0.0, %v1238
    %v1240 = vpop.f32.mrb[0].mxu0
    %v1241 = vpop.f32.mrb[0].mxu0
    %1242 = vdwg.mxu0
    %v1243 = vadd.f32 %v964, %v1196
    %v1244 = vadd.f32 %v965, %v1198
    %v1245 = vadd.f32 %v966, %v1237
    %v1246 = vadd.f32 %v967, %v1239
    %v1247 = vxor.u32 %v1243, 2147483648
    %v1248 = vxor.u32 %v1244, 2147483648
    %v1249 = vxor.u32 %v1245, 2147483648
    %v1250 = vmul.f32 %v1247, 1.442695
    %v1251 = vpow.pop %v1250
    %v1252 = vmul.f32 %v1248, 1.442695
    %v1253 = vpow.pop %v1252
    %v1254 = vmul.f32 %v1249, 1.442695
    %v1255 = vpow.pop %v1254
    %v1256 = vadd.f32 %v1251, 1.0
    %v1257 = vadd.f32 %v1253, 1.0
    %v1258 = vadd.f32 %v1255, 1.0
    %v1259 = vrcp.pop %v1256
    %v1260 = vmul.f32 1.0, %v1259
    %v1261 = vrcp.pop %v1257
    %v1262 = vmul.f32 1.0, %v1261
    %v1263 = vrcp.pop %v1258
    %v1264 = vmul.f32 1.0, %v1263
    %v1265 = vtanh.pop %v1246
    %v1266 = vmul.f32 %v1262, %v956
    %v1267 = vmul.f32 %v1260, %v1265
    %v1268 = vadd.f32 %v1266, %v1267
    %v1269 = vtanh.pop %v1268
    %v1270 = vmul.f32 %v1264, %v1269
    %s1271 = scalar_lea.vmem [#allocation3], 16
    %1272 = vst [vmem:[%s1271] sm:$0xff] %v1270
    %s1273 = smul.u32 3, 4
    %s1274 = smul.addr %s1273, 8
    %s1275 = scalar_lea.vmem [#allocation2], %s1274
    %v1276 = vld [vmem:[%s1275] sm:$0xff]
    %v1277 = vld [vmem:[%s1275 + $0x8] sm:$0xff]
    %v1278 = vld [vmem:[%s1275 + $0x10] sm:$0xff]
    %v1279 = vld [vmem:[%s1275 + $0x18] sm:$0xff]
    %v1280 = vpack.c.bf16 %v1270, %v1270
    %v1281 = vld [vmem:[#allocation4] sm:$0xff]
    %v1282 = vld [vmem:[#allocation4 + $0x8] sm:$0xff]
    %v1283 = vld [vmem:[#allocation4 + $0x10] sm:$0xff]
    %v1284 = vld [vmem:[#allocation4 + $0x18] sm:$0xff]
    %v1285 = vld [vmem:[#allocation4 + $0x20] sm:$0xff]
    %v1286 = vld [vmem:[#allocation4 + $0x28] sm:$0xff]
    %v1287 = vld [vmem:[#allocation4 + $0x30] sm:$0xff]
    %v1288 = vld [vmem:[#allocation4 + $0x38] sm:$0xff]
    %v1289 = vld [vmem:[#allocation4 + $0x40] sm:$0xff]
    %v1290 = vld [vmem:[#allocation4 + $0x48] sm:$0xff]
    %v1291 = vld [vmem:[#allocation4 + $0x50] sm:$0xff]
    %v1292 = vld [vmem:[#allocation4 + $0x58] sm:$0xff]
    %v1293 = vld [vmem:[#allocation4 + $0x60] sm:$0xff]
    %v1294 = vld [vmem:[#allocation4 + $0x68] sm:$0xff]
    %v1295 = vld [vmem:[#allocation4 + $0x70] sm:$0xff]
    %v1296 = vld [vmem:[#allocation4 + $0x78] sm:$0xff]
    %v1297 = vld [vmem:[#allocation4 + $0x80] sm:$0xff]
    %v1298 = vld [vmem:[#allocation4 + $0x88] sm:$0xff]
    %v1299 = vld [vmem:[#allocation4 + $0x90] sm:$0xff]
    %v1300 = vld [vmem:[#allocation4 + $0x98] sm:$0xff]
    %v1301 = vld [vmem:[#allocation4 + $0xa0] sm:$0xff]
    %v1302 = vld [vmem:[#allocation4 + $0xa8] sm:$0xff]
    %v1303 = vld [vmem:[#allocation4 + $0xb0] sm:$0xff]
    %v1304 = vld [vmem:[#allocation4 + $0xb8] sm:$0xff]
    %v1305 = vld [vmem:[#allocation4 + $0xc0] sm:$0xff]
    %v1306 = vld [vmem:[#allocation4 + $0xc8] sm:$0xff]
    %v1307 = vld [vmem:[#allocation4 + $0xd0] sm:$0xff]
    %v1308 = vld [vmem:[#allocation4 + $0xd8] sm:$0xff]
    %v1309 = vld [vmem:[#allocation4 + $0xe0] sm:$0xff]
    %v1310 = vld [vmem:[#allocation4 + $0xe8] sm:$0xff]
    %v1311 = vld [vmem:[#allocation4 + $0xf0] sm:$0xff]
    %v1312 = vld [vmem:[#allocation4 + $0xf8] sm:$0xff]
    %v1345 = vunpack.c.l.b16 %v1281
    %v1346 = vunpack.c.h.b16 %v1281
    %v1347 = vunpack.c.l.b16 %v1282
    %v1348 = vunpack.c.h.b16 %v1282
    %v1349 = vunpack.c.l.b16 %v1283
    %v1350 = vunpack.c.h.b16 %v1283
    %v1351 = vunpack.c.l.b16 %v1284
    %v1352 = vunpack.c.h.b16 %v1284
    %v1353 = vunpack.c.l.b16 %v1285
    %v1354 = vunpack.c.h.b16 %v1285
    %v1355 = vunpack.c.l.b16 %v1286
    %v1356 = vunpack.c.h.b16 %v1286
    %v1357 = vunpack.c.l.b16 %v1287
    %v1358 = vunpack.c.h.b16 %v1287
    %v1359 = vunpack.c.l.b16 %v1288
    %v1360 = vunpack.c.h.b16 %v1288
    %v1361 = vunpack.c.l.b16 %v1289
    %v1362 = vunpack.c.h.b16 %v1289
    %v1363 = vunpack.c.l.b16 %v1290
    %v1364 = vunpack.c.h.b16 %v1290
    %v1365 = vunpack.c.l.b16 %v1291
    %v1366 = vunpack.c.h.b16 %v1291
    %v1367 = vunpack.c.l.b16 %v1292
    %v1368 = vunpack.c.h.b16 %v1292
    %v1369 = vunpack.c.l.b16 %v1293
    %v1370 = vunpack.c.h.b16 %v1293
    %v1371 = vunpack.c.l.b16 %v1294
    %v1372 = vunpack.c.h.b16 %v1294
    %v1373 = vunpack.c.l.b16 %v1295
    %v1374 = vunpack.c.h.b16 %v1295
    %v1375 = vunpack.c.l.b16 %v1296
    %v1376 = vunpack.c.h.b16 %v1296
    %v1377 = vunpack.c.l.b16 %v1297
    %v1378 = vunpack.c.h.b16 %v1297
    %v1379 = vunpack.c.l.b16 %v1298
    %v1380 = vunpack.c.h.b16 %v1298
    %v1381 = vunpack.c.l.b16 %v1299
    %v1382 = vunpack.c.h.b16 %v1299
    %v1383 = vunpack.c.l.b16 %v1300
    %v1384 = vunpack.c.h.b16 %v1300
    %v1385 = vunpack.c.l.b16 %v1301
    %v1386 = vunpack.c.h.b16 %v1301
    %v1387 = vunpack.c.l.b16 %v1302
    %v1388 = vunpack.c.h.b16 %v1302
    %v1389 = vunpack.c.l.b16 %v1303
    %v1390 = vunpack.c.h.b16 %v1303
    %v1391 = vunpack.c.l.b16 %v1304
    %v1392 = vunpack.c.h.b16 %v1304
    %v1393 = vunpack.c.l.b16 %v1305
    %v1394 = vunpack.c.h.b16 %v1305
    %v1395 = vunpack.c.l.b16 %v1306
    %v1396 = vunpack.c.h.b16 %v1306
    %v1397 = vunpack.c.l.b16 %v1307
    %v1398 = vunpack.c.h.b16 %v1307
    %v1399 = vunpack.c.l.b16 %v1308
    %v1400 = vunpack.c.h.b16 %v1308
    %v1401 = vunpack.c.l.b16 %v1309
    %v1402 = vunpack.c.h.b16 %v1309
    %v1403 = vunpack.c.l.b16 %v1310
    %v1404 = vunpack.c.h.b16 %v1310
    %v1405 = vunpack.c.l.b16 %v1311
    %v1406 = vunpack.c.h.b16 %v1311
    %v1407 = vunpack.c.l.b16 %v1312
    %v1408 = vunpack.c.h.b16 %v1312
    %v1409 = vpack.c.b16 %v1349, %v1345
    %v1410 = vpack.c.b16 %v1350, %v1346
    %v1411 = vpack.c.b16 %v1351, %v1347
    %v1412 = vpack.c.b16 %v1352, %v1348
    %v1413 = vpack.c.b16 %v1357, %v1353
    %v1414 = vpack.c.b16 %v1358, %v1354
    %v1415 = vpack.c.b16 %v1359, %v1355
    %v1416 = vpack.c.b16 %v1360, %v1356
    %v1417 = vpack.c.b16 %v1365, %v1361
    %v1418 = vpack.c.b16 %v1366, %v1362
    %v1419 = vpack.c.b16 %v1367, %v1363
    %v1420 = vpack.c.b16 %v1368, %v1364
    %v1421 = vpack.c.b16 %v1373, %v1369
    %v1422 = vpack.c.b16 %v1374, %v1370
    %v1423 = vpack.c.b16 %v1375, %v1371
    %v1424 = vpack.c.b16 %v1376, %v1372
    %v1425 = vpack.c.b16 %v1381, %v1377
    %v1426 = vpack.c.b16 %v1382, %v1378
    %v1427 = vpack.c.b16 %v1383, %v1379
    %v1428 = vpack.c.b16 %v1384, %v1380
    %v1429 = vpack.c.b16 %v1389, %v1385
    %v1430 = vpack.c.b16 %v1390, %v1386
    %v1431 = vpack.c.b16 %v1391, %v1387
    %v1432 = vpack.c.b16 %v1392, %v1388
    %v1433 = vpack.c.b16 %v1397, %v1393
    %v1434 = vpack.c.b16 %v1398, %v1394
    %v1435 = vpack.c.b16 %v1399, %v1395
    %v1436 = vpack.c.b16 %v1400, %v1396
    %v1437 = vpack.c.b16 %v1405, %v1401
    %v1438 = vpack.c.b16 %v1406, %v1402
    %v1439 = vpack.c.b16 %v1407, %v1403
    %v1440 = vpack.c.b16 %v1408, %v1404
    %1473 = vmatprep.subr.bf16.mxu0 %v1410
    %1474 = vmatpush1.bf16.msra.mxu0 %v1409
    %1475 = vmatprep.subr.bf16.mxu0 %v1414
    %1476 = vmatpush1.bf16.msra.mxu0 %v1413
    %1477 = vmatprep.subr.bf16.mxu0 %v1418
    %1478 = vmatpush1.bf16.msra.mxu0 %v1417
    %1479 = vmatprep.subr.bf16.mxu0 %v1422
    %1480 = vmatpush1.bf16.msra.mxu0 %v1421
    %1481 = vmatprep.subr.bf16.mxu0 %v1426
    %1482 = vmatpush1.bf16.msra.mxu0 %v1425
    %1483 = vmatprep.subr.bf16.mxu0 %v1430
    %1484 = vmatpush1.bf16.msra.mxu0 %v1429
    %1485 = vmatprep.subr.bf16.mxu0 %v1434
    %1486 = vmatpush1.bf16.msra.mxu0 %v1433
    %1487 = vmatprep.subr.bf16.mxu0 %v1438
    %1488 = vmatpush1.bf16.msra.mxu0 %v1437
    %1489 = vmatprep.subr.bf16.mxu0 0
    %1490 = vmatpush1.bf16.msra.mxu0 0
    %1491 = vmatprep.subr.bf16.mxu0 0
    %1492 = vmatpush1.bf16.msra.mxu0 0
    %1493 = vmatprep.subr.bf16.mxu0 0
    %1494 = vmatpush1.bf16.msra.mxu0 0
    %1495 = vmatprep.subr.bf16.mxu0 0
    %1496 = vmatpush1.bf16.msra.mxu0 0
    %1497 = vmatprep.subr.bf16.mxu0 0
    %1498 = vmatpush1.bf16.msra.mxu0 0
    %1499 = vmatprep.subr.bf16.mxu0 0
    %1500 = vmatpush1.bf16.msra.mxu0 0
    %1501 = vmatprep.subr.bf16.mxu0 0
    %1502 = vmatpush1.bf16.msra.mxu0 0
    %1503 = vmatprep.subr.bf16.mxu0 0
    %1504 = vmatpush1.bf16.msra.mxu0 0
    %1505 = vmatprep.mubr.bf16.mxu0 0
    %1506 = vmatmul.mubr.bf16.gmra.mrb[0].mxu0 %v1280
    %v1507 = vpop.f32.mrb[0].mxu0
    %v1508 = vadd.f32 0.0, %v1507
    %v1509 = vpop.f32.mrb[0].mxu0
    %v1510 = vadd.f32 0.0, %v1509
    %v1511 = vpop.f32.mrb[0].mxu0
    %v1512 = vpop.f32.mrb[0].mxu0
    %1513 = vdwg.mxu0
    %1514 = vmatprep.subr.bf16.mxu0 %v1412
    %1515 = vmatpush1.bf16.msra.mxu0 %v1411
    %1516 = vmatprep.subr.bf16.mxu0 %v1416
    %1517 = vmatpush1.bf16.msra.mxu0 %v1415
    %1518 = vmatprep.subr.bf16.mxu0 %v1420
    %1519 = vmatpush1.bf16.msra.mxu0 %v1419
    %1520 = vmatprep.subr.bf16.mxu0 %v1424
    %1521 = vmatpush1.bf16.msra.mxu0 %v1423
    %1522 = vmatprep.subr.bf16.mxu0 %v1428
    %1523 = vmatpush1.bf16.msra.mxu0 %v1427
    %1524 = vmatprep.subr.bf16.mxu0 %v1432
    %1525 = vmatpush1.bf16.msra.mxu0 %v1431
    %1526 = vmatprep.subr.bf16.mxu0 %v1436
    %1527 = vmatpush1.bf16.msra.mxu0 %v1435
    %1528 = vmatprep.subr.bf16.mxu0 %v1440
    %1529 = vmatpush1.bf16.msra.mxu0 %v1439
    %1530 = vmatprep.subr.bf16.mxu0 0
    %1531 = vmatpush1.bf16.msra.mxu0 0
    %1532 = vmatprep.subr.bf16.mxu0 0
    %1533 = vmatpush1.bf16.msra.mxu0 0
    %1534 = vmatprep.subr.bf16.mxu0 0
    %1535 = vmatpush1.bf16.msra.mxu0 0
    %1536 = vmatprep.subr.bf16.mxu0 0
    %1537 = vmatpush1.bf16.msra.mxu0 0
    %1538 = vmatprep.subr.bf16.mxu0 0
    %1539 = vmatpush1.bf16.msra.mxu0 0
    %1540 = vmatprep.subr.bf16.mxu0 0
    %1541 = vmatpush1.bf16.msra.mxu0 0
    %1542 = vmatprep.subr.bf16.mxu0 0
    %1543 = vmatpush1.bf16.msra.mxu0 0
    %1544 = vmatprep.subr.bf16.mxu0 0
    %1545 = vmatpush1.bf16.msra.mxu0 0
    %1546 = vmatprep.mubr.bf16.mxu0 0
    %1547 = vmatmul.mubr.bf16.gmra.mrb[0].mxu0 %v1280
    %v1548 = vpop.f32.mrb[0].mxu0
    %v1549 = vadd.f32 0.0, %v1548
    %v1550 = vpop.f32.mrb[0].mxu0
    %v1551 = vadd.f32 0.0, %v1550
    %v1552 = vpop.f32.mrb[0].mxu0
    %v1553 = vpop.f32.mrb[0].mxu0
    %1554 = vdwg.mxu0
    %v1555 = vadd.f32 %v1276, %v1508
    %v1556 = vadd.f32 %v1277, %v1510
    %v1557 = vadd.f32 %v1278, %v1549
    %v1558 = vadd.f32 %v1279, %v1551
    %v1559 = vxor.u32 %v1555, 2147483648
    %v1560 = vxor.u32 %v1556, 2147483648
    %v1561 = vxor.u32 %v1557, 2147483648
    %v1562 = vmul.f32 %v1559, 1.442695
    %v1563 = vpow.pop %v1562
    %v1564 = vmul.f32 %v1560, 1.442695
    %v1565 = vpow.pop %v1564
    %v1566 = vmul.f32 %v1561, 1.442695
    %v1567 = vpow.pop %v1566
    %v1568 = vadd.f32 %v1563, 1.0
    %v1569 = vadd.f32 %v1565, 1.0
    %v1570 = vadd.f32 %v1567, 1.0
    %v1571 = vrcp.pop %v1568
    %v1572 = vmul.f32 1.0, %v1571
    %v1573 = vrcp.pop %v1569
    %v1574 = vmul.f32 1.0, %v1573
    %v1575 = vrcp.pop %v1570
    %v1576 = vmul.f32 1.0, %v1575
    %v1577 = vtanh.pop %v1558
    %v1578 = vmul.f32 %v1574, %v1268
    %v1579 = vmul.f32 %v1572, %v1577
    %v1580 = vadd.f32 %v1578, %v1579
    %v1581 = vtanh.pop %v1580
    %v1582 = vmul.f32 %v1576, %v1581
    %s1583 = scalar_lea.vmem [#allocation3], 24
    %1584 = vst [vmem:[%s1583] sm:$0xff] %v1582
    %s1585 = smul.u32 4, 4
    %s1586 = smul.addr %s1585, 8
    %s1587 = scalar_lea.vmem [#allocation2], %s1586
    %v1588 = vld [vmem:[%s1587] sm:$0xff]
    %v1589 = vld [vmem:[%s1587 + $0x8] sm:$0xff]
    %v1590 = vld [vmem:[%s1587 + $0x10] sm:$0xff]
    %v1591 = vld [vmem:[%s1587 + $0x18] sm:$0xff]
    %v1592 = vpack.c.bf16 %v1582, %v1582
    %v1593 = vld [vmem:[#allocation4] sm:$0xff]
    %v1594 = vld [vmem:[#allocation4 + $0x8] sm:$0xff]
    %v1595 = vld [vmem:[#allocation4 + $0x10] sm:$0xff]
    %v1596 = vld [vmem:[#allocation4 + $0x18] sm:$0xff]
    %v1597 = vld [vmem:[#allocation4 + $0x20] sm:$0xff]
    %v1598 = vld [vmem:[#allocation4 + $0x28] sm:$0xff]
    %v1599 = vld [vmem:[#allocation4 + $0x30] sm:$0xff]
    %v1600 = vld [vmem:[#allocation4 + $0x38] sm:$0xff]
    %v1601 = vld [vmem:[#allocation4 + $0x40] sm:$0xff]
    %v1602 = vld [vmem:[#allocation4 + $0x48] sm:$0xff]
    %v1603 = vld [vmem:[#allocation4 + $0x50] sm:$0xff]
    %v1604 = vld [vmem:[#allocation4 + $0x58] sm:$0xff]
    %v1605 = vld [vmem:[#allocation4 + $0x60] sm:$0xff]
    %v1606 = vld [vmem:[#allocation4 + $0x68] sm:$0xff]
    %v1607 = vld [vmem:[#allocation4 + $0x70] sm:$0xff]
    %v1608 = vld [vmem:[#allocation4 + $0x78] sm:$0xff]
    %v1609 = vld [vmem:[#allocation4 + $0x80] sm:$0xff]
    %v1610 = vld [vmem:[#allocation4 + $0x88] sm:$0xff]
    %v1611 = vld [vmem:[#allocation4 + $0x90] sm:$0xff]
    %v1612 = vld [vmem:[#allocation4 + $0x98] sm:$0xff]
    %v1613 = vld [vmem:[#allocation4 + $0xa0] sm:$0xff]
    %v1614 = vld [vmem:[#allocation4 + $0xa8] sm:$0xff]
    %v1615 = vld [vmem:[#allocation4 + $0xb0] sm:$0xff]
    %v1616 = vld [vmem:[#allocation4 + $0xb8] sm:$0xff]
    %v1617 = vld [vmem:[#allocation4 + $0xc0] sm:$0xff]
    %v1618 = vld [vmem:[#allocation4 + $0xc8] sm:$0xff]
    %v1619 = vld [vmem:[#allocation4 + $0xd0] sm:$0xff]
    %v1620 = vld [vmem:[#allocation4 + $0xd8] sm:$0xff]
    %v1621 = vld [vmem:[#allocation4 + $0xe0] sm:$0xff]
    %v1622 = vld [vmem:[#allocation4 + $0xe8] sm:$0xff]
    %v1623 = vld [vmem:[#allocation4 + $0xf0] sm:$0xff]
    %v1624 = vld [vmem:[#allocation4 + $0xf8] sm:$0xff]
    %v1657 = vunpack.c.l.b16 %v1593
    %v1658 = vunpack.c.h.b16 %v1593
    %v1659 = vunpack.c.l.b16 %v1594
    %v1660 = vunpack.c.h.b16 %v1594
    %v1661 = vunpack.c.l.b16 %v1595
    %v1662 = vunpack.c.h.b16 %v1595
    %v1663 = vunpack.c.l.b16 %v1596
    %v1664 = vunpack.c.h.b16 %v1596
    %v1665 = vunpack.c.l.b16 %v1597
    %v1666 = vunpack.c.h.b16 %v1597
    %v1667 = vunpack.c.l.b16 %v1598
    %v1668 = vunpack.c.h.b16 %v1598
    %v1669 = vunpack.c.l.b16 %v1599
    %v1670 = vunpack.c.h.b16 %v1599
    %v1671 = vunpack.c.l.b16 %v1600
    %v1672 = vunpack.c.h.b16 %v1600
    %v1673 = vunpack.c.l.b16 %v1601
    %v1674 = vunpack.c.h.b16 %v1601
    %v1675 = vunpack.c.l.b16 %v1602
    %v1676 = vunpack.c.h.b16 %v1602
    %v1677 = vunpack.c.l.b16 %v1603
    %v1678 = vunpack.c.h.b16 %v1603
    %v1679 = vunpack.c.l.b16 %v1604
    %v1680 = vunpack.c.h.b16 %v1604
    %v1681 = vunpack.c.l.b16 %v1605
    %v1682 = vunpack.c.h.b16 %v1605
    %v1683 = vunpack.c.l.b16 %v1606
    %v1684 = vunpack.c.h.b16 %v1606
    %v1685 = vunpack.c.l.b16 %v1607
    %v1686 = vunpack.c.h.b16 %v1607
    %v1687 = vunpack.c.l.b16 %v1608
    %v1688 = vunpack.c.h.b16 %v1608
    %v1689 = vunpack.c.l.b16 %v1609
    %v1690 = vunpack.c.h.b16 %v1609
    %v1691 = vunpack.c.l.b16 %v1610
    %v1692 = vunpack.c.h.b16 %v1610
    %v1693 = vunpack.c.l.b16 %v1611
    %v1694 = vunpack.c.h.b16 %v1611
    %v1695 = vunpack.c.l.b16 %v1612
    %v1696 = vunpack.c.h.b16 %v1612
    %v1697 = vunpack.c.l.b16 %v1613
    %v1698 = vunpack.c.h.b16 %v1613
    %v1699 = vunpack.c.l.b16 %v1614
    %v1700 = vunpack.c.h.b16 %v1614
    %v1701 = vunpack.c.l.b16 %v1615
    %v1702 = vunpack.c.h.b16 %v1615
    %v1703 = vunpack.c.l.b16 %v1616
    %v1704 = vunpack.c.h.b16 %v1616
    %v1705 = vunpack.c.l.b16 %v1617
    %v1706 = vunpack.c.h.b16 %v1617
    %v1707 = vunpack.c.l.b16 %v1618
    %v1708 = vunpack.c.h.b16 %v1618
    %v1709 = vunpack.c.l.b16 %v1619
    %v1710 = vunpack.c.h.b16 %v1619
    %v1711 = vunpack.c.l.b16 %v1620
    %v1712 = vunpack.c.h.b16 %v1620
    %v1713 = vunpack.c.l.b16 %v1621
    %v1714 = vunpack.c.h.b16 %v1621
    %v1715 = vunpack.c.l.b16 %v1622
    %v1716 = vunpack.c.h.b16 %v1622
    %v1717 = vunpack.c.l.b16 %v1623
    %v1718 = vunpack.c.h.b16 %v1623
    %v1719 = vunpack.c.l.b16 %v1624
    %v1720 = vunpack.c.h.b16 %v1624
    %v1721 = vpack.c.b16 %v1661, %v1657
    %v1722 = vpack.c.b16 %v1662, %v1658
    %v1723 = vpack.c.b16 %v1663, %v1659
    %v1724 = vpack.c.b16 %v1664, %v1660
    %v1725 = vpack.c.b16 %v1669, %v1665
    %v1726 = vpack.c.b16 %v1670, %v1666
    %v1727 = vpack.c.b16 %v1671, %v1667
    %v1728 = vpack.c.b16 %v1672, %v1668
    %v1729 = vpack.c.b16 %v1677, %v1673
    %v1730 = vpack.c.b16 %v1678, %v1674
    %v1731 = vpack.c.b16 %v1679, %v1675
    %v1732 = vpack.c.b16 %v1680, %v1676
    %v1733 = vpack.c.b16 %v1685, %v1681
    %v1734 = vpack.c.b16 %v1686, %v1682
    %v1735 = vpack.c.b16 %v1687, %v1683
    %v1736 = vpack.c.b16 %v1688, %v1684
    %v1737 = vpack.c.b16 %v1693, %v1689
    %v1738 = vpack.c.b16 %v1694, %v1690
    %v1739 = vpack.c.b16 %v1695, %v1691
    %v1740 = vpack.c.b16 %v1696, %v1692
    %v1741 = vpack.c.b16 %v1701, %v1697
    %v1742 = vpack.c.b16 %v1702, %v1698
    %v1743 = vpack.c.b16 %v1703, %v1699
    %v1744 = vpack.c.b16 %v1704, %v1700
    %v1745 = vpack.c.b16 %v1709, %v1705
    %v1746 = vpack.c.b16 %v1710, %v1706
    %v1747 = vpack.c.b16 %v1711, %v1707
    %v1748 = vpack.c.b16 %v1712, %v1708
    %v1749 = vpack.c.b16 %v1717, %v1713
    %v1750 = vpack.c.b16 %v1718, %v1714
    %v1751 = vpack.c.b16 %v1719, %v1715
    %v1752 = vpack.c.b16 %v1720, %v1716
    %1785 = vmatprep.subr.bf16.mxu0 %v1722
    %1786 = vmatpush1.bf16.msra.mxu0 %v1721
    %1787 = vmatprep.subr.bf16.mxu0 %v1726
    %1788 = vmatpush1.bf16.msra.mxu0 %v1725
    %1789 = vmatprep.subr.bf16.mxu0 %v1730
    %1790 = vmatpush1.bf16.msra.mxu0 %v1729
    %1791 = vmatprep.subr.bf16.mxu0 %v1734
    %1792 = vmatpush1.bf16.msra.mxu0 %v1733
    %1793 = vmatprep.subr.bf16.mxu0 %v1738
    %1794 = vmatpush1.bf16.msra.mxu0 %v1737
    %1795 = vmatprep.subr.bf16.mxu0 %v1742
    %1796 = vmatpush1.bf16.msra.mxu0 %v1741
    %1797 = vmatprep.subr.bf16.mxu0 %v1746
    %1798 = vmatpush1.bf16.msra.mxu0 %v1745
    %1799 = vmatprep.subr.bf16.mxu0 %v1750
    %1800 = vmatpush1.bf16.msra.mxu0 %v1749
    %1801 = vmatprep.subr.bf16.mxu0 0
    %1802 = vmatpush1.bf16.msra.mxu0 0
    %1803 = vmatprep.subr.bf16.mxu0 0
    %1804 = vmatpush1.bf16.msra.mxu0 0
    %1805 = vmatprep.subr.bf16.mxu0 0
    %1806 = vmatpush1.bf16.msra.mxu0 0
    %1807 = vmatprep.subr.bf16.mxu0 0
    %1808 = vmatpush1.bf16.msra.mxu0 0
    %1809 = vmatprep.subr.bf16.mxu0 0
    %1810 = vmatpush1.bf16.msra.mxu0 0
    %1811 = vmatprep.subr.bf16.mxu0 0
    %1812 = vmatpush1.bf16.msra.mxu0 0
    %1813 = vmatprep.subr.bf16.mxu0 0
    %1814 = vmatpush1.bf16.msra.mxu0 0
    %1815 = vmatprep.subr.bf16.mxu0 0
    %1816 = vmatpush1.bf16.msra.mxu0 0
    %1817 = vmatprep.mubr.bf16.mxu0 0
    %1818 = vmatmul.mubr.bf16.gmra.mrb[0].mxu0 %v1592
    %v1819 = vpop.f32.mrb[0].mxu0
    %v1820 = vadd.f32 0.0, %v1819
    %v1821 = vpop.f32.mrb[0].mxu0
    %v1822 = vadd.f32 0.0, %v1821
    %v1823 = vpop.f32.mrb[0].mxu0
    %v1824 = vpop.f32.mrb[0].mxu0
    %1825 = vdwg.mxu0
    %1826 = vmatprep.subr.bf16.mxu0 %v1724
    %1827 = vmatpush1.bf16.msra.mxu0 %v1723
    %1828 = vmatprep.subr.bf16.mxu0 %v1728
    %1829 = vmatpush1.bf16.msra.mxu0 %v1727
    %1830 = vmatprep.subr.bf16.mxu0 %v1732
    %1831 = vmatpush1.bf16.msra.mxu0 %v1731
    %1832 = vmatprep.subr.bf16.mxu0 %v1736
    %1833 = vmatpush1.bf16.msra.mxu0 %v1735
    %1834 = vmatprep.subr.bf16.mxu0 %v1740
    %1835 = vmatpush1.bf16.msra.mxu0 %v1739
    %1836 = vmatprep.subr.bf16.mxu0 %v1744
    %1837 = vmatpush1.bf16.msra.mxu0 %v1743
    %1838 = vmatprep.subr.bf16.mxu0 %v1748
    %1839 = vmatpush1.bf16.msra.mxu0 %v1747
    %1840 = vmatprep.subr.bf16.mxu0 %v1752
    %1841 = vmatpush1.bf16.msra.mxu0 %v1751
    %1842 = vmatprep.subr.bf16.mxu0 0
    %1843 = vmatpush1.bf16.msra.mxu0 0
    %1844 = vmatprep.subr.bf16.mxu0 0
    %1845 = vmatpush1.bf16.msra.mxu0 0
    %1846 = vmatprep.subr.bf16.mxu0 0
    %1847 = vmatpush1.bf16.msra.mxu0 0
    %1848 = vmatprep.subr.bf16.mxu0 0
    %1849 = vmatpush1.bf16.msra.mxu0 0
    %1850 = vmatprep.subr.bf16.mxu0 0
    %1851 = vmatpush1.bf16.msra.mxu0 0
    %1852 = vmatprep.subr.bf16.mxu0 0
    %1853 = vmatpush1.bf16.msra.mxu0 0
    %1854 = vmatprep.subr.bf16.mxu0 0
    %1855 = vmatpush1.bf16.msra.mxu0 0
    %1856 = vmatprep.subr.bf16.mxu0 0
    %1857 = vmatpush1.bf16.msra.mxu0 0
    %1858 = vmatprep.mubr.bf16.mxu0 0
    %1859 = vmatmul.mubr.bf16.gmra.mrb[0].mxu0 %v1592
    %v1860 = vpop.f32.mrb[0].mxu0
    %v1861 = vadd.f32 0.0, %v1860
    %v1862 = vpop.f32.mrb[0].mxu0
    %v1863 = vadd.f32 0.0, %v1862
    %v1864 = vpop.f32.mrb[0].mxu0
    %v1865 = vpop.f32.mrb[0].mxu0
    %1866 = vdwg.mxu0
    %v1867 = vadd.f32 %v1588, %v1820
    %v1868 = vadd.f32 %v1589, %v1822
    %v1869 = vadd.f32 %v1590, %v1861
    %v1870 = vadd.f32 %v1591, %v1863
    %v1871 = vxor.u32 %v1867, 2147483648
    %v1872 = vxor.u32 %v1868, 2147483648
    %v1873 = vxor.u32 %v1869, 2147483648
    %v1874 = vmul.f32 %v1871, 1.442695
    %v1875 = vpow.pop %v1874
    %v1876 = vmul.f32 %v1872, 1.442695
    %v1877 = vpow.pop %v1876
    %v1878 = vmul.f32 %v1873, 1.442695
    %v1879 = vpow.pop %v1878
    %v1880 = vadd.f32 %v1875, 1.0
    %v1881 = vadd.f32 %v1877, 1.0
    %v1882 = vadd.f32 %v1879, 1.0
    %v1883 = vrcp.pop %v1880
    %v1884 = vmul.f32 1.0, %v1883
    %v1885 = vrcp.pop %v1881
    %v1886 = vmul.f32 1.0, %v1885
    %v1887 = vrcp.pop %v1882
    %v1888 = vmul.f32 1.0, %v1887
    %v1889 = vtanh.pop %v1870
    %v1890 = vmul.f32 %v1886, %v1580
    %v1891 = vmul.f32 %v1884, %v1889
    %v1892 = vadd.f32 %v1890, %v1891
    %v1893 = vtanh.pop %v1892
    %v1894 = vmul.f32 %v1888, %v1893
    %s1895 = scalar_lea.vmem [#allocation3], 32
    %1896 = vst [vmem:[%s1895] sm:$0xff] %v1894
    %s1897 = smul.u32 5, 4
    %s1898 = smul.addr %s1897, 8
    %s1899 = scalar_lea.vmem [#allocation2], %s1898
    %v1900 = vld [vmem:[%s1899] sm:$0xff]
    %v1901 = vld [vmem:[%s1899 + $0x8] sm:$0xff]
    %v1902 = vld [vmem:[%s1899 + $0x10] sm:$0xff]
    %v1903 = vld [vmem:[%s1899 + $0x18] sm:$0xff]
    %v1904 = vpack.c.bf16 %v1894, %v1894
    %v1905 = vld [vmem:[#allocation4] sm:$0xff]
    %v1906 = vld [vmem:[#allocation4 + $0x8] sm:$0xff]
    %v1907 = vld [vmem:[#allocation4 + $0x10] sm:$0xff]
    %v1908 = vld [vmem:[#allocation4 + $0x18] sm:$0xff]
    %v1909 = vld [vmem:[#allocation4 + $0x20] sm:$0xff]
    %v1910 = vld [vmem:[#allocation4 + $0x28] sm:$0xff]
    %v1911 = vld [vmem:[#allocation4 + $0x30] sm:$0xff]
    %v1912 = vld [vmem:[#allocation4 + $0x38] sm:$0xff]
    %v1913 = vld [vmem:[#allocation4 + $0x40] sm:$0xff]
    %v1914 = vld [vmem:[#allocation4 + $0x48] sm:$0xff]
    %v1915 = vld [vmem:[#allocation4 + $0x50] sm:$0xff]
    %v1916 = vld [vmem:[#allocation4 + $0x58] sm:$0xff]
    %v1917 = vld [vmem:[#allocation4 + $0x60] sm:$0xff]
    %v1918 = vld [vmem:[#allocation4 + $0x68] sm:$0xff]
    %v1919 = vld [vmem:[#allocation4 + $0x70] sm:$0xff]
    %v1920 = vld [vmem:[#allocation4 + $0x78] sm:$0xff]
    %v1921 = vld [vmem:[#allocation4 + $0x80] sm:$0xff]
    %v1922 = vld [vmem:[#allocation4 + $0x88] sm:$0xff]
    %v1923 = vld [vmem:[#allocation4 + $0x90] sm:$0xff]
    %v1924 = vld [vmem:[#allocation4 + $0x98] sm:$0xff]
    %v1925 = vld [vmem:[#allocation4 + $0xa0] sm:$0xff]
    %v1926 = vld [vmem:[#allocation4 + $0xa8] sm:$0xff]
    %v1927 = vld [vmem:[#allocation4 + $0xb0] sm:$0xff]
    %v1928 = vld [vmem:[#allocation4 + $0xb8] sm:$0xff]
    %v1929 = vld [vmem:[#allocation4 + $0xc0] sm:$0xff]
    %v1930 = vld [vmem:[#allocation4 + $0xc8] sm:$0xff]
    %v1931 = vld [vmem:[#allocation4 + $0xd0] sm:$0xff]
    %v1932 = vld [vmem:[#allocation4 + $0xd8] sm:$0xff]
    %v1933 = vld [vmem:[#allocation4 + $0xe0] sm:$0xff]
    %v1934 = vld [vmem:[#allocation4 + $0xe8] sm:$0xff]
    %v1935 = vld [vmem:[#allocation4 + $0xf0] sm:$0xff]
    %v1936 = vld [vmem:[#allocation4 + $0xf8] sm:$0xff]
    %v1969 = vunpack.c.l.b16 %v1905
    %v1970 = vunpack.c.h.b16 %v1905
    %v1971 = vunpack.c.l.b16 %v1906
    %v1972 = vunpack.c.h.b16 %v1906
    %v1973 = vunpack.c.l.b16 %v1907
    %v1974 = vunpack.c.h.b16 %v1907
    %v1975 = vunpack.c.l.b16 %v1908
    %v1976 = vunpack.c.h.b16 %v1908
    %v1977 = vunpack.c.l.b16 %v1909
    %v1978 = vunpack.c.h.b16 %v1909
    %v1979 = vunpack.c.l.b16 %v1910
    %v1980 = vunpack.c.h.b16 %v1910
    %v1981 = vunpack.c.l.b16 %v1911
    %v1982 = vunpack.c.h.b16 %v1911
    %v1983 = vunpack.c.l.b16 %v1912
    %v1984 = vunpack.c.h.b16 %v1912
    %v1985 = vunpack.c.l.b16 %v1913
    %v1986 = vunpack.c.h.b16 %v1913
    %v1987 = vunpack.c.l.b16 %v1914
    %v1988 = vunpack.c.h.b16 %v1914
    %v1989 = vunpack.c.l.b16 %v1915
    %v1990 = vunpack.c.h.b16 %v1915
    %v1991 = vunpack.c.l.b16 %v1916
    %v1992 = vunpack.c.h.b16 %v1916
    %v1993 = vunpack.c.l.b16 %v1917
    %v1994 = vunpack.c.h.b16 %v1917
    %v1995 = vunpack.c.l.b16 %v1918
    %v1996 = vunpack.c.h.b16 %v1918
    %v1997 = vunpack.c.l.b16 %v1919
    %v1998 = vunpack.c.h.b16 %v1919
    %v1999 = vunpack.c.l.b16 %v1920
    %v2000 = vunpack.c.h.b16 %v1920
    %v2001 = vunpack.c.l.b16 %v1921
    %v2002 = vunpack.c.h.b16 %v1921
    %v2003 = vunpack.c.l.b16 %v1922
    %v2004 = vunpack.c.h.b16 %v1922
    %v2005 = vunpack.c.l.b16 %v1923
    %v2006 = vunpack.c.h.b16 %v1923
    %v2007 = vunpack.c.l.b16 %v1924
    %v2008 = vunpack.c.h.b16 %v1924
    %v2009 = vunpack.c.l.b16 %v1925
    %v2010 = vunpack.c.h.b16 %v1925
    %v2011 = vunpack.c.l.b16 %v1926
    %v2012 = vunpack.c.h.b16 %v1926
    %v2013 = vunpack.c.l.b16 %v1927
    %v2014 = vunpack.c.h.b16 %v1927
    %v2015 = vunpack.c.l.b16 %v1928
    %v2016 = vunpack.c.h.b16 %v1928
    %v2017 = vunpack.c.l.b16 %v1929
    %v2018 = vunpack.c.h.b16 %v1929
    %v2019 = vunpack.c.l.b16 %v1930
    %v2020 = vunpack.c.h.b16 %v1930
    %v2021 = vunpack.c.l.b16 %v1931
    %v2022 = vunpack.c.h.b16 %v1931
    %v2023 = vunpack.c.l.b16 %v1932
    %v2024 = vunpack.c.h.b16 %v1932
    %v2025 = vunpack.c.l.b16 %v1933
    %v2026 = vunpack.c.h.b16 %v1933
    %v2027 = vunpack.c.l.b16 %v1934
    %v2028 = vunpack.c.h.b16 %v1934
    %v2029 = vunpack.c.l.b16 %v1935
    %v2030 = vunpack.c.h.b16 %v1935
    %v2031 = vunpack.c.l.b16 %v1936
    %v2032 = vunpack.c.h.b16 %v1936
    %v2033 = vpack.c.b16 %v1973, %v1969
    %v2034 = vpack.c.b16 %v1974, %v1970
    %v2035 = vpack.c.b16 %v1975, %v1971
    %v2036 = vpack.c.b16 %v1976, %v1972
    %v2037 = vpack.c.b16 %v1981, %v1977
    %v2038 = vpack.c.b16 %v1982, %v1978
    %v2039 = vpack.c.b16 %v1983, %v1979
    %v2040 = vpack.c.b16 %v1984, %v1980
    %v2041 = vpack.c.b16 %v1989, %v1985
    %v2042 = vpack.c.b16 %v1990, %v1986
    %v2043 = vpack.c.b16 %v1991, %v1987
    %v2044 = vpack.c.b16 %v1992, %v1988
    %v2045 = vpack.c.b16 %v1997, %v1993
    %v2046 = vpack.c.b16 %v1998, %v1994
    %v2047 = vpack.c.b16 %v1999, %v1995
    %v2048 = vpack.c.b16 %v2000, %v1996
    %v2049 = vpack.c.b16 %v2005, %v2001
    %v2050 = vpack.c.b16 %v2006, %v2002
    %v2051 = vpack.c.b16 %v2007, %v2003
    %v2052 = vpack.c.b16 %v2008, %v2004
    %v2053 = vpack.c.b16 %v2013, %v2009
    %v2054 = vpack.c.b16 %v2014, %v2010
    %v2055 = vpack.c.b16 %v2015, %v2011
    %v2056 = vpack.c.b16 %v2016, %v2012
    %v2057 = vpack.c.b16 %v2021, %v2017
    %v2058 = vpack.c.b16 %v2022, %v2018
    %v2059 = vpack.c.b16 %v2023, %v2019
    %v2060 = vpack.c.b16 %v2024, %v2020
    %v2061 = vpack.c.b16 %v2029, %v2025
    %v2062 = vpack.c.b16 %v2030, %v2026
    %v2063 = vpack.c.b16 %v2031, %v2027
    %v2064 = vpack.c.b16 %v2032, %v2028
    %2097 = vmatprep.subr.bf16.mxu0 %v2034
    %2098 = vmatpush1.bf16.msra.mxu0 %v2033
    %2099 = vmatprep.subr.bf16.mxu0 %v2038
    %2100 = vmatpush1.bf16.msra.mxu0 %v2037
    %2101 = vmatprep.subr.bf16.mxu0 %v2042
    %2102 = vmatpush1.bf16.msra.mxu0 %v2041
    %2103 = vmatprep.subr.bf16.mxu0 %v2046
    %2104 = vmatpush1.bf16.msra.mxu0 %v2045
    %2105 = vmatprep.subr.bf16.mxu0 %v2050
    %2106 = vmatpush1.bf16.msra.mxu0 %v2049
    %2107 = vmatprep.subr.bf16.mxu0 %v2054
    %2108 = vmatpush1.bf16.msra.mxu0 %v2053
    %2109 = vmatprep.subr.bf16.mxu0 %v2058
    %2110 = vmatpush1.bf16.msra.mxu0 %v2057
    %2111 = vmatprep.subr.bf16.mxu0 %v2062
    %2112 = vmatpush1.bf16.msra.mxu0 %v2061
    %2113 = vmatprep.subr.bf16.mxu0 0
    %2114 = vmatpush1.bf16.msra.mxu0 0
    %2115 = vmatprep.subr.bf16.mxu0 0
    %2116 = vmatpush1.bf16.msra.mxu0 0
    %2117 = vmatprep.subr.bf16.mxu0 0
    %2118 = vmatpush1.bf16.msra.mxu0 0
    %2119 = vmatprep.subr.bf16.mxu0 0
    %2120 = vmatpush1.bf16.msra.mxu0 0
    %2121 = vmatprep.subr.bf16.mxu0 0
    %2122 = vmatpush1.bf16.msra.mxu0 0
    %2123 = vmatprep.subr.bf16.mxu0 0
    %2124 = vmatpush1.bf16.msra.mxu0 0
    %2125 = vmatprep.subr.bf16.mxu0 0
    %2126 = vmatpush1.bf16.msra.mxu0 0
    %2127 = vmatprep.subr.bf16.mxu0 0
    %2128 = vmatpush1.bf16.msra.mxu0 0
    %2129 = vmatprep.mubr.bf16.mxu0 0
    %2130 = vmatmul.mubr.bf16.gmra.mrb[0].mxu0 %v1904
    %v2131 = vpop.f32.mrb[0].mxu0
    %v2132 = vadd.f32 0.0, %v2131
    %v2133 = vpop.f32.mrb[0].mxu0
    %v2134 = vadd.f32 0.0, %v2133
    %v2135 = vpop.f32.mrb[0].mxu0
    %v2136 = vpop.f32.mrb[0].mxu0
    %2137 = vdwg.mxu0
    %2138 = vmatprep.subr.bf16.mxu0 %v2036
    %2139 = vmatpush1.bf16.msra.mxu0 %v2035
    %2140 = vmatprep.subr.bf16.mxu0 %v2040
    %2141 = vmatpush1.bf16.msra.mxu0 %v2039
    %2142 = vmatprep.subr.bf16.mxu0 %v2044
    %2143 = vmatpush1.bf16.msra.mxu0 %v2043
    %2144 = vmatprep.subr.bf16.mxu0 %v2048
    %2145 = vmatpush1.bf16.msra.mxu0 %v2047
    %2146 = vmatprep.subr.bf16.mxu0 %v2052
    %2147 = vmatpush1.bf16.msra.mxu0 %v2051
    %2148 = vmatprep.subr.bf16.mxu0 %v2056
    %2149 = vmatpush1.bf16.msra.mxu0 %v2055
    %2150 = vmatprep.subr.bf16.mxu0 %v2060
    %2151 = vmatpush1.bf16.msra.mxu0 %v2059
    %2152 = vmatprep.subr.bf16.mxu0 %v2064
    %2153 = vmatpush1.bf16.msra.mxu0 %v2063
    %2154 = vmatprep.subr.bf16.mxu0 0
    %2155 = vmatpush1.bf16.msra.mxu0 0
    %2156 = vmatprep.subr.bf16.mxu0 0
    %2157 = vmatpush1.bf16.msra.mxu0 0
    %2158 = vmatprep.subr.bf16.mxu0 0
    %2159 = vmatpush1.bf16.msra.mxu0 0
    %2160 = vmatprep.subr.bf16.mxu0 0
    %2161 = vmatpush1.bf16.msra.mxu0 0
    %2162 = vmatprep.subr.bf16.mxu0 0
    %2163 = vmatpush1.bf16.msra.mxu0 0
    %2164 = vmatprep.subr.bf16.mxu0 0
    %2165 = vmatpush1.bf16.msra.mxu0 0
    %2166 = vmatprep.subr.bf16.mxu0 0
    %2167 = vmatpush1.bf16.msra.mxu0 0
    %2168 = vmatprep.subr.bf16.mxu0 0
    %2169 = vmatpush1.bf16.msra.mxu0 0
    %2170 = vmatprep.mubr.bf16.mxu0 0
    %2171 = vmatmul.mubr.bf16.gmra.mrb[0].mxu0 %v1904
    %v2172 = vpop.f32.mrb[0].mxu0
    %v2173 = vadd.f32 0.0, %v2172
    %v2174 = vpop.f32.mrb[0].mxu0
    %v2175 = vadd.f32 0.0, %v2174
    %v2176 = vpop.f32.mrb[0].mxu0
    %v2177 = vpop.f32.mrb[0].mxu0
    %2178 = vdwg.mxu0
    %v2179 = vadd.f32 %v1900, %v2132
    %v2180 = vadd.f32 %v1901, %v2134
    %v2181 = vadd.f32 %v1902, %v2173
    %v2182 = vadd.f32 %v1903, %v2175
    %v2183 = vxor.u32 %v2179, 2147483648
    %v2184 = vxor.u32 %v2180, 2147483648
    %v2185 = vxor.u32 %v2181, 2147483648
    %v2186 = vmul.f32 %v2183, 1.442695
    %v2187 = vpow.pop %v2186
    %v2188 = vmul.f32 %v2184, 1.442695
    %v2189 = vpow.pop %v2188
    %v2190 = vmul.f32 %v2185, 1.442695
    %v2191 = vpow.pop %v2190
    %v2192 = vadd.f32 %v2187, 1.0
    %v2193 = vadd.f32 %v2189, 1.0
    %v2194 = vadd.f32 %v2191, 1.0
    %v2195 = vrcp.pop %v2192
    %v2196 = vmul.f32 1.0, %v2195
    %v2197 = vrcp.pop %v2193
    %v2198 = vmul.f32 1.0, %v2197
    %v2199 = vrcp.pop %v2194
    %v2200 = vmul.f32 1.0, %v2199
    %v2201 = vtanh.pop %v2182
    %v2202 = vmul.f32 %v2198, %v1892
    %v2203 = vmul.f32 %v2196, %v2201
    %v2204 = vadd.f32 %v2202, %v2203
    %v2205 = vtanh.pop %v2204
    %v2206 = vmul.f32 %v2200, %v2205
    %s2207 = scalar_lea.vmem [#allocation3], 40
    %2208 = vst [vmem:[%s2207] sm:$0xff] %v2206
    %s2209 = smul.u32 6, 4
    %s2210 = smul.addr %s2209, 8
    %s2211 = scalar_lea.vmem [#allocation2], %s2210
    %v2212 = vld [vmem:[%s2211] sm:$0xff]
    %v2213 = vld [vmem:[%s2211 + $0x8] sm:$0xff]
    %v2214 = vld [vmem:[%s2211 + $0x10] sm:$0xff]
    %v2215 = vld [vmem:[%s2211 + $0x18] sm:$0xff]
    %v2216 = vpack.c.bf16 %v2206, %v2206
    %v2217 = vld [vmem:[#allocation4] sm:$0xff]
    %v2218 = vld [vmem:[#allocation4 + $0x8] sm:$0xff]
    %v2219 = vld [vmem:[#allocation4 + $0x10] sm:$0xff]
    %v2220 = vld [vmem:[#allocation4 + $0x18] sm:$0xff]
    %v2221 = vld [vmem:[#allocation4 + $0x20] sm:$0xff]
    %v2222 = vld [vmem:[#allocation4 + $0x28] sm:$0xff]
    %v2223 = vld [vmem:[#allocation4 + $0x30] sm:$0xff]
    %v2224 = vld [vmem:[#allocation4 + $0x38] sm:$0xff]
    %v2225 = vld [vmem:[#allocation4 + $0x40] sm:$0xff]
    %v2226 = vld [vmem:[#allocation4 + $0x48] sm:$0xff]
    %v2227 = vld [vmem:[#allocation4 + $0x50] sm:$0xff]
    %v2228 = vld [vmem:[#allocation4 + $0x58] sm:$0xff]
    %v2229 = vld [vmem:[#allocation4 + $0x60] sm:$0xff]
    %v2230 = vld [vmem:[#allocation4 + $0x68] sm:$0xff]
    %v2231 = vld [vmem:[#allocation4 + $0x70] sm:$0xff]
    %v2232 = vld [vmem:[#allocation4 + $0x78] sm:$0xff]
    %v2233 = vld [vmem:[#allocation4 + $0x80] sm:$0xff]
    %v2234 = vld [vmem:[#allocation4 + $0x88] sm:$0xff]
    %v2235 = vld [vmem:[#allocation4 + $0x90] sm:$0xff]
    %v2236 = vld [vmem:[#allocation4 + $0x98] sm:$0xff]
    %v2237 = vld [vmem:[#allocation4 + $0xa0] sm:$0xff]
    %v2238 = vld [vmem:[#allocation4 + $0xa8] sm:$0xff]
    %v2239 = vld [vmem:[#allocation4 + $0xb0] sm:$0xff]
    %v2240 = vld [vmem:[#allocation4 + $0xb8] sm:$0xff]
    %v2241 = vld [vmem:[#allocation4 + $0xc0] sm:$0xff]
    %v2242 = vld [vmem:[#allocation4 + $0xc8] sm:$0xff]
    %v2243 = vld [vmem:[#allocation4 + $0xd0] sm:$0xff]
    %v2244 = vld [vmem:[#allocation4 + $0xd8] sm:$0xff]
    %v2245 = vld [vmem:[#allocation4 + $0xe0] sm:$0xff]
    %v2246 = vld [vmem:[#allocation4 + $0xe8] sm:$0xff]
    %v2247 = vld [vmem:[#allocation4 + $0xf0] sm:$0xff]
    %v2248 = vld [vmem:[#allocation4 + $0xf8] sm:$0xff]
    %v2281 = vunpack.c.l.b16 %v2217
    %v2282 = vunpack.c.h.b16 %v2217
    %v2283 = vunpack.c.l.b16 %v2218
    %v2284 = vunpack.c.h.b16 %v2218
    %v2285 = vunpack.c.l.b16 %v2219
    %v2286 = vunpack.c.h.b16 %v2219
    %v2287 = vunpack.c.l.b16 %v2220
    %v2288 = vunpack.c.h.b16 %v2220
    %v2289 = vunpack.c.l.b16 %v2221
    %v2290 = vunpack.c.h.b16 %v2221
    %v2291 = vunpack.c.l.b16 %v2222
    %v2292 = vunpack.c.h.b16 %v2222
    %v2293 = vunpack.c.l.b16 %v2223
    %v2294 = vunpack.c.h.b16 %v2223
    %v2295 = vunpack.c.l.b16 %v2224
    %v2296 = vunpack.c.h.b16 %v2224
    %v2297 = vunpack.c.l.b16 %v2225
    %v2298 = vunpack.c.h.b16 %v2225
    %v2299 = vunpack.c.l.b16 %v2226
    %v2300 = vunpack.c.h.b16 %v2226
    %v2301 = vunpack.c.l.b16 %v2227
    %v2302 = vunpack.c.h.b16 %v2227
    %v2303 = vunpack.c.l.b16 %v2228
    %v2304 = vunpack.c.h.b16 %v2228
    %v2305 = vunpack.c.l.b16 %v2229
    %v2306 = vunpack.c.h.b16 %v2229
    %v2307 = vunpack.c.l.b16 %v2230
    %v2308 = vunpack.c.h.b16 %v2230
    %v2309 = vunpack.c.l.b16 %v2231
    %v2310 = vunpack.c.h.b16 %v2231
    %v2311 = vunpack.c.l.b16 %v2232
    %v2312 = vunpack.c.h.b16 %v2232
    %v2313 = vunpack.c.l.b16 %v2233
    %v2314 = vunpack.c.h.b16 %v2233
    %v2315 = vunpack.c.l.b16 %v2234
    %v2316 = vunpack.c.h.b16 %v2234
    %v2317 = vunpack.c.l.b16 %v2235
    %v2318 = vunpack.c.h.b16 %v2235
    %v2319 = vunpack.c.l.b16 %v2236
    %v2320 = vunpack.c.h.b16 %v2236
    %v2321 = vunpack.c.l.b16 %v2237
    %v2322 = vunpack.c.h.b16 %v2237
    %v2323 = vunpack.c.l.b16 %v2238
    %v2324 = vunpack.c.h.b16 %v2238
    %v2325 = vunpack.c.l.b16 %v2239
    %v2326 = vunpack.c.h.b16 %v2239
    %v2327 = vunpack.c.l.b16 %v2240
    %v2328 = vunpack.c.h.b16 %v2240
    %v2329 = vunpack.c.l.b16 %v2241
    %v2330 = vunpack.c.h.b16 %v2241
    %v2331 = vunpack.c.l.b16 %v2242
    %v2332 = vunpack.c.h.b16 %v2242
    %v2333 = vunpack.c.l.b16 %v2243
    %v2334 = vunpack.c.h.b16 %v2243
    %v2335 = vunpack.c.l.b16 %v2244
    %v2336 = vunpack.c.h.b16 %v2244
    %v2337 = vunpack.c.l.b16 %v2245
    %v2338 = vunpack.c.h.b16 %v2245
    %v2339 = vunpack.c.l.b16 %v2246
    %v2340 = vunpack.c.h.b16 %v2246
    %v2341 = vunpack.c.l.b16 %v2247
    %v2342 = vunpack.c.h.b16 %v2247
    %v2343 = vunpack.c.l.b16 %v2248
    %v2344 = vunpack.c.h.b16 %v2248
    %v2345 = vpack.c.b16 %v2285, %v2281
    %v2346 = vpack.c.b16 %v2286, %v2282
    %v2347 = vpack.c.b16 %v2287, %v2283
    %v2348 = vpack.c.b16 %v2288, %v2284
    %v2349 = vpack.c.b16 %v2293, %v2289
    %v2350 = vpack.c.b16 %v2294, %v2290
    %v2351 = vpack.c.b16 %v2295, %v2291
    %v2352 = vpack.c.b16 %v2296, %v2292
    %v2353 = vpack.c.b16 %v2301, %v2297
    %v2354 = vpack.c.b16 %v2302, %v2298
    %v2355 = vpack.c.b16 %v2303, %v2299
    %v2356 = vpack.c.b16 %v2304, %v2300
    %v2357 = vpack.c.b16 %v2309, %v2305
    %v2358 = vpack.c.b16 %v2310, %v2306
    %v2359 = vpack.c.b16 %v2311, %v2307
    %v2360 = vpack.c.b16 %v2312, %v2308
    %v2361 = vpack.c.b16 %v2317, %v2313
    %v2362 = vpack.c.b16 %v2318, %v2314
    %v2363 = vpack.c.b16 %v2319, %v2315
    %v2364 = vpack.c.b16 %v2320, %v2316
    %v2365 = vpack.c.b16 %v2325, %v2321
    %v2366 = vpack.c.b16 %v2326, %v2322
    %v2367 = vpack.c.b16 %v2327, %v2323
    %v2368 = vpack.c.b16 %v2328, %v2324
    %v2369 = vpack.c.b16 %v2333, %v2329
    %v2370 = vpack.c.b16 %v2334, %v2330
    %v2371 = vpack.c.b16 %v2335, %v2331
    %v2372 = vpack.c.b16 %v2336, %v2332
    %v2373 = vpack.c.b16 %v2341, %v2337
    %v2374 = vpack.c.b16 %v2342, %v2338
    %v2375 = vpack.c.b16 %v2343, %v2339
    %v2376 = vpack.c.b16 %v2344, %v2340
    %2409 = vmatprep.subr.bf16.mxu0 %v2346
    %2410 = vmatpush1.bf16.msra.mxu0 %v2345
    %2411 = vmatprep.subr.bf16.mxu0 %v2350
    %2412 = vmatpush1.bf16.msra.mxu0 %v2349
    %2413 = vmatprep.subr.bf16.mxu0 %v2354
    %2414 = vmatpush1.bf16.msra.mxu0 %v2353
    %2415 = vmatprep.subr.bf16.mxu0 %v2358
    %2416 = vmatpush1.bf16.msra.mxu0 %v2357
    %2417 = vmatprep.subr.bf16.mxu0 %v2362
    %2418 = vmatpush1.bf16.msra.mxu0 %v2361
    %2419 = vmatprep.subr.bf16.mxu0 %v2366
    %2420 = vmatpush1.bf16.msra.mxu0 %v2365
    %2421 = vmatprep.subr.bf16.mxu0 %v2370
    %2422 = vmatpush1.bf16.msra.mxu0 %v2369
    %2423 = vmatprep.subr.bf16.mxu0 %v2374
    %2424 = vmatpush1.bf16.msra.mxu0 %v2373
    %2425 = vmatprep.subr.bf16.mxu0 0
    %2426 = vmatpush1.bf16.msra.mxu0 0
    %2427 = vmatprep.subr.bf16.mxu0 0
    %2428 = vmatpush1.bf16.msra.mxu0 0
    %2429 = vmatprep.subr.bf16.mxu0 0
    %2430 = vmatpush1.bf16.msra.mxu0 0
    %2431 = vmatprep.subr.bf16.mxu0 0
    %2432 = vmatpush1.bf16.msra.mxu0 0
    %2433 = vmatprep.subr.bf16.mxu0 0
    %2434 = vmatpush1.bf16.msra.mxu0 0
    %2435 = vmatprep.subr.bf16.mxu0 0
    %2436 = vmatpush1.bf16.msra.mxu0 0
    %2437 = vmatprep.subr.bf16.mxu0 0
    %2438 = vmatpush1.bf16.msra.mxu0 0
    %2439 = vmatprep.subr.bf16.mxu0 0
    %2440 = vmatpush1.bf16.msra.mxu0 0
    %2441 = vmatprep.mubr.bf16.mxu0 0
    %2442 = vmatmul.mubr.bf16.gmra.mrb[0].mxu0 %v2216
    %v2443 = vpop.f32.mrb[0].mxu0
    %v2444 = vadd.f32 0.0, %v2443
    %v2445 = vpop.f32.mrb[0].mxu0
    %v2446 = vadd.f32 0.0, %v2445
    %v2447 = vpop.f32.mrb[0].mxu0
    %v2448 = vpop.f32.mrb[0].mxu0
    %2449 = vdwg.mxu0
    %2450 = vmatprep.subr.bf16.mxu0 %v2348
    %2451 = vmatpush1.bf16.msra.mxu0 %v2347
    %2452 = vmatprep.subr.bf16.mxu0 %v2352
    %2453 = vmatpush1.bf16.msra.mxu0 %v2351
    %2454 = vmatprep.subr.bf16.mxu0 %v2356
    %2455 = vmatpush1.bf16.msra.mxu0 %v2355
    %2456 = vmatprep.subr.bf16.mxu0 %v2360
    %2457 = vmatpush1.bf16.msra.mxu0 %v2359
    %2458 = vmatprep.subr.bf16.mxu0 %v2364
    %2459 = vmatpush1.bf16.msra.mxu0 %v2363
    %2460 = vmatprep.subr.bf16.mxu0 %v2368
    %2461 = vmatpush1.bf16.msra.mxu0 %v2367
    %2462 = vmatprep.subr.bf16.mxu0 %v2372
    %2463 = vmatpush1.bf16.msra.mxu0 %v2371
    %2464 = vmatprep.subr.bf16.mxu0 %v2376
    %2465 = vmatpush1.bf16.msra.mxu0 %v2375
    %2466 = vmatprep.subr.bf16.mxu0 0
    %2467 = vmatpush1.bf16.msra.mxu0 0
    %2468 = vmatprep.subr.bf16.mxu0 0
    %2469 = vmatpush1.bf16.msra.mxu0 0
    %2470 = vmatprep.subr.bf16.mxu0 0
    %2471 = vmatpush1.bf16.msra.mxu0 0
    %2472 = vmatprep.subr.bf16.mxu0 0
    %2473 = vmatpush1.bf16.msra.mxu0 0
    %2474 = vmatprep.subr.bf16.mxu0 0
    %2475 = vmatpush1.bf16.msra.mxu0 0
    %2476 = vmatprep.subr.bf16.mxu0 0
    %2477 = vmatpush1.bf16.msra.mxu0 0
    %2478 = vmatprep.subr.bf16.mxu0 0
    %2479 = vmatpush1.bf16.msra.mxu0 0
    %2480 = vmatprep.subr.bf16.mxu0 0
    %2481 = vmatpush1.bf16.msra.mxu0 0
    %2482 = vmatprep.mubr.bf16.mxu0 0
    %2483 = vmatmul.mubr.bf16.gmra.mrb[0].mxu0 %v2216
    %v2484 = vpop.f32.mrb[0].mxu0
    %v2485 = vadd.f32 0.0, %v2484
    %v2486 = vpop.f32.mrb[0].mxu0
    %v2487 = vadd.f32 0.0, %v2486
    %v2488 = vpop.f32.mrb[0].mxu0
    %v2489 = vpop.f32.mrb[0].mxu0
    %2490 = vdwg.mxu0
    %v2491 = vadd.f32 %v2212, %v2444
    %v2492 = vadd.f32 %v2213, %v2446
    %v2493 = vadd.f32 %v2214, %v2485
    %v2494 = vadd.f32 %v2215, %v2487
    %v2495 = vxor.u32 %v2491, 2147483648
    %v2496 = vxor.u32 %v2492, 2147483648
    %v2497 = vxor.u32 %v2493, 2147483648
    %v2498 = vmul.f32 %v2495, 1.442695
    %v2499 = vpow.pop %v2498
    %v2500 = vmul.f32 %v2496, 1.442695
    %v2501 = vpow.pop %v2500
    %v2502 = vmul.f32 %v2497, 1.442695
    %v2503 = vpow.pop %v2502
    %v2504 = vadd.f32 %v2499, 1.0
    %v2505 = vadd.f32 %v2501, 1.0
    %v2506 = vadd.f32 %v2503, 1.0
    %v2507 = vrcp.pop %v2504
    %v2508 = vmul.f32 1.0, %v2507
    %v2509 = vrcp.pop %v2505
    %v2510 = vmul.f32 1.0, %v2509
    %v2511 = vrcp.pop %v2506
    %v2512 = vmul.f32 1.0, %v2511
    %v2513 = vtanh.pop %v2494
    %v2514 = vmul.f32 %v2510, %v2204
    %v2515 = vmul.f32 %v2508, %v2513
    %v2516 = vadd.f32 %v2514, %v2515
    %v2517 = vtanh.pop %v2516
    %v2518 = vmul.f32 %v2512, %v2517
    %s2519 = scalar_lea.vmem [#allocation3], 48
    %2520 = vst [vmem:[%s2519] sm:$0xff] %v2518
    %s2521 = smul.u32 7, 4
    %s2522 = smul.addr %s2521, 8
    %s2523 = scalar_lea.vmem [#allocation2], %s2522
    %v2524 = vld [vmem:[%s2523] sm:$0xff]
    %v2525 = vld [vmem:[%s2523 + $0x8] sm:$0xff]
    %v2526 = vld [vmem:[%s2523 + $0x10] sm:$0xff]
    %v2527 = vld [vmem:[%s2523 + $0x18] sm:$0xff]
    %v2528 = vpack.c.bf16 %v2518, %v2518
    %v2529 = vld [vmem:[#allocation4] sm:$0xff]
    %v2530 = vld [vmem:[#allocation4 + $0x8] sm:$0xff]
    %v2531 = vld [vmem:[#allocation4 + $0x10] sm:$0xff]
    %v2532 = vld [vmem:[#allocation4 + $0x18] sm:$0xff]
    %v2533 = vld [vmem:[#allocation4 + $0x20] sm:$0xff]
    %v2534 = vld [vmem:[#allocation4 + $0x28] sm:$0xff]
    %v2535 = vld [vmem:[#allocation4 + $0x30] sm:$0xff]
    %v2536 = vld [vmem:[#allocation4 + $0x38] sm:$0xff]
    %v2537 = vld [vmem:[#allocation4 + $0x40] sm:$0xff]
    %v2538 = vld [vmem:[#allocation4 + $0x48] sm:$0xff]
    %v2539 = vld [vmem:[#allocation4 + $0x50] sm:$0xff]
    %v2540 = vld [vmem:[#allocation4 + $0x58] sm:$0xff]
    %v2541 = vld [vmem:[#allocation4 + $0x60] sm:$0xff]
    %v2542 = vld [vmem:[#allocation4 + $0x68] sm:$0xff]
    %v2543 = vld [vmem:[#allocation4 + $0x70] sm:$0xff]
    %v2544 = vld [vmem:[#allocation4 + $0x78] sm:$0xff]
    %v2545 = vld [vmem:[#allocation4 + $0x80] sm:$0xff]
    %v2546 = vld [vmem:[#allocation4 + $0x88] sm:$0xff]
    %v2547 = vld [vmem:[#allocation4 + $0x90] sm:$0xff]
    %v2548 = vld [vmem:[#allocation4 + $0x98] sm:$0xff]
    %v2549 = vld [vmem:[#allocation4 + $0xa0] sm:$0xff]
    %v2550 = vld [vmem:[#allocation4 + $0xa8] sm:$0xff]
    %v2551 = vld [vmem:[#allocation4 + $0xb0] sm:$0xff]
    %v2552 = vld [vmem:[#allocation4 + $0xb8] sm:$0xff]
    %v2553 = vld [vmem:[#allocation4 + $0xc0] sm:$0xff]
    %v2554 = vld [vmem:[#allocation4 + $0xc8] sm:$0xff]
    %v2555 = vld [vmem:[#allocation4 + $0xd0] sm:$0xff]
    %v2556 = vld [vmem:[#allocation4 + $0xd8] sm:$0xff]
    %v2557 = vld [vmem:[#allocation4 + $0xe0] sm:$0xff]
    %v2558 = vld [vmem:[#allocation4 + $0xe8] sm:$0xff]
    %v2559 = vld [vmem:[#allocation4 + $0xf0] sm:$0xff]
    %v2560 = vld [vmem:[#allocation4 + $0xf8] sm:$0xff]
    %v2593 = vunpack.c.l.b16 %v2529
    %v2594 = vunpack.c.h.b16 %v2529
    %v2595 = vunpack.c.l.b16 %v2530
    %v2596 = vunpack.c.h.b16 %v2530
    %v2597 = vunpack.c.l.b16 %v2531
    %v2598 = vunpack.c.h.b16 %v2531
    %v2599 = vunpack.c.l.b16 %v2532
    %v2600 = vunpack.c.h.b16 %v2532
    %v2601 = vunpack.c.l.b16 %v2533
    %v2602 = vunpack.c.h.b16 %v2533
    %v2603 = vunpack.c.l.b16 %v2534
    %v2604 = vunpack.c.h.b16 %v2534
    %v2605 = vunpack.c.l.b16 %v2535
    %v2606 = vunpack.c.h.b16 %v2535
    %v2607 = vunpack.c.l.b16 %v2536
    %v2608 = vunpack.c.h.b16 %v2536
    %v2609 = vunpack.c.l.b16 %v2537
    %v2610 = vunpack.c.h.b16 %v2537
    %v2611 = vunpack.c.l.b16 %v2538
    %v2612 = vunpack.c.h.b16 %v2538
    %v2613 = vunpack.c.l.b16 %v2539
    %v2614 = vunpack.c.h.b16 %v2539
    %v2615 = vunpack.c.l.b16 %v2540
    %v2616 = vunpack.c.h.b16 %v2540
    %v2617 = vunpack.c.l.b16 %v2541
    %v2618 = vunpack.c.h.b16 %v2541
    %v2619 = vunpack.c.l.b16 %v2542
    %v2620 = vunpack.c.h.b16 %v2542
    %v2621 = vunpack.c.l.b16 %v2543
    %v2622 = vunpack.c.h.b16 %v2543
    %v2623 = vunpack.c.l.b16 %v2544
    %v2624 = vunpack.c.h.b16 %v2544
    %v2625 = vunpack.c.l.b16 %v2545
    %v2626 = vunpack.c.h.b16 %v2545
    %v2627 = vunpack.c.l.b16 %v2546
    %v2628 = vunpack.c.h.b16 %v2546
    %v2629 = vunpack.c.l.b16 %v2547
    %v2630 = vunpack.c.h.b16 %v2547
    %v2631 = vunpack.c.l.b16 %v2548
    %v2632 = vunpack.c.h.b16 %v2548
    %v2633 = vunpack.c.l.b16 %v2549
    %v2634 = vunpack.c.h.b16 %v2549
    %v2635 = vunpack.c.l.b16 %v2550
    %v2636 = vunpack.c.h.b16 %v2550
    %v2637 = vunpack.c.l.b16 %v2551
    %v2638 = vunpack.c.h.b16 %v2551
    %v2639 = vunpack.c.l.b16 %v2552
    %v2640 = vunpack.c.h.b16 %v2552
    %v2641 = vunpack.c.l.b16 %v2553
    %v2642 = vunpack.c.h.b16 %v2553
    %v2643 = vunpack.c.l.b16 %v2554
    %v2644 = vunpack.c.h.b16 %v2554
    %v2645 = vunpack.c.l.b16 %v2555
    %v2646 = vunpack.c.h.b16 %v2555
    %v2647 = vunpack.c.l.b16 %v2556
    %v2648 = vunpack.c.h.b16 %v2556
    %v2649 = vunpack.c.l.b16 %v2557
    %v2650 = vunpack.c.h.b16 %v2557
    %v2651 = vunpack.c.l.b16 %v2558
    %v2652 = vunpack.c.h.b16 %v2558
    %v2653 = vunpack.c.l.b16 %v2559
    %v2654 = vunpack.c.h.b16 %v2559
    %v2655 = vunpack.c.l.b16 %v2560
    %v2656 = vunpack.c.h.b16 %v2560
    %v2657 = vpack.c.b16 %v2597, %v2593
    %v2658 = vpack.c.b16 %v2598, %v2594
    %v2659 = vpack.c.b16 %v2599, %v2595
    %v2660 = vpack.c.b16 %v2600, %v2596
    %v2661 = vpack.c.b16 %v2605, %v2601
    %v2662 = vpack.c.b16 %v2606, %v2602
    %v2663 = vpack.c.b16 %v2607, %v2603
    %v2664 = vpack.c.b16 %v2608, %v2604
    %v2665 = vpack.c.b16 %v2613, %v2609
    %v2666 = vpack.c.b16 %v2614, %v2610
    %v2667 = vpack.c.b16 %v2615, %v2611
    %v2668 = vpack.c.b16 %v2616, %v2612
    %v2669 = vpack.c.b16 %v2621, %v2617
    %v2670 = vpack.c.b16 %v2622, %v2618
    %v2671 = vpack.c.b16 %v2623, %v2619
    %v2672 = vpack.c.b16 %v2624, %v2620
    %v2673 = vpack.c.b16 %v2629, %v2625
    %v2674 = vpack.c.b16 %v2630, %v2626
    %v2675 = vpack.c.b16 %v2631, %v2627
    %v2676 = vpack.c.b16 %v2632, %v2628
    %v2677 = vpack.c.b16 %v2637, %v2633
    %v2678 = vpack.c.b16 %v2638, %v2634
    %v2679 = vpack.c.b16 %v2639, %v2635
    %v2680 = vpack.c.b16 %v2640, %v2636
    %v2681 = vpack.c.b16 %v2645, %v2641
    %v2682 = vpack.c.b16 %v2646, %v2642
    %v2683 = vpack.c.b16 %v2647, %v2643
    %v2684 = vpack.c.b16 %v2648, %v2644
    %v2685 = vpack.c.b16 %v2653, %v2649
    %v2686 = vpack.c.b16 %v2654, %v2650
    %v2687 = vpack.c.b16 %v2655, %v2651
    %v2688 = vpack.c.b16 %v2656, %v2652
    %2721 = vmatprep.subr.bf16.mxu0 %v2658
    %2722 = vmatpush1.bf16.msra.mxu0 %v2657
    %2723 = vmatprep.subr.bf16.mxu0 %v2662
    %2724 = vmatpush1.bf16.msra.mxu0 %v2661
    %2725 = vmatprep.subr.bf16.mxu0 %v2666
    %2726 = vmatpush1.bf16.msra.mxu0 %v2665
    %2727 = vmatprep.subr.bf16.mxu0 %v2670
    %2728 = vmatpush1.bf16.msra.mxu0 %v2669
    %2729 = vmatprep.subr.bf16.mxu0 %v2674
    %2730 = vmatpush1.bf16.msra.mxu0 %v2673
    %2731 = vmatprep.subr.bf16.mxu0 %v2678
    %2732 = vmatpush1.bf16.msra.mxu0 %v2677
    %2733 = vmatprep.subr.bf16.mxu0 %v2682
    %2734 = vmatpush1.bf16.msra.mxu0 %v2681
    %2735 = vmatprep.subr.bf16.mxu0 %v2686
    %2736 = vmatpush1.bf16.msra.mxu0 %v2685
    %2737 = vmatprep.subr.bf16.mxu0 0
    %2738 = vmatpush1.bf16.msra.mxu0 0
    %2739 = vmatprep.subr.bf16.mxu0 0
    %2740 = vmatpush1.bf16.msra.mxu0 0
    %2741 = vmatprep.subr.bf16.mxu0 0
    %2742 = vmatpush1.bf16.msra.mxu0 0
    %2743 = vmatprep.subr.bf16.mxu0 0
    %2744 = vmatpush1.bf16.msra.mxu0 0
    %2745 = vmatprep.subr.bf16.mxu0 0
    %2746 = vmatpush1.bf16.msra.mxu0 0
    %2747 = vmatprep.subr.bf16.mxu0 0
    %2748 = vmatpush1.bf16.msra.mxu0 0
    %2749 = vmatprep.subr.bf16.mxu0 0
    %2750 = vmatpush1.bf16.msra.mxu0 0
    %2751 = vmatprep.subr.bf16.mxu0 0
    %2752 = vmatpush1.bf16.msra.mxu0 0
    %2753 = vmatprep.mubr.bf16.mxu0 0
    %2754 = vmatmul.mubr.bf16.gmra.mrb[0].mxu0 %v2528
    %v2755 = vpop.f32.mrb[0].mxu0
    %v2756 = vadd.f32 0.0, %v2755
    %v2757 = vpop.f32.mrb[0].mxu0
    %v2758 = vadd.f32 0.0, %v2757
    %v2759 = vpop.f32.mrb[0].mxu0
    %v2760 = vpop.f32.mrb[0].mxu0
    %2761 = vdwg.mxu0
    %2762 = vmatprep.subr.bf16.mxu0 %v2660
    %2763 = vmatpush1.bf16.msra.mxu0 %v2659
    %2764 = vmatprep.subr.bf16.mxu0 %v2664
    %2765 = vmatpush1.bf16.msra.mxu0 %v2663
    %2766 = vmatprep.subr.bf16.mxu0 %v2668
    %2767 = vmatpush1.bf16.msra.mxu0 %v2667
    %2768 = vmatprep.subr.bf16.mxu0 %v2672
    %2769 = vmatpush1.bf16.msra.mxu0 %v2671
    %2770 = vmatprep.subr.bf16.mxu0 %v2676
    %2771 = vmatpush1.bf16.msra.mxu0 %v2675
    %2772 = vmatprep.subr.bf16.mxu0 %v2680
    %2773 = vmatpush1.bf16.msra.mxu0 %v2679
    %2774 = vmatprep.subr.bf16.mxu0 %v2684
    %2775 = vmatpush1.bf16.msra.mxu0 %v2683
    %2776 = vmatprep.subr.bf16.mxu0 %v2688
    %2777 = vmatpush1.bf16.msra.mxu0 %v2687
    %2778 = vmatprep.subr.bf16.mxu0 0
    %2779 = vmatpush1.bf16.msra.mxu0 0
    %2780 = vmatprep.subr.bf16.mxu0 0
    %2781 = vmatpush1.bf16.msra.mxu0 0
    %2782 = vmatprep.subr.bf16.mxu0 0
    %2783 = vmatpush1.bf16.msra.mxu0 0
    %2784 = vmatprep.subr.bf16.mxu0 0
    %2785 = vmatpush1.bf16.msra.mxu0 0
    %2786 = vmatprep.subr.bf16.mxu0 0
    %2787 = vmatpush1.bf16.msra.mxu0 0
    %2788 = vmatprep.subr.bf16.mxu0 0
    %2789 = vmatpush1.bf16.msra.mxu0 0
    %2790 = vmatprep.subr.bf16.mxu0 0
    %2791 = vmatpush1.bf16.msra.mxu0 0
    %2792 = vmatprep.subr.bf16.mxu0 0
    %2793 = vmatpush1.bf16.msra.mxu0 0
    %2794 = vmatprep.mubr.bf16.mxu0 0
    %2795 = vmatmul.mubr.bf16.gmra.mrb[0].mxu0 %v2528
    %v2796 = vpop.f32.mrb[0].mxu0
    %v2797 = vadd.f32 0.0, %v2796
    %v2798 = vpop.f32.mrb[0].mxu0
    %v2799 = vadd.f32 0.0, %v2798
    %v2800 = vpop.f32.mrb[0].mxu0
    %v2801 = vpop.f32.mrb[0].mxu0
    %2802 = vdwg.mxu0
    %v2803 = vadd.f32 %v2524, %v2756
    %v2804 = vadd.f32 %v2525, %v2758
    %v2805 = vadd.f32 %v2526, %v2797
    %v2806 = vadd.f32 %v2527, %v2799
    %v2807 = vxor.u32 %v2803, 2147483648
    %v2808 = vxor.u32 %v2804, 2147483648
    %v2809 = vxor.u32 %v2805, 2147483648
    %v2810 = vmul.f32 %v2807, 1.442695
    %v2811 = vpow.pop %v2810
    %v2812 = vmul.f32 %v2808, 1.442695
    %v2813 = vpow.pop %v2812
    %v2814 = vmul.f32 %v2809, 1.442695
    %v2815 = vpow.pop %v2814
    %v2816 = vadd.f32 %v2811, 1.0
    %v2817 = vadd.f32 %v2813, 1.0
    %v2818 = vadd.f32 %v2815, 1.0
    %v2819 = vrcp.pop %v2816
    %v2820 = vmul.f32 1.0, %v2819
    %v2821 = vrcp.pop %v2817
    %v2822 = vmul.f32 1.0, %v2821
    %v2823 = vrcp.pop %v2818
    %v2824 = vmul.f32 1.0, %v2823
    %v2825 = vtanh.pop %v2806
    %v2826 = vmul.f32 %v2822, %v2516
    %v2827 = vmul.f32 %v2820, %v2825
    %v2828 = vadd.f32 %v2826, %v2827
    %v2829 = vtanh.pop %v2828
    %v2830 = vmul.f32 %v2824, %v2829
    %s2831 = scalar_lea.vmem [#allocation3], 56
    %2832 = vst [vmem:[%s2831] sm:$0xff] %v2830
    %v2833 = vld [vmem:[%s6] sm:$0xf]
    %v2834 = vld [vmem:[#allocation3] sm:$0xff]
    %v2835 = vld [vmem:[#allocation3 + $0x8] sm:$0xff]
    %v2836 = vld [vmem:[#allocation3 + $0x10] sm:$0xff]
    %v2837 = vld [vmem:[#allocation3 + $0x18] sm:$0xff]
    %v2838 = vld [vmem:[#allocation3 + $0x20] sm:$0xff]
    %v2839 = vld [vmem:[#allocation3 + $0x28] sm:$0xff]
    %v2840 = vld [vmem:[#allocation3 + $0x30] sm:$0xff]
    %v2841 = vld [vmem:[#allocation3 + $0x38] sm:$0xff]
    %v2842 = vpack.c.bf16 %v2835, %v2834
    %v2843 = vpack.c.bf16 %v2837, %v2836
    %v2844 = vpack.c.bf16 %v2839, %v2838
    %v2845 = vpack.c.bf16 %v2841, %v2840
    %v2846 = vld [vmem:[#allocation6] sm:$0xff]
    %v2847 = vld [vmem:[#allocation6 + $0x8] sm:$0xff]
    %v2848 = vld [vmem:[#allocation6 + $0x10] sm:$0xff]
    %v2849 = vld [vmem:[#allocation6 + $0x18] sm:$0xff]
    %v2850 = vld [vmem:[#allocation6 + $0x20] sm:$0xff]
    %v2851 = vld [vmem:[#allocation6 + $0x28] sm:$0xff]
    %v2852 = vld [vmem:[#allocation6 + $0x30] sm:$0xff]
    %v2853 = vld [vmem:[#allocation6 + $0x38] sm:$0xff]
    %v2854 = vld [vmem:[#allocation6 + $0x40] sm:$0xff]
    %v2855 = vld [vmem:[#allocation6 + $0x48] sm:$0xff]
    %v2856 = vld [vmem:[#allocation6 + $0x50] sm:$0xff]
    %v2857 = vld [vmem:[#allocation6 + $0x58] sm:$0xff]
    %v2858 = vld [vmem:[#allocation6 + $0x60] sm:$0xff]
    %v2859 = vld [vmem:[#allocation6 + $0x68] sm:$0xff]
    %v2860 = vld [vmem:[#allocation6 + $0x70] sm:$0xff]
    %v2861 = vld [vmem:[#allocation6 + $0x78] sm:$0xff]
    %v2862 = vld [vmem:[#allocation6 + $0x80] sm:$0xff]
    %v2863 = vld [vmem:[#allocation6 + $0x88] sm:$0xff]
    %v2864 = vld [vmem:[#allocation6 + $0x90] sm:$0xff]
    %v2865 = vld [vmem:[#allocation6 + $0x98] sm:$0xff]
    %v2866 = vld [vmem:[#allocation6 + $0xa0] sm:$0xff]
    %v2867 = vld [vmem:[#allocation6 + $0xa8] sm:$0xff]
    %v2868 = vld [vmem:[#allocation6 + $0xb0] sm:$0xff]
    %v2869 = vld [vmem:[#allocation6 + $0xb8] sm:$0xff]
    %v2870 = vld [vmem:[#allocation6 + $0xc0] sm:$0xff]
    %v2871 = vld [vmem:[#allocation6 + $0xc8] sm:$0xff]
    %v2872 = vld [vmem:[#allocation6 + $0xd0] sm:$0xff]
    %v2873 = vld [vmem:[#allocation6 + $0xd8] sm:$0xff]
    %v2874 = vld [vmem:[#allocation6 + $0xe0] sm:$0xff]
    %v2875 = vld [vmem:[#allocation6 + $0xe8] sm:$0xff]
    %v2876 = vld [vmem:[#allocation6 + $0xf0] sm:$0xff]
    %v2877 = vld [vmem:[#allocation6 + $0xf8] sm:$0xff]
    %v2879 = vlaneseq
    %v2880 = vshrl.u32 %v2879, 7
    %v2881 = vsub.s32 0, %v2880
    %v2882 = vrot.slane %v2833, %v2881
    %v2883 = vlaneseq
    %v2884 = vshrl.u32 %v2883, 7
    %v2885 = vsub.s32 1, %v2884
    %v2886 = vrot.slane %v2833, %v2885
    %v2887 = vlaneseq
    %v2888 = vshrl.u32 %v2887, 7
    %v2889 = vsub.s32 2, %v2888
    %v2890 = vrot.slane %v2833, %v2889
    %v2891 = vlaneseq
    %v2892 = vshrl.u32 %v2891, 7
    %v2893 = vsub.s32 3, %v2892
    %v2894 = vrot.slane %v2833, %v2893
    %v2931 = vunpack.c.l.b16 %v2846
    %v2932 = vunpack.c.h.b16 %v2846
    %v2933 = vunpack.c.l.b16 %v2847
    %v2934 = vunpack.c.h.b16 %v2847
    %v2935 = vunpack.c.l.b16 %v2848
    %v2936 = vunpack.c.h.b16 %v2848
    %v2937 = vunpack.c.l.b16 %v2849
    %v2938 = vunpack.c.h.b16 %v2849
    %v2939 = vunpack.c.l.b16 %v2850
    %v2940 = vunpack.c.h.b16 %v2850
    %v2941 = vunpack.c.l.b16 %v2851
    %v2942 = vunpack.c.h.b16 %v2851
    %v2943 = vunpack.c.l.b16 %v2852
    %v2944 = vunpack.c.h.b16 %v2852
    %v2945 = vunpack.c.l.b16 %v2853
    %v2946 = vunpack.c.h.b16 %v2853
    %v2947 = vunpack.c.l.b16 %v2854
    %v2948 = vunpack.c.h.b16 %v2854
    %v2949 = vunpack.c.l.b16 %v2855
    %v2950 = vunpack.c.h.b16 %v2855
    %v2951 = vunpack.c.l.b16 %v2856
    %v2952 = vunpack.c.h.b16 %v2856
    %v2953 = vunpack.c.l.b16 %v2857
    %v2954 = vunpack.c.h.b16 %v2857
    %v2955 = vunpack.c.l.b16 %v2858
    %v2956 = vunpack.c.h.b16 %v2858
    %v2957 = vunpack.c.l.b16 %v2859
    %v2958 = vunpack.c.h.b16 %v2859
    %v2959 = vunpack.c.l.b16 %v2860
    %v2960 = vunpack.c.h.b16 %v2860
    %v2961 = vunpack.c.l.b16 %v2861
    %v2962 = vunpack.c.h.b16 %v2861
    %v2963 = vunpack.c.l.b16 %v2862
    %v2964 = vunpack.c.h.b16 %v2862
    %v2965 = vunpack.c.l.b16 %v2863
    %v2966 = vunpack.c.h.b16 %v2863
    %v2967 = vunpack.c.l.b16 %v2864
    %v2968 = vunpack.c.h.b16 %v2864
    %v2969 = vunpack.c.l.b16 %v2865
    %v2970 = vunpack.c.h.b16 %v2865
    %v2971 = vunpack.c.l.b16 %v2866
    %v2972 = vunpack.c.h.b16 %v2866
    %v2973 = vunpack.c.l.b16 %v2867
    %v2974 = vunpack.c.h.b16 %v2867
    %v2975 = vunpack.c.l.b16 %v2868
    %v2976 = vunpack.c.h.b16 %v2868
    %v2977 = vunpack.c.l.b16 %v2869
    %v2978 = vunpack.c.h.b16 %v2869
    %v2979 = vunpack.c.l.b16 %v2870
    %v2980 = vunpack.c.h.b16 %v2870
    %v2981 = vunpack.c.l.b16 %v2871
    %v2982 = vunpack.c.h.b16 %v2871
    %v2983 = vunpack.c.l.b16 %v2872
    %v2984 = vunpack.c.h.b16 %v2872
    %v2985 = vunpack.c.l.b16 %v2873
    %v2986 = vunpack.c.h.b16 %v2873
    %v2987 = vunpack.c.l.b16 %v2874
    %v2988 = vunpack.c.h.b16 %v2874
    %v2989 = vunpack.c.l.b16 %v2875
    %v2990 = vunpack.c.h.b16 %v2875
    %v2991 = vunpack.c.l.b16 %v2876
    %v2992 = vunpack.c.h.b16 %v2876
    %v2993 = vunpack.c.l.b16 %v2877
    %v2994 = vunpack.c.h.b16 %v2877
    %v2995 = vpack.c.b16 %v2935, %v2931
    %v2996 = vpack.c.b16 %v2936, %v2932
    %v2997 = vpack.c.b16 %v2937, %v2933
    %v2998 = vpack.c.b16 %v2938, %v2934
    %v2999 = vpack.c.b16 %v2943, %v2939
    %v3000 = vpack.c.b16 %v2944, %v2940
    %v3001 = vpack.c.b16 %v2945, %v2941
    %v3002 = vpack.c.b16 %v2946, %v2942
    %v3003 = vpack.c.b16 %v2951, %v2947
    %v3004 = vpack.c.b16 %v2952, %v2948
    %v3005 = vpack.c.b16 %v2953, %v2949
    %v3006 = vpack.c.b16 %v2954, %v2950
    %v3007 = vpack.c.b16 %v2959, %v2955
    %v3008 = vpack.c.b16 %v2960, %v2956
    %v3009 = vpack.c.b16 %v2961, %v2957
    %v3010 = vpack.c.b16 %v2962, %v2958
    %v3011 = vpack.c.b16 %v2967, %v2963
    %v3012 = vpack.c.b16 %v2968, %v2964
    %v3013 = vpack.c.b16 %v2969, %v2965
    %v3014 = vpack.c.b16 %v2970, %v2966
    %v3015 = vpack.c.b16 %v2975, %v2971
    %v3016 = vpack.c.b16 %v2976, %v2972
    %v3017 = vpack.c.b16 %v2977, %v2973
    %v3018 = vpack.c.b16 %v2978, %v2974
    %v3019 = vpack.c.b16 %v2983, %v2979
    %v3020 = vpack.c.b16 %v2984, %v2980
    %v3021 = vpack.c.b16 %v2985, %v2981
    %v3022 = vpack.c.b16 %v2986, %v2982
    %v3023 = vpack.c.b16 %v2991, %v2987
    %v3024 = vpack.c.b16 %v2992, %v2988
    %v3025 = vpack.c.b16 %v2993, %v2989
    %v3026 = vpack.c.b16 %v2994, %v2990
    %3059 = vmatprep.subr.bf16.mxu0 %v2996
    %3060 = vmatpush1.bf16.msra.mxu0 %v2995
    %3061 = vmatprep.subr.bf16.mxu0 %v3000
    %3062 = vmatpush1.bf16.msra.mxu0 %v2999
    %3063 = vmatprep.subr.bf16.mxu0 %v3004
    %3064 = vmatpush1.bf16.msra.mxu0 %v3003
    %3065 = vmatprep.subr.bf16.mxu0 %v3008
    %3066 = vmatpush1.bf16.msra.mxu0 %v3007
    %3067 = vmatprep.subr.bf16.mxu0 %v3012
    %3068 = vmatpush1.bf16.msra.mxu0 %v3011
    %3069 = vmatprep.subr.bf16.mxu0 %v3016
    %3070 = vmatpush1.bf16.msra.mxu0 %v3015
    %3071 = vmatprep.subr.bf16.mxu0 %v3020
    %3072 = vmatpush1.bf16.msra.mxu0 %v3019
    %3073 = vmatprep.subr.bf16.mxu0 %v3024
    %3074 = vmatpush1.bf16.msra.mxu0 %v3023
    %3075 = vmatprep.subr.bf16.mxu0 0
    %3076 = vmatpush1.bf16.msra.mxu0 0
    %3077 = vmatprep.subr.bf16.mxu0 0
    %3078 = vmatpush1.bf16.msra.mxu0 0
    %3079 = vmatprep.subr.bf16.mxu0 0
    %3080 = vmatpush1.bf16.msra.mxu0 0
    %3081 = vmatprep.subr.bf16.mxu0 0
    %3082 = vmatpush1.bf16.msra.mxu0 0
    %3083 = vmatprep.subr.bf16.mxu0 0
    %3084 = vmatpush1.bf16.msra.mxu0 0
    %3085 = vmatprep.subr.bf16.mxu0 0
    %3086 = vmatpush1.bf16.msra.mxu0 0
    %3087 = vmatprep.subr.bf16.mxu0 0
    %3088 = vmatpush1.bf16.msra.mxu0 0
    %3089 = vmatprep.subr.bf16.mxu0 0
    %3090 = vmatpush1.bf16.msra.mxu0 0
    %3091 = vmatprep.mubr.bf16.mxu0 0
    %3092 = vmatmul.mubr.bf16.gmra.mrb[0].mxu0 %v2842
    %v3093 = vpop.f32.mrb[0].mxu0
    %v3094 = vadd.f32 %v2882, %v3093
    %v3095 = vpop.f32.mrb[0].mxu0
    %v3096 = vadd.f32 %v2886, %v3095
    %v3097 = vpop.f32.mrb[0].mxu0
    %v3098 = vadd.f32 %v2882, %v3097
    %v3099 = vpop.f32.mrb[0].mxu0
    %v3100 = vadd.f32 %v2886, %v3099
    %3101 = vmatprep.mubr.bf16.mxu0 0
    %3102 = vmatmul.mubr.bf16.gmra.mrb[0].mxu0 %v2843
    %v3103 = vpop.f32.mrb[0].mxu0
    %v3104 = vadd.f32 %v2882, %v3103
    %v3105 = vpop.f32.mrb[0].mxu0
    %v3106 = vadd.f32 %v2886, %v3105
    %v3107 = vpop.f32.mrb[0].mxu0
    %v3108 = vadd.f32 %v2882, %v3107
    %v3109 = vpop.f32.mrb[0].mxu0
    %v3110 = vadd.f32 %v2886, %v3109
    %3111 = vmatprep.mubr.bf16.mxu0 0
    %3112 = vmatmul.mubr.bf16.gmra.mrb[0].mxu0 %v2844
    %v3113 = vpop.f32.mrb[0].mxu0
    %v3114 = vadd.f32 %v2882, %v3113
    %v3115 = vpop.f32.mrb[0].mxu0
    %v3116 = vadd.f32 %v2886, %v3115
    %v3117 = vpop.f32.mrb[0].mxu0
    %v3118 = vadd.f32 %v2882, %v3117
    %v3119 = vpop.f32.mrb[0].mxu0
    %v3120 = vadd.f32 %v2886, %v3119
    %3121 = vmatprep.mubr.bf16.mxu0 0
    %3122 = vmatmul.mubr.bf16.gmra.mrb[0].mxu0 %v2845
    %v3123 = vpop.f32.mrb[0].mxu0
    %v3124 = vadd.f32 %v2882, %v3123
    %v3125 = vpop.f32.mrb[0].mxu0
    %v3126 = vadd.f32 %v2886, %v3125
    %v3127 = vpop.f32.mrb[0].mxu0
    %v3128 = vadd.f32 %v2882, %v3127
    %v3129 = vpop.f32.mrb[0].mxu0
    %v3130 = vadd.f32 %v2886, %v3129
    %3131 = vdwg.mxu0
    %3132 = vmatprep.subr.bf16.mxu0 %v2998
    %3133 = vmatpush1.bf16.msra.mxu0 %v2997
    %3134 = vmatprep.subr.bf16.mxu0 %v3002
    %3135 = vmatpush1.bf16.msra.mxu0 %v3001
    %3136 = vmatprep.subr.bf16.mxu0 %v3006
    %3137 = vmatpush1.bf16.msra.mxu0 %v3005
    %3138 = vmatprep.subr.bf16.mxu0 %v3010
    %3139 = vmatpush1.bf16.msra.mxu0 %v3009
    %3140 = vmatprep.subr.bf16.mxu0 %v3014
    %3141 = vmatpush1.bf16.msra.mxu0 %v3013
    %3142 = vmatprep.subr.bf16.mxu0 %v3018
    %3143 = vmatpush1.bf16.msra.mxu0 %v3017
    %3144 = vmatprep.subr.bf16.mxu0 %v3022
    %3145 = vmatpush1.bf16.msra.mxu0 %v3021
    %3146 = vmatprep.subr.bf16.mxu0 %v3026
    %3147 = vmatpush1.bf16.msra.mxu0 %v3025
    %3148 = vmatprep.subr.bf16.mxu0 0
    %3149 = vmatpush1.bf16.msra.mxu0 0
    %3150 = vmatprep.subr.bf16.mxu0 0
    %3151 = vmatpush1.bf16.msra.mxu0 0
    %3152 = vmatprep.subr.bf16.mxu0 0
    %3153 = vmatpush1.bf16.msra.mxu0 0
    %3154 = vmatprep.subr.bf16.mxu0 0
    %3155 = vmatpush1.bf16.msra.mxu0 0
    %3156 = vmatprep.subr.bf16.mxu0 0
    %3157 = vmatpush1.bf16.msra.mxu0 0
    %3158 = vmatprep.subr.bf16.mxu0 0
    %3159 = vmatpush1.bf16.msra.mxu0 0
    %3160 = vmatprep.subr.bf16.mxu0 0
    %3161 = vmatpush1.bf16.msra.mxu0 0
    %3162 = vmatprep.subr.bf16.mxu0 0
    %3163 = vmatpush1.bf16.msra.mxu0 0
    %3164 = vmatprep.mubr.bf16.mxu0 0
    %3165 = vmatmul.mubr.bf16.gmra.mrb[0].mxu0 %v2842
    %v3166 = vpop.f32.mrb[0].mxu0
    %v3167 = vadd.f32 %v2890, %v3166
    %v3168 = vpop.f32.mrb[0].mxu0
    %v3169 = vadd.f32 %v2894, %v3168
    %v3170 = vpop.f32.mrb[0].mxu0
    %v3171 = vadd.f32 %v2890, %v3170
    %v3172 = vpop.f32.mrb[0].mxu0
    %v3173 = vadd.f32 %v2894, %v3172
    %3174 = vmatprep.mubr.bf16.mxu0 0
    %3175 = vmatmul.mubr.bf16.gmra.mrb[0].mxu0 %v2843
    %v3176 = vpop.f32.mrb[0].mxu0
    %v3177 = vadd.f32 %v2890, %v3176
    %v3178 = vpop.f32.mrb[0].mxu0
    %v3179 = vadd.f32 %v2894, %v3178
    %v3180 = vpop.f32.mrb[0].mxu0
    %v3181 = vadd.f32 %v2890, %v3180
    %v3182 = vpop.f32.mrb[0].mxu0
    %v3183 = vadd.f32 %v2894, %v3182
    %3184 = vmatprep.mubr.bf16.mxu0 0
    %3185 = vmatmul.mubr.bf16.gmra.mrb[0].mxu0 %v2844
    %v3186 = vpop.f32.mrb[0].mxu0
    %v3187 = vadd.f32 %v2890, %v3186
    %v3188 = vpop.f32.mrb[0].mxu0
    %v3189 = vadd.f32 %v2894, %v3188
    %v3190 = vpop.f32.mrb[0].mxu0
    %v3191 = vadd.f32 %v2890, %v3190
    %v3192 = vpop.f32.mrb[0].mxu0
    %v3193 = vadd.f32 %v2894, %v3192
    %3194 = vmatprep.mubr.bf16.mxu0 0
    %3195 = vmatmul.mubr.bf16.gmra.mrb[0].mxu0 %v2845
    %v3196 = vpop.f32.mrb[0].mxu0
    %v3197 = vadd.f32 %v2890, %v3196
    %v3198 = vpop.f32.mrb[0].mxu0
    %v3199 = vadd.f32 %v2894, %v3198
    %v3200 = vpop.f32.mrb[0].mxu0
    %v3201 = vadd.f32 %v2890, %v3200
    %v3202 = vpop.f32.mrb[0].mxu0
    %v3203 = vadd.f32 %v2894, %v3202
    %3204 = vdwg.mxu0
    %3205 = vst [vmem:[#allocation2] sm:$0xff] %v3094
    %3206 = vst [vmem:[#allocation2 + $0x8] sm:$0xff] %v3096
    %3207 = vst [vmem:[#allocation2 + $0x10] sm:$0xff] %v3167
    %3208 = vst [vmem:[#allocation2 + $0x18] sm:$0xff] %v3169
    %3209 = vst [vmem:[#allocation2 + $0x20] sm:$0xff] %v3098
    %3210 = vst [vmem:[#allocation2 + $0x28] sm:$0xff] %v3100
    %3211 = vst [vmem:[#allocation2 + $0x30] sm:$0xff] %v3171
    %3212 = vst [vmem:[#allocation2 + $0x38] sm:$0xff] %v3173
    %3213 = vst [vmem:[#allocation2 + $0x40] sm:$0xff] %v3104
    %3214 = vst [vmem:[#allocation2 + $0x48] sm:$0xff] %v3106
    %3215 = vst [vmem:[#allocation2 + $0x50] sm:$0xff] %v3177
    %3216 = vst [vmem:[#allocation2 + $0x58] sm:$0xff] %v3179
    %3217 = vst [vmem:[#allocation2 + $0x60] sm:$0xff] %v3108
    %3218 = vst [vmem:[#allocation2 + $0x68] sm:$0xff] %v3110
    %3219 = vst [vmem:[#allocation2 + $0x70] sm:$0xff] %v3181
    %3220 = vst [vmem:[#allocation2 + $0x78] sm:$0xff] %v3183
    %3221 = vst [vmem:[#allocation2 + $0x80] sm:$0xff] %v3114
    %3222 = vst [vmem:[#allocation2 + $0x88] sm:$0xff] %v3116
    %3223 = vst [vmem:[#allocation2 + $0x90] sm:$0xff] %v3187
    %3224 = vst [vmem:[#allocation2 + $0x98] sm:$0xff] %v3189
    %3225 = vst [vmem:[#allocation2 + $0xa0] sm:$0xff] %v3118
    %3226 = vst [vmem:[#allocation2 + $0xa8] sm:$0xff] %v3120
    %3227 = vst [vmem:[#allocation2 + $0xb0] sm:$0xff] %v3191
    %3228 = vst [vmem:[#allocation2 + $0xb8] sm:$0xff] %v3193
    %3229 = vst [vmem:[#allocation2 + $0xc0] sm:$0xff] %v3124
    %3230 = vst [vmem:[#allocation2 + $0xc8] sm:$0xff] %v3126
    %3231 = vst [vmem:[#allocation2 + $0xd0] sm:$0xff] %v3197
    %3232 = vst [vmem:[#allocation2 + $0xd8] sm:$0xff] %v3199
    %3233 = vst [vmem:[#allocation2 + $0xe0] sm:$0xff] %v3128
    %3234 = vst [vmem:[#allocation2 + $0xe8] sm:$0xff] %v3130
    %3235 = vst [vmem:[#allocation2 + $0xf0] sm:$0xff] %v3201
    %3236 = vst [vmem:[#allocation2 + $0xf8] sm:$0xff] %v3203
    %v3237 = vld [vmem:[%s341] sm:$0xff]
    %v3238 = vld [vmem:[%s341 + $0x8] sm:$0xff]
    %v3239 = vld [vmem:[%s341 + $0x10] sm:$0xff]
    %v3240 = vld [vmem:[%s341 + $0x18] sm:$0xff]
    %v3241 = vld [vmem:[#allocation8] sm:$0xff]
    %v3242 = vld [vmem:[#allocation8 + $0x8] sm:$0xff]
    %v3243 = vld [vmem:[#allocation8 + $0x10] sm:$0xff]
    %v3244 = vld [vmem:[#allocation8 + $0x18] sm:$0xff]
    %v3245 = vld [vmem:[#allocation8 + $0x20] sm:$0xff]
    %v3246 = vld [vmem:[#allocation8 + $0x28] sm:$0xff]
    %v3247 = vld [vmem:[#allocation8 + $0x30] sm:$0xff]
    %v3248 = vld [vmem:[#allocation8 + $0x38] sm:$0xff]
    %v3249 = vld [vmem:[#allocation8 + $0x40] sm:$0xff]
    %v3250 = vld [vmem:[#allocation8 + $0x48] sm:$0xff]
    %v3251 = vld [vmem:[#allocation8 + $0x50] sm:$0xff]
    %v3252 = vld [vmem:[#allocation8 + $0x58] sm:$0xff]
    %v3253 = vld [vmem:[#allocation8 + $0x60] sm:$0xff]
    %v3254 = vld [vmem:[#allocation8 + $0x68] sm:$0xff]
    %v3255 = vld [vmem:[#allocation8 + $0x70] sm:$0xff]
    %v3256 = vld [vmem:[#allocation8 + $0x78] sm:$0xff]
    %v3257 = vld [vmem:[#allocation8 + $0x80] sm:$0xff]
    %v3258 = vld [vmem:[#allocation8 + $0x88] sm:$0xff]
    %v3259 = vld [vmem:[#allocation8 + $0x90] sm:$0xff]
    %v3260 = vld [vmem:[#allocation8 + $0x98] sm:$0xff]
    %v3261 = vld [vmem:[#allocation8 + $0xa0] sm:$0xff]
    %v3262 = vld [vmem:[#allocation8 + $0xa8] sm:$0xff]
    %v3263 = vld [vmem:[#allocation8 + $0xb0] sm:$0xff]
    %v3264 = vld [vmem:[#allocation8 + $0xb8] sm:$0xff]
    %v3265 = vld [vmem:[#allocation8 + $0xc0] sm:$0xff]
    %v3266 = vld [vmem:[#allocation8 + $0xc8] sm:$0xff]
    %v3267 = vld [vmem:[#allocation8 + $0xd0] sm:$0xff]
    %v3268 = vld [vmem:[#allocation8 + $0xd8] sm:$0xff]
    %v3269 = vld [vmem:[#allocation8 + $0xe0] sm:$0xff]
    %v3270 = vld [vmem:[#allocation8 + $0xe8] sm:$0xff]
    %v3271 = vld [vmem:[#allocation8 + $0xf0] sm:$0xff]
    %v3272 = vld [vmem:[#allocation8 + $0xf8] sm:$0xff]
    %v3305 = vunpack.c.l.b16 %v3241
    %v3306 = vunpack.c.h.b16 %v3241
    %v3307 = vunpack.c.l.b16 %v3242
    %v3308 = vunpack.c.h.b16 %v3242
    %v3309 = vunpack.c.l.b16 %v3243
    %v3310 = vunpack.c.h.b16 %v3243
    %v3311 = vunpack.c.l.b16 %v3244
    %v3312 = vunpack.c.h.b16 %v3244
    %v3313 = vunpack.c.l.b16 %v3245
    %v3314 = vunpack.c.h.b16 %v3245
    %v3315 = vunpack.c.l.b16 %v3246
    %v3316 = vunpack.c.h.b16 %v3246
    %v3317 = vunpack.c.l.b16 %v3247
    %v3318 = vunpack.c.h.b16 %v3247
    %v3319 = vunpack.c.l.b16 %v3248
    %v3320 = vunpack.c.h.b16 %v3248
    %v3321 = vunpack.c.l.b16 %v3249
    %v3322 = vunpack.c.h.b16 %v3249
    %v3323 = vunpack.c.l.b16 %v3250
    %v3324 = vunpack.c.h.b16 %v3250
    %v3325 = vunpack.c.l.b16 %v3251
    %v3326 = vunpack.c.h.b16 %v3251
    %v3327 = vunpack.c.l.b16 %v3252
    %v3328 = vunpack.c.h.b16 %v3252
    %v3329 = vunpack.c.l.b16 %v3253
    %v3330 = vunpack.c.h.b16 %v3253
    %v3331 = vunpack.c.l.b16 %v3254
    %v3332 = vunpack.c.h.b16 %v3254
    %v3333 = vunpack.c.l.b16 %v3255
    %v3334 = vunpack.c.h.b16 %v3255
    %v3335 = vunpack.c.l.b16 %v3256
    %v3336 = vunpack.c.h.b16 %v3256
    %v3337 = vunpack.c.l.b16 %v3257
    %v3338 = vunpack.c.h.b16 %v3257
    %v3339 = vunpack.c.l.b16 %v3258
    %v3340 = vunpack.c.h.b16 %v3258
    %v3341 = vunpack.c.l.b16 %v3259
    %v3342 = vunpack.c.h.b16 %v3259
    %v3343 = vunpack.c.l.b16 %v3260
    %v3344 = vunpack.c.h.b16 %v3260
    %v3345 = vunpack.c.l.b16 %v3261
    %v3346 = vunpack.c.h.b16 %v3261
    %v3347 = vunpack.c.l.b16 %v3262
    %v3348 = vunpack.c.h.b16 %v3262
    %v3349 = vunpack.c.l.b16 %v3263
    %v3350 = vunpack.c.h.b16 %v3263
    %v3351 = vunpack.c.l.b16 %v3264
    %v3352 = vunpack.c.h.b16 %v3264
    %v3353 = vunpack.c.l.b16 %v3265
    %v3354 = vunpack.c.h.b16 %v3265
    %v3355 = vunpack.c.l.b16 %v3266
    %v3356 = vunpack.c.h.b16 %v3266
    %v3357 = vunpack.c.l.b16 %v3267
    %v3358 = vunpack.c.h.b16 %v3267
    %v3359 = vunpack.c.l.b16 %v3268
    %v3360 = vunpack.c.h.b16 %v3268
    %v3361 = vunpack.c.l.b16 %v3269
    %v3362 = vunpack.c.h.b16 %v3269
    %v3363 = vunpack.c.l.b16 %v3270
    %v3364 = vunpack.c.h.b16 %v3270
    %v3365 = vunpack.c.l.b16 %v3271
    %v3366 = vunpack.c.h.b16 %v3271
    %v3367 = vunpack.c.l.b16 %v3272
    %v3368 = vunpack.c.h.b16 %v3272
    %v3369 = vpack.c.b16 %v3309, %v3305
    %v3370 = vpack.c.b16 %v3310, %v3306
    %v3371 = vpack.c.b16 %v3311, %v3307
    %v3372 = vpack.c.b16 %v3312, %v3308
    %v3373 = vpack.c.b16 %v3317, %v3313
    %v3374 = vpack.c.b16 %v3318, %v3314
    %v3375 = vpack.c.b16 %v3319, %v3315
    %v3376 = vpack.c.b16 %v3320, %v3316
    %v3377 = vpack.c.b16 %v3325, %v3321
    %v3378 = vpack.c.b16 %v3326, %v3322
    %v3379 = vpack.c.b16 %v3327, %v3323
    %v3380 = vpack.c.b16 %v3328, %v3324
    %v3381 = vpack.c.b16 %v3333, %v3329
    %v3382 = vpack.c.b16 %v3334, %v3330
    %v3383 = vpack.c.b16 %v3335, %v3331
    %v3384 = vpack.c.b16 %v3336, %v3332
    %v3385 = vpack.c.b16 %v3341, %v3337
    %v3386 = vpack.c.b16 %v3342, %v3338
    %v3387 = vpack.c.b16 %v3343, %v3339
    %v3388 = vpack.c.b16 %v3344, %v3340
    %v3389 = vpack.c.b16 %v3349, %v3345
    %v3390 = vpack.c.b16 %v3350, %v3346
    %v3391 = vpack.c.b16 %v3351, %v3347
    %v3392 = vpack.c.b16 %v3352, %v3348
    %v3393 = vpack.c.b16 %v3357, %v3353
    %v3394 = vpack.c.b16 %v3358, %v3354
    %v3395 = vpack.c.b16 %v3359, %v3355
    %v3396 = vpack.c.b16 %v3360, %v3356
    %v3397 = vpack.c.b16 %v3365, %v3361
    %v3398 = vpack.c.b16 %v3366, %v3362
    %v3399 = vpack.c.b16 %v3367, %v3363
    %v3400 = vpack.c.b16 %v3368, %v3364
    %3433 = vmatprep.subr.bf16.mxu0 %v3370
    %3434 = vmatpush1.bf16.msra.mxu0 %v3369
    %3435 = vmatprep.subr.bf16.mxu0 %v3374
    %3436 = vmatpush1.bf16.msra.mxu0 %v3373
    %3437 = vmatprep.subr.bf16.mxu0 %v3378
    %3438 = vmatpush1.bf16.msra.mxu0 %v3377
    %3439 = vmatprep.subr.bf16.mxu0 %v3382
    %3440 = vmatpush1.bf16.msra.mxu0 %v3381
    %3441 = vmatprep.subr.bf16.mxu0 %v3386
    %3442 = vmatpush1.bf16.msra.mxu0 %v3385
    %3443 = vmatprep.subr.bf16.mxu0 %v3390
    %3444 = vmatpush1.bf16.msra.mxu0 %v3389
    %3445 = vmatprep.subr.bf16.mxu0 %v3394
    %3446 = vmatpush1.bf16.msra.mxu0 %v3393
    %3447 = vmatprep.subr.bf16.mxu0 %v3398
    %3448 = vmatpush1.bf16.msra.mxu0 %v3397
    %3449 = vmatprep.subr.bf16.mxu0 0
    %3450 = vmatpush1.bf16.msra.mxu0 0
    %3451 = vmatprep.subr.bf16.mxu0 0
    %3452 = vmatpush1.bf16.msra.mxu0 0
    %3453 = vmatprep.subr.bf16.mxu0 0
    %3454 = vmatpush1.bf16.msra.mxu0 0
    %3455 = vmatprep.subr.bf16.mxu0 0
    %3456 = vmatpush1.bf16.msra.mxu0 0
    %3457 = vmatprep.subr.bf16.mxu0 0
    %3458 = vmatpush1.bf16.msra.mxu0 0
    %3459 = vmatprep.subr.bf16.mxu0 0
    %3460 = vmatpush1.bf16.msra.mxu0 0
    %3461 = vmatprep.subr.bf16.mxu0 0
    %3462 = vmatpush1.bf16.msra.mxu0 0
    %3463 = vmatprep.subr.bf16.mxu0 0
    %3464 = vmatpush1.bf16.msra.mxu0 0
    %3465 = vmatprep.mubr.bf16.mxu0 0
    %3466 = vmatmul.mubr.bf16.gmra.mrb[0].mxu0 0
    %v3467 = vpop.f32.mrb[0].mxu0
    %v3468 = vadd.f32 0.0, %v3467
    %v3469 = vpop.f32.mrb[0].mxu0
    %v3470 = vadd.f32 0.0, %v3469
    %v3471 = vpop.f32.mrb[0].mxu0
    %v3472 = vpop.f32.mrb[0].mxu0
    %3473 = vdwg.mxu0
    %3474 = vmatprep.subr.bf16.mxu0 %v3372
    %3475 = vmatpush1.bf16.msra.mxu0 %v3371
    %3476 = vmatprep.subr.bf16.mxu0 %v3376
    %3477 = vmatpush1.bf16.msra.mxu0 %v3375
    %3478 = vmatprep.subr.bf16.mxu0 %v3380
    %3479 = vmatpush1.bf16.msra.mxu0 %v3379
    %3480 = vmatprep.subr.bf16.mxu0 %v3384
    %3481 = vmatpush1.bf16.msra.mxu0 %v3383
    %3482 = vmatprep.subr.bf16.mxu0 %v3388
    %3483 = vmatpush1.bf16.msra.mxu0 %v3387
    %3484 = vmatprep.subr.bf16.mxu0 %v3392
    %3485 = vmatpush1.bf16.msra.mxu0 %v3391
    %3486 = vmatprep.subr.bf16.mxu0 %v3396
    %3487 = vmatpush1.bf16.msra.mxu0 %v3395
    %3488 = vmatprep.subr.bf16.mxu0 %v3400
    %3489 = vmatpush1.bf16.msra.mxu0 %v3399
    %3490 = vmatprep.subr.bf16.mxu0 0
    %3491 = vmatpush1.bf16.msra.mxu0 0
    %3492 = vmatprep.subr.bf16.mxu0 0
    %3493 = vmatpush1.bf16.msra.mxu0 0
    %3494 = vmatprep.subr.bf16.mxu0 0
    %3495 = vmatpush1.bf16.msra.mxu0 0
    %3496 = vmatprep.subr.bf16.mxu0 0
    %3497 = vmatpush1.bf16.msra.mxu0 0
    %3498 = vmatprep.subr.bf16.mxu0 0
    %3499 = vmatpush1.bf16.msra.mxu0 0
    %3500 = vmatprep.subr.bf16.mxu0 0
    %3501 = vmatpush1.bf16.msra.mxu0 0
    %3502 = vmatprep.subr.bf16.mxu0 0
    %3503 = vmatpush1.bf16.msra.mxu0 0
    %3504 = vmatprep.subr.bf16.mxu0 0
    %3505 = vmatpush1.bf16.msra.mxu0 0
    %3506 = vmatprep.mubr.bf16.mxu0 0
    %3507 = vmatmul.mubr.bf16.gmra.mrb[0].mxu0 0
    %v3508 = vpop.f32.mrb[0].mxu0
    %v3509 = vadd.f32 0.0, %v3508
    %v3510 = vpop.f32.mrb[0].mxu0
    %v3511 = vadd.f32 0.0, %v3510
    %v3512 = vpop.f32.mrb[0].mxu0
    %v3513 = vpop.f32.mrb[0].mxu0
    %3514 = vdwg.mxu0
    %v3515 = vadd.f32 %v3237, %v3468
    %v3516 = vadd.f32 %v3238, %v3470
    %v3517 = vadd.f32 %v3239, %v3509
    %v3518 = vadd.f32 %v3240, %v3511
    %v3519 = vxor.u32 %v3515, 2147483648
    %v3520 = vxor.u32 %v3516, 2147483648
    %v3521 = vxor.u32 %v3517, 2147483648
    %v3522 = vmul.f32 %v3519, 1.442695
    %v3523 = vpow.pop %v3522
    %v3524 = vmul.f32 %v3520, 1.442695
    %v3525 = vpow.pop %v3524
    %v3526 = vmul.f32 %v3521, 1.442695
    %v3527 = vpow.pop %v3526
    %v3528 = vadd.f32 %v3523, 1.0
    %v3529 = vadd.f32 %v3525, 1.0
    %v3530 = vadd.f32 %v3527, 1.0
    %v3531 = vrcp.pop %v3528
    %v3532 = vmul.f32 1.0, %v3531
    %v3533 = vrcp.pop %v3529
    %v3534 = vmul.f32 1.0, %v3533
    %v3535 = vrcp.pop %v3530
    %v3536 = vmul.f32 1.0, %v3535
    %v3537 = vtanh.pop %v3518
    %v3538 = vmul.f32 %v3534, 0.0
    %v3539 = vmul.f32 %v3532, %v3537
    %v3540 = vadd.f32 %v3538, %v3539
    %v3541 = vtanh.pop %v3540
    %v3542 = vmul.f32 %v3536, %v3541
    %v3543 = vld [vmem:[%s651] sm:$0xff]
    %v3544 = vld [vmem:[%s651 + $0x8] sm:$0xff]
    %v3545 = vld [vmem:[%s651 + $0x10] sm:$0xff]
    %v3546 = vld [vmem:[%s651 + $0x18] sm:$0xff]
    %v3547 = vpack.c.bf16 %v3542, %v3542
    %3548 = vmatprep.subr.bf16.mxu0 %v3370
    %3549 = vmatpush1.bf16.msra.mxu0 %v3369
    %3550 = vmatprep.subr.bf16.mxu0 %v3374
    %3551 = vmatpush1.bf16.msra.mxu0 %v3373
    %3552 = vmatprep.subr.bf16.mxu0 %v3378
    %3553 = vmatpush1.bf16.msra.mxu0 %v3377
    %3554 = vmatprep.subr.bf16.mxu0 %v3382
    %3555 = vmatpush1.bf16.msra.mxu0 %v3381
    %3556 = vmatprep.subr.bf16.mxu0 %v3386
    %3557 = vmatpush1.bf16.msra.mxu0 %v3385
    %3558 = vmatprep.subr.bf16.mxu0 %v3390
    %3559 = vmatpush1.bf16.msra.mxu0 %v3389
    %3560 = vmatprep.subr.bf16.mxu0 %v3394
    %3561 = vmatpush1.bf16.msra.mxu0 %v3393
    %3562 = vmatprep.subr.bf16.mxu0 %v3398
    %3563 = vmatpush1.bf16.msra.mxu0 %v3397
    %3564 = vmatprep.subr.bf16.mxu0 0
    %3565 = vmatpush1.bf16.msra.mxu0 0
    %3566 = vmatprep.subr.bf16.mxu0 0
    %3567 = vmatpush1.bf16.msra.mxu0 0
    %3568 = vmatprep.subr.bf16.mxu0 0
    %3569 = vmatpush1.bf16.msra.mxu0 0
    %3570 = vmatprep.subr.bf16.mxu0 0
    %3571 = vmatpush1.bf16.msra.mxu0 0
    %3572 = vmatprep.subr.bf16.mxu0 0
    %3573 = vmatpush1.bf16.msra.mxu0 0
    %3574 = vmatprep.subr.bf16.mxu0 0
    %3575 = vmatpush1.bf16.msra.mxu0 0
    %3576 = vmatprep.subr.bf16.mxu0 0
    %3577 = vmatpush1.bf16.msra.mxu0 0
    %3578 = vmatprep.subr.bf16.mxu0 0
    %3579 = vmatpush1.bf16.msra.mxu0 0
    %3580 = vmatprep.mubr.bf16.mxu0 0
    %3581 = vmatmul.mubr.bf16.gmra.mrb[0].mxu0 %v3547
    %v3582 = vpop.f32.mrb[0].mxu0
    %v3583 = vadd.f32 0.0, %v3582
    %v3584 = vpop.f32.mrb[0].mxu0
    %v3585 = vadd.f32 0.0, %v3584
    %v3586 = vpop.f32.mrb[0].mxu0
    %v3587 = vpop.f32.mrb[0].mxu0
    %3588 = vdwg.mxu0
    %3589 = vmatprep.subr.bf16.mxu0 %v3372
    %3590 = vmatpush1.bf16.msra.mxu0 %v3371
    %3591 = vmatprep.subr.bf16.mxu0 %v3376
    %3592 = vmatpush1.bf16.msra.mxu0 %v3375
    %3593 = vmatprep.subr.bf16.mxu0 %v3380
    %3594 = vmatpush1.bf16.msra.mxu0 %v3379
    %3595 = vmatprep.subr.bf16.mxu0 %v3384
    %3596 = vmatpush1.bf16.msra.mxu0 %v3383
    %3597 = vmatprep.subr.bf16.mxu0 %v3388
    %3598 = vmatpush1.bf16.msra.mxu0 %v3387
    %3599 = vmatprep.subr.bf16.mxu0 %v3392
    %3600 = vmatpush1.bf16.msra.mxu0 %v3391
    %3601 = vmatprep.subr.bf16.mxu0 %v3396
    %3602 = vmatpush1.bf16.msra.mxu0 %v3395
    %3603 = vmatprep.subr.bf16.mxu0 %v3400
    %3604 = vmatpush1.bf16.msra.mxu0 %v3399
    %3605 = vmatprep.subr.bf16.mxu0 0
    %3606 = vmatpush1.bf16.msra.mxu0 0
    %3607 = vmatprep.subr.bf16.mxu0 0
    %3608 = vmatpush1.bf16.msra.mxu0 0
    %3609 = vmatprep.subr.bf16.mxu0 0
    %3610 = vmatpush1.bf16.msra.mxu0 0
    %3611 = vmatprep.subr.bf16.mxu0 0
    %3612 = vmatpush1.bf16.msra.mxu0 0
    %3613 = vmatprep.subr.bf16.mxu0 0
    %3614 = vmatpush1.bf16.msra.mxu0 0
    %3615 = vmatprep.subr.bf16.mxu0 0
    %3616 = vmatpush1.bf16.msra.mxu0 0
    %3617 = vmatprep.subr.bf16.mxu0 0
    %3618 = vmatpush1.bf16.msra.mxu0 0
    %3619 = vmatprep.subr.bf16.mxu0 0
    %3620 = vmatpush1.bf16.msra.mxu0 0
    %3621 = vmatprep.mubr.bf16.mxu0 0
    %3622 = vmatmul.mubr.bf16.gmra.mrb[0].mxu0 %v3547
    %v3623 = vpop.f32.mrb[0].mxu0
    %v3624 = vadd.f32 0.0, %v3623
    %v3625 = vpop.f32.mrb[0].mxu0
    %v3626 = vadd.f32 0.0, %v3625
    %v3627 = vpop.f32.mrb[0].mxu0
    %v3628 = vpop.f32.mrb[0].mxu0
    %3629 = vdwg.mxu0
    %v3630 = vadd.f32 %v3543, %v3583
    %v3631 = vadd.f32 %v3544, %v3585
    %v3632 = vadd.f32 %v3545, %v3624
    %v3633 = vadd.f32 %v3546, %v3626
    %v3634 = vxor.u32 %v3630, 2147483648
    %v3635 = vxor.u32 %v3631, 2147483648
    %v3636 = vxor.u32 %v3632, 2147483648
    %v3637 = vmul.f32 %v3634, 1.442695
    %v3638 = vpow.pop %v3637
    %v3639 = vmul.f32 %v3635, 1.442695
    %v3640 = vpow.pop %v3639
    %v3641 = vmul.f32 %v3636, 1.442695
    %v3642 = vpow.pop %v3641
    %v3643 = vadd.f32 %v3638, 1.0
    %v3644 = vadd.f32 %v3640, 1.0
    %v3645 = vadd.f32 %v3642, 1.0
    %v3646 = vrcp.pop %v3643
    %v3647 = vmul.f32 1.0, %v3646
    %v3648 = vrcp.pop %v3644
    %v3649 = vmul.f32 1.0, %v3648
    %v3650 = vrcp.pop %v3645
    %v3651 = vmul.f32 1.0, %v3650
    %v3652 = vtanh.pop %v3633
    %v3653 = vmul.f32 %v3649, %v3540
    %v3654 = vmul.f32 %v3647, %v3652
    %v3655 = vadd.f32 %v3653, %v3654
    %v3656 = vtanh.pop %v3655
    %v3657 = vmul.f32 %v3651, %v3656
    %v3658 = vld [vmem:[%s963] sm:$0xff]
    %v3659 = vld [vmem:[%s963 + $0x8] sm:$0xff]
    %v3660 = vld [vmem:[%s963 + $0x10] sm:$0xff]
    %v3661 = vld [vmem:[%s963 + $0x18] sm:$0xff]
    %v3662 = vpack.c.bf16 %v3657, %v3657
    %3663 = vmatprep.subr.bf16.mxu0 %v3370
    %3664 = vmatpush1.bf16.msra.mxu0 %v3369
    %3665 = vmatprep.subr.bf16.mxu0 %v3374
    %3666 = vmatpush1.bf16.msra.mxu0 %v3373
    %3667 = vmatprep.subr.bf16.mxu0 %v3378
    %3668 = vmatpush1.bf16.msra.mxu0 %v3377
    %3669 = vmatprep.subr.bf16.mxu0 %v3382
    %3670 = vmatpush1.bf16.msra.mxu0 %v3381
    %3671 = vmatprep.subr.bf16.mxu0 %v3386
    %3672 = vmatpush1.bf16.msra.mxu0 %v3385
    %3673 = vmatprep.subr.bf16.mxu0 %v3390
    %3674 = vmatpush1.bf16.msra.mxu0 %v3389
    %3675 = vmatprep.subr.bf16.mxu0 %v3394
    %3676 = vmatpush1.bf16.msra.mxu0 %v3393
    %3677 = vmatprep.subr.bf16.mxu0 %v3398
    %3678 = vmatpush1.bf16.msra.mxu0 %v3397
    %3679 = vmatprep.subr.bf16.mxu0 0
    %3680 = vmatpush1.bf16.msra.mxu0 0
    %3681 = vmatprep.subr.bf16.mxu0 0
    %3682 = vmatpush1.bf16.msra.mxu0 0
    %3683 = vmatprep.subr.bf16.mxu0 0
    %3684 = vmatpush1.bf16.msra.mxu0 0
    %3685 = vmatprep.subr.bf16.mxu0 0
    %3686 = vmatpush1.bf16.msra.mxu0 0
    %3687 = vmatprep.subr.bf16.mxu0 0
    %3688 = vmatpush1.bf16.msra.mxu0 0
    %3689 = vmatprep.subr.bf16.mxu0 0
    %3690 = vmatpush1.bf16.msra.mxu0 0
    %3691 = vmatprep.subr.bf16.mxu0 0
    %3692 = vmatpush1.bf16.msra.mxu0 0
    %3693 = vmatprep.subr.bf16.mxu0 0
    %3694 = vmatpush1.bf16.msra.mxu0 0
    %3695 = vmatprep.mubr.bf16.mxu0 0
    %3696 = vmatmul.mubr.bf16.gmra.mrb[0].mxu0 %v3662
    %v3697 = vpop.f32.mrb[0].mxu0
    %v3698 = vadd.f32 0.0, %v3697
    %v3699 = vpop.f32.mrb[0].mxu0
    %v3700 = vadd.f32 0.0, %v3699
    %v3701 = vpop.f32.mrb[0].mxu0
    %v3702 = vpop.f32.mrb[0].mxu0
    %3703 = vdwg.mxu0
    %3704 = vmatprep.subr.bf16.mxu0 %v3372
    %3705 = vmatpush1.bf16.msra.mxu0 %v3371
    %3706 = vmatprep.subr.bf16.mxu0 %v3376
    %3707 = vmatpush1.bf16.msra.mxu0 %v3375
    %3708 = vmatprep.subr.bf16.mxu0 %v3380
    %3709 = vmatpush1.bf16.msra.mxu0 %v3379
    %3710 = vmatprep.subr.bf16.mxu0 %v3384
    %3711 = vmatpush1.bf16.msra.mxu0 %v3383
    %3712 = vmatprep.subr.bf16.mxu0 %v3388
    %3713 = vmatpush1.bf16.msra.mxu0 %v3387
    %3714 = vmatprep.subr.bf16.mxu0 %v3392
    %3715 = vmatpush1.bf16.msra.mxu0 %v3391
    %3716 = vmatprep.subr.bf16.mxu0 %v3396
    %3717 = vmatpush1.bf16.msra.mxu0 %v3395
    %3718 = vmatprep.subr.bf16.mxu0 %v3400
    %3719 = vmatpush1.bf16.msra.mxu0 %v3399
    %3720 = vmatprep.subr.bf16.mxu0 0
    %3721 = vmatpush1.bf16.msra.mxu0 0
    %3722 = vmatprep.subr.bf16.mxu0 0
    %3723 = vmatpush1.bf16.msra.mxu0 0
    %3724 = vmatprep.subr.bf16.mxu0 0
    %3725 = vmatpush1.bf16.msra.mxu0 0
    %3726 = vmatprep.subr.bf16.mxu0 0
    %3727 = vmatpush1.bf16.msra.mxu0 0
    %3728 = vmatprep.subr.bf16.mxu0 0
    %3729 = vmatpush1.bf16.msra.mxu0 0
    %3730 = vmatprep.subr.bf16.mxu0 0
    %3731 = vmatpush1.bf16.msra.mxu0 0
    %3732 = vmatprep.subr.bf16.mxu0 0
    %3733 = vmatpush1.bf16.msra.mxu0 0
    %3734 = vmatprep.subr.bf16.mxu0 0
    %3735 = vmatpush1.bf16.msra.mxu0 0
    %3736 = vmatprep.mubr.bf16.mxu0 0
    %3737 = vmatmul.mubr.bf16.gmra.mrb[0].mxu0 %v3662
    %v3738 = vpop.f32.mrb[0].mxu0
    %v3739 = vadd.f32 0.0, %v3738
    %v3740 = vpop.f32.mrb[0].mxu0
    %v3741 = vadd.f32 0.0, %v3740
    %v3742 = vpop.f32.mrb[0].mxu0
    %v3743 = vpop.f32.mrb[0].mxu0
    %3744 = vdwg.mxu0
    %v3745 = vadd.f32 %v3658, %v3698
    %v3746 = vadd.f32 %v3659, %v3700
    %v3747 = vadd.f32 %v3660, %v3739
    %v3748 = vadd.f32 %v3661, %v3741
    %v3749 = vxor.u32 %v3745, 2147483648
    %v3750 = vxor.u32 %v3746, 2147483648
    %v3751 = vxor.u32 %v3747, 2147483648
    %v3752 = vmul.f32 %v3749, 1.442695
    %v3753 = vpow.pop %v3752
    %v3754 = vmul.f32 %v3750, 1.442695
    %v3755 = vpow.pop %v3754
    %v3756 = vmul.f32 %v3751, 1.442695
    %v3757 = vpow.pop %v3756
    %v3758 = vadd.f32 %v3753, 1.0
    %v3759 = vadd.f32 %v3755, 1.0
    %v3760 = vadd.f32 %v3757, 1.0
    %v3761 = vrcp.pop %v3758
    %v3762 = vmul.f32 1.0, %v3761
    %v3763 = vrcp.pop %v3759
    %v3764 = vmul.f32 1.0, %v3763
    %v3765 = vrcp.pop %v3760
    %v3766 = vmul.f32 1.0, %v3765
    %v3767 = vtanh.pop %v3748
    %v3768 = vmul.f32 %v3764, %v3655
    %v3769 = vmul.f32 %v3762, %v3767
    %v3770 = vadd.f32 %v3768, %v3769
    %v3771 = vtanh.pop %v3770
    %v3772 = vmul.f32 %v3766, %v3771
    %v3773 = vld [vmem:[%s1275] sm:$0xff]
    %v3774 = vld [vmem:[%s1275 + $0x8] sm:$0xff]
    %v3775 = vld [vmem:[%s1275 + $0x10] sm:$0xff]
    %v3776 = vld [vmem:[%s1275 + $0x18] sm:$0xff]
    %v3777 = vpack.c.bf16 %v3772, %v3772
    %3778 = vmatprep.subr.bf16.mxu0 %v3370
    %3779 = vmatpush1.bf16.msra.mxu0 %v3369
    %3780 = vmatprep.subr.bf16.mxu0 %v3374
    %3781 = vmatpush1.bf16.msra.mxu0 %v3373
    %3782 = vmatprep.subr.bf16.mxu0 %v3378
    %3783 = vmatpush1.bf16.msra.mxu0 %v3377
    %3784 = vmatprep.subr.bf16.mxu0 %v3382
    %3785 = vmatpush1.bf16.msra.mxu0 %v3381
    %3786 = vmatprep.subr.bf16.mxu0 %v3386
    %3787 = vmatpush1.bf16.msra.mxu0 %v3385
    %3788 = vmatprep.subr.bf16.mxu0 %v3390
    %3789 = vmatpush1.bf16.msra.mxu0 %v3389
    %3790 = vmatprep.subr.bf16.mxu0 %v3394
    %3791 = vmatpush1.bf16.msra.mxu0 %v3393
    %3792 = vmatprep.subr.bf16.mxu0 %v3398
    %3793 = vmatpush1.bf16.msra.mxu0 %v3397
    %3794 = vmatprep.subr.bf16.mxu0 0
    %3795 = vmatpush1.bf16.msra.mxu0 0
    %3796 = vmatprep.subr.bf16.mxu0 0
    %3797 = vmatpush1.bf16.msra.mxu0 0
    %3798 = vmatprep.subr.bf16.mxu0 0
    %3799 = vmatpush1.bf16.msra.mxu0 0
    %3800 = vmatprep.subr.bf16.mxu0 0
    %3801 = vmatpush1.bf16.msra.mxu0 0
    %3802 = vmatprep.subr.bf16.mxu0 0
    %3803 = vmatpush1.bf16.msra.mxu0 0
    %3804 = vmatprep.subr.bf16.mxu0 0
    %3805 = vmatpush1.bf16.msra.mxu0 0
    %3806 = vmatprep.subr.bf16.mxu0 0
    %3807 = vmatpush1.bf16.msra.mxu0 0
    %3808 = vmatprep.subr.bf16.mxu0 0
    %3809 = vmatpush1.bf16.msra.mxu0 0
    %3810 = vmatprep.mubr.bf16.mxu0 0
    %3811 = vmatmul.mubr.bf16.gmra.mrb[0].mxu0 %v3777
    %v3812 = vpop.f32.mrb[0].mxu0
    %v3813 = vadd.f32 0.0, %v3812
    %v3814 = vpop.f32.mrb[0].mxu0
    %v3815 = vadd.f32 0.0, %v3814
    %v3816 = vpop.f32.mrb[0].mxu0
    %v3817 = vpop.f32.mrb[0].mxu0
    %3818 = vdwg.mxu0
    %3819 = vmatprep.subr.bf16.mxu0 %v3372
    %3820 = vmatpush1.bf16.msra.mxu0 %v3371
    %3821 = vmatprep.subr.bf16.mxu0 %v3376
    %3822 = vmatpush1.bf16.msra.mxu0 %v3375
    %3823 = vmatprep.subr.bf16.mxu0 %v3380
    %3824 = vmatpush1.bf16.msra.mxu0 %v3379
    %3825 = vmatprep.subr.bf16.mxu0 %v3384
    %3826 = vmatpush1.bf16.msra.mxu0 %v3383
    %3827 = vmatprep.subr.bf16.mxu0 %v3388
    %3828 = vmatpush1.bf16.msra.mxu0 %v3387
    %3829 = vmatprep.subr.bf16.mxu0 %v3392
    %3830 = vmatpush1.bf16.msra.mxu0 %v3391
    %3831 = vmatprep.subr.bf16.mxu0 %v3396
    %3832 = vmatpush1.bf16.msra.mxu0 %v3395
    %3833 = vmatprep.subr.bf16.mxu0 %v3400
    %3834 = vmatpush1.bf16.msra.mxu0 %v3399
    %3835 = vmatprep.subr.bf16.mxu0 0
    %3836 = vmatpush1.bf16.msra.mxu0 0
    %3837 = vmatprep.subr.bf16.mxu0 0
    %3838 = vmatpush1.bf16.msra.mxu0 0
    %3839 = vmatprep.subr.bf16.mxu0 0
    %3840 = vmatpush1.bf16.msra.mxu0 0
    %3841 = vmatprep.subr.bf16.mxu0 0
    %3842 = vmatpush1.bf16.msra.mxu0 0
    %3843 = vmatprep.subr.bf16.mxu0 0
    %3844 = vmatpush1.bf16.msra.mxu0 0
    %3845 = vmatprep.subr.bf16.mxu0 0
    %3846 = vmatpush1.bf16.msra.mxu0 0
    %3847 = vmatprep.subr.bf16.mxu0 0
    %3848 = vmatpush1.bf16.msra.mxu0 0
    %3849 = vmatprep.subr.bf16.mxu0 0
    %3850 = vmatpush1.bf16.msra.mxu0 0
    %3851 = vmatprep.mubr.bf16.mxu0 0
    %3852 = vmatmul.mubr.bf16.gmra.mrb[0].mxu0 %v3777
    %v3853 = vpop.f32.mrb[0].mxu0
    %v3854 = vadd.f32 0.0, %v3853
    %v3855 = vpop.f32.mrb[0].mxu0
    %v3856 = vadd.f32 0.0, %v3855
    %v3857 = vpop.f32.mrb[0].mxu0
    %v3858 = vpop.f32.mrb[0].mxu0
    %3859 = vdwg.mxu0
    %v3860 = vadd.f32 %v3773, %v3813
    %v3861 = vadd.f32 %v3774, %v3815
    %v3862 = vadd.f32 %v3775, %v3854
    %v3863 = vadd.f32 %v3776, %v3856
    %v3864 = vxor.u32 %v3860, 2147483648
    %v3865 = vxor.u32 %v3861, 2147483648
    %v3866 = vxor.u32 %v3862, 2147483648
    %v3867 = vmul.f32 %v3864, 1.442695
    %v3868 = vpow.pop %v3867
    %v3869 = vmul.f32 %v3865, 1.442695
    %v3870 = vpow.pop %v3869
    %v3871 = vmul.f32 %v3866, 1.442695
    %v3872 = vpow.pop %v3871
    %v3873 = vadd.f32 %v3868, 1.0
    %v3874 = vadd.f32 %v3870, 1.0
    %v3875 = vadd.f32 %v3872, 1.0
    %v3876 = vrcp.pop %v3873
    %v3877 = vmul.f32 1.0, %v3876
    %v3878 = vrcp.pop %v3874
    %v3879 = vmul.f32 1.0, %v3878
    %v3880 = vrcp.pop %v3875
    %v3881 = vmul.f32 1.0, %v3880
    %v3882 = vtanh.pop %v3863
    %v3883 = vmul.f32 %v3879, %v3770
    %v3884 = vmul.f32 %v3877, %v3882
    %v3885 = vadd.f32 %v3883, %v3884
    %v3886 = vtanh.pop %v3885
    %v3887 = vmul.f32 %v3881, %v3886
    %v3888 = vld [vmem:[%s1587] sm:$0xff]
    %v3889 = vld [vmem:[%s1587 + $0x8] sm:$0xff]
    %v3890 = vld [vmem:[%s1587 + $0x10] sm:$0xff]
    %v3891 = vld [vmem:[%s1587 + $0x18] sm:$0xff]
    %v3892 = vpack.c.bf16 %v3887, %v3887
    %3893 = vmatprep.subr.bf16.mxu0 %v3370
    %3894 = vmatpush1.bf16.msra.mxu0 %v3369
    %3895 = vmatprep.subr.bf16.mxu0 %v3374
    %3896 = vmatpush1.bf16.msra.mxu0 %v3373
    %3897 = vmatprep.subr.bf16.mxu0 %v3378
    %3898 = vmatpush1.bf16.msra.mxu0 %v3377
    %3899 = vmatprep.subr.bf16.mxu0 %v3382
    %3900 = vmatpush1.bf16.msra.mxu0 %v3381
    %3901 = vmatprep.subr.bf16.mxu0 %v3386
    %3902 = vmatpush1.bf16.msra.mxu0 %v3385
    %3903 = vmatprep.subr.bf16.mxu0 %v3390
    %3904 = vmatpush1.bf16.msra.mxu0 %v3389
    %3905 = vmatprep.subr.bf16.mxu0 %v3394
    %3906 = vmatpush1.bf16.msra.mxu0 %v3393
    %3907 = vmatprep.subr.bf16.mxu0 %v3398
    %3908 = vmatpush1.bf16.msra.mxu0 %v3397
    %3909 = vmatprep.subr.bf16.mxu0 0
    %3910 = vmatpush1.bf16.msra.mxu0 0
    %3911 = vmatprep.subr.bf16.mxu0 0
    %3912 = vmatpush1.bf16.msra.mxu0 0
    %3913 = vmatprep.subr.bf16.mxu0 0
    %3914 = vmatpush1.bf16.msra.mxu0 0
    %3915 = vmatprep.subr.bf16.mxu0 0
    %3916 = vmatpush1.bf16.msra.mxu0 0
    %3917 = vmatprep.subr.bf16.mxu0 0
    %3918 = vmatpush1.bf16.msra.mxu0 0
    %3919 = vmatprep.subr.bf16.mxu0 0
    %3920 = vmatpush1.bf16.msra.mxu0 0
    %3921 = vmatprep.subr.bf16.mxu0 0
    %3922 = vmatpush1.bf16.msra.mxu0 0
    %3923 = vmatprep.subr.bf16.mxu0 0
    %3924 = vmatpush1.bf16.msra.mxu0 0
    %3925 = vmatprep.mubr.bf16.mxu0 0
    %3926 = vmatmul.mubr.bf16.gmra.mrb[0].mxu0 %v3892
    %v3927 = vpop.f32.mrb[0].mxu0
    %v3928 = vadd.f32 0.0, %v3927
    %v3929 = vpop.f32.mrb[0].mxu0
    %v3930 = vadd.f32 0.0, %v3929
    %v3931 = vpop.f32.mrb[0].mxu0
    %v3932 = vpop.f32.mrb[0].mxu0
    %3933 = vdwg.mxu0
    %3934 = vmatprep.subr.bf16.mxu0 %v3372
    %3935 = vmatpush1.bf16.msra.mxu0 %v3371
    %3936 = vmatprep.subr.bf16.mxu0 %v3376
    %3937 = vmatpush1.bf16.msra.mxu0 %v3375
    %3938 = vmatprep.subr.bf16.mxu0 %v3380
    %3939 = vmatpush1.bf16.msra.mxu0 %v3379
    %3940 = vmatprep.subr.bf16.mxu0 %v3384
    %3941 = vmatpush1.bf16.msra.mxu0 %v3383
    %3942 = vmatprep.subr.bf16.mxu0 %v3388
    %3943 = vmatpush1.bf16.msra.mxu0 %v3387
    %3944 = vmatprep.subr.bf16.mxu0 %v3392
    %3945 = vmatpush1.bf16.msra.mxu0 %v3391
    %3946 = vmatprep.subr.bf16.mxu0 %v3396
    %3947 = vmatpush1.bf16.msra.mxu0 %v3395
    %3948 = vmatprep.subr.bf16.mxu0 %v3400
    %3949 = vmatpush1.bf16.msra.mxu0 %v3399
    %3950 = vmatprep.subr.bf16.mxu0 0
    %3951 = vmatpush1.bf16.msra.mxu0 0
    %3952 = vmatprep.subr.bf16.mxu0 0
    %3953 = vmatpush1.bf16.msra.mxu0 0
    %3954 = vmatprep.subr.bf16.mxu0 0
    %3955 = vmatpush1.bf16.msra.mxu0 0
    %3956 = vmatprep.subr.bf16.mxu0 0
    %3957 = vmatpush1.bf16.msra.mxu0 0
    %3958 = vmatprep.subr.bf16.mxu0 0
    %3959 = vmatpush1.bf16.msra.mxu0 0
    %3960 = vmatprep.subr.bf16.mxu0 0
    %3961 = vmatpush1.bf16.msra.mxu0 0
    %3962 = vmatprep.subr.bf16.mxu0 0
    %3963 = vmatpush1.bf16.msra.mxu0 0
    %3964 = vmatprep.subr.bf16.mxu0 0
    %3965 = vmatpush1.bf16.msra.mxu0 0
    %3966 = vmatprep.mubr.bf16.mxu0 0
    %3967 = vmatmul.mubr.bf16.gmra.mrb[0].mxu0 %v3892
    %v3968 = vpop.f32.mrb[0].mxu0
    %v3969 = vadd.f32 0.0, %v3968
    %v3970 = vpop.f32.mrb[0].mxu0
    %v3971 = vadd.f32 0.0, %v3970
    %v3972 = vpop.f32.mrb[0].mxu0
    %v3973 = vpop.f32.mrb[0].mxu0
    %3974 = vdwg.mxu0
    %v3975 = vadd.f32 %v3888, %v3928
    %v3976 = vadd.f32 %v3889, %v3930
    %v3977 = vadd.f32 %v3890, %v3969
    %v3978 = vadd.f32 %v3891, %v3971
    %v3979 = vxor.u32 %v3975, 2147483648
    %v3980 = vxor.u32 %v3976, 2147483648
    %v3981 = vxor.u32 %v3977, 2147483648
    %v3982 = vmul.f32 %v3979, 1.442695
    %v3983 = vpow.pop %v3982
    %v3984 = vmul.f32 %v3980, 1.442695
    %v3985 = vpow.pop %v3984
    %v3986 = vmul.f32 %v3981, 1.442695
    %v3987 = vpow.pop %v3986
    %v3988 = vadd.f32 %v3983, 1.0
    %v3989 = vadd.f32 %v3985, 1.0
    %v3990 = vadd.f32 %v3987, 1.0
    %v3991 = vrcp.pop %v3988
    %v3992 = vmul.f32 1.0, %v3991
    %v3993 = vrcp.pop %v3989
    %v3994 = vmul.f32 1.0, %v3993
    %v3995 = vrcp.pop %v3990
    %v3996 = vmul.f32 1.0, %v3995
    %v3997 = vtanh.pop %v3978
    %v3998 = vmul.f32 %v3994, %v3885
    %v3999 = vmul.f32 %v3992, %v3997
    %v4000 = vadd.f32 %v3998, %v3999
    %v4001 = vtanh.pop %v4000
    %v4002 = vmul.f32 %v3996, %v4001
    %v4003 = vld [vmem:[%s1899] sm:$0xff]
    %v4004 = vld [vmem:[%s1899 + $0x8] sm:$0xff]
    %v4005 = vld [vmem:[%s1899 + $0x10] sm:$0xff]
    %v4006 = vld [vmem:[%s1899 + $0x18] sm:$0xff]
    %v4007 = vpack.c.bf16 %v4002, %v4002
    %4008 = vmatprep.subr.bf16.mxu0 %v3370
    %4009 = vmatpush1.bf16.msra.mxu0 %v3369
    %4010 = vmatprep.subr.bf16.mxu0 %v3374
    %4011 = vmatpush1.bf16.msra.mxu0 %v3373
    %4012 = vmatprep.subr.bf16.mxu0 %v3378
    %4013 = vmatpush1.bf16.msra.mxu0 %v3377
    %4014 = vmatprep.subr.bf16.mxu0 %v3382
    %4015 = vmatpush1.bf16.msra.mxu0 %v3381
    %4016 = vmatprep.subr.bf16.mxu0 %v3386
    %4017 = vmatpush1.bf16.msra.mxu0 %v3385
    %4018 = vmatprep.subr.bf16.mxu0 %v3390
    %4019 = vmatpush1.bf16.msra.mxu0 %v3389
    %4020 = vmatprep.subr.bf16.mxu0 %v3394
    %4021 = vmatpush1.bf16.msra.mxu0 %v3393
    %4022 = vmatprep.subr.bf16.mxu0 %v3398
    %4023 = vmatpush1.bf16.msra.mxu0 %v3397
    %4024 = vmatprep.subr.bf16.mxu0 0
    %4025 = vmatpush1.bf16.msra.mxu0 0
    %4026 = vmatprep.subr.bf16.mxu0 0
    %4027 = vmatpush1.bf16.msra.mxu0 0
    %4028 = vmatprep.subr.bf16.mxu0 0
    %4029 = vmatpush1.bf16.msra.mxu0 0
    %4030 = vmatprep.subr.bf16.mxu0 0
    %4031 = vmatpush1.bf16.msra.mxu0 0
    %4032 = vmatprep.subr.bf16.mxu0 0
    %4033 = vmatpush1.bf16.msra.mxu0 0
    %4034 = vmatprep.subr.bf16.mxu0 0
    %4035 = vmatpush1.bf16.msra.mxu0 0
    %4036 = vmatprep.subr.bf16.mxu0 0
    %4037 = vmatpush1.bf16.msra.mxu0 0
    %4038 = vmatprep.subr.bf16.mxu0 0
    %4039 = vmatpush1.bf16.msra.mxu0 0
    %4040 = vmatprep.mubr.bf16.mxu0 0
    %4041 = vmatmul.mubr.bf16.gmra.mrb[0].mxu0 %v4007
    %v4042 = vpop.f32.mrb[0].mxu0
    %v4043 = vadd.f32 0.0, %v4042
    %v4044 = vpop.f32.mrb[0].mxu0
    %v4045 = vadd.f32 0.0, %v4044
    %v4046 = vpop.f32.mrb[0].mxu0
    %v4047 = vpop.f32.mrb[0].mxu0
    %4048 = vdwg.mxu0
    %4049 = vmatprep.subr.bf16.mxu0 %v3372
    %4050 = vmatpush1.bf16.msra.mxu0 %v3371
    %4051 = vmatprep.subr.bf16.mxu0 %v3376
    %4052 = vmatpush1.bf16.msra.mxu0 %v3375
    %4053 = vmatprep.subr.bf16.mxu0 %v3380
    %4054 = vmatpush1.bf16.msra.mxu0 %v3379
    %4055 = vmatprep.subr.bf16.mxu0 %v3384
    %4056 = vmatpush1.bf16.msra.mxu0 %v3383
    %4057 = vmatprep.subr.bf16.mxu0 %v3388
    %4058 = vmatpush1.bf16.msra.mxu0 %v3387
    %4059 = vmatprep.subr.bf16.mxu0 %v3392
    %4060 = vmatpush1.bf16.msra.mxu0 %v3391
    %4061 = vmatprep.subr.bf16.mxu0 %v3396
    %4062 = vmatpush1.bf16.msra.mxu0 %v3395
    %4063 = vmatprep.subr.bf16.mxu0 %v3400
    %4064 = vmatpush1.bf16.msra.mxu0 %v3399
    %4065 = vmatprep.subr.bf16.mxu0 0
    %4066 = vmatpush1.bf16.msra.mxu0 0
    %4067 = vmatprep.subr.bf16.mxu0 0
    %4068 = vmatpush1.bf16.msra.mxu0 0
    %4069 = vmatprep.subr.bf16.mxu0 0
    %4070 = vmatpush1.bf16.msra.mxu0 0
    %4071 = vmatprep.subr.bf16.mxu0 0
    %4072 = vmatpush1.bf16.msra.mxu0 0
    %4073 = vmatprep.subr.bf16.mxu0 0
    %4074 = vmatpush1.bf16.msra.mxu0 0
    %4075 = vmatprep.subr.bf16.mxu0 0
    %4076 = vmatpush1.bf16.msra.mxu0 0
    %4077 = vmatprep.subr.bf16.mxu0 0
    %4078 = vmatpush1.bf16.msra.mxu0 0
    %4079 = vmatprep.subr.bf16.mxu0 0
    %4080 = vmatpush1.bf16.msra.mxu0 0
    %4081 = vmatprep.mubr.bf16.mxu0 0
    %4082 = vmatmul.mubr.bf16.gmra.mrb[0].mxu0 %v4007
    %v4083 = vpop.f32.mrb[0].mxu0
    %v4084 = vadd.f32 0.0, %v4083
    %v4085 = vpop.f32.mrb[0].mxu0
    %v4086 = vadd.f32 0.0, %v4085
    %v4087 = vpop.f32.mrb[0].mxu0
    %v4088 = vpop.f32.mrb[0].mxu0
    %4089 = vdwg.mxu0
    %v4090 = vadd.f32 %v4003, %v4043
    %v4091 = vadd.f32 %v4004, %v4045
    %v4092 = vadd.f32 %v4005, %v4084
    %v4093 = vadd.f32 %v4006, %v4086
    %v4094 = vxor.u32 %v4090, 2147483648
    %v4095 = vxor.u32 %v4091, 2147483648
    %v4096 = vxor.u32 %v4092, 2147483648
    %v4097 = vmul.f32 %v4094, 1.442695
    %v4098 = vpow.pop %v4097
    %v4099 = vmul.f32 %v4095, 1.442695
    %v4100 = vpow.pop %v4099
    %v4101 = vmul.f32 %v4096, 1.442695
    %v4102 = vpow.pop %v4101
    %v4103 = vadd.f32 %v4098, 1.0
    %v4104 = vadd.f32 %v4100, 1.0
    %v4105 = vadd.f32 %v4102, 1.0
    %v4106 = vrcp.pop %v4103
    %v4107 = vmul.f32 1.0, %v4106
    %v4108 = vrcp.pop %v4104
    %v4109 = vmul.f32 1.0, %v4108
    %v4110 = vrcp.pop %v4105
    %v4111 = vmul.f32 1.0, %v4110
    %v4112 = vtanh.pop %v4093
    %v4113 = vmul.f32 %v4109, %v4000
    %v4114 = vmul.f32 %v4107, %v4112
    %v4115 = vadd.f32 %v4113, %v4114
    %v4116 = vtanh.pop %v4115
    %v4117 = vmul.f32 %v4111, %v4116
    %v4118 = vld [vmem:[%s2211] sm:$0xff]
    %v4119 = vld [vmem:[%s2211 + $0x8] sm:$0xff]
    %v4120 = vld [vmem:[%s2211 + $0x10] sm:$0xff]
    %v4121 = vld [vmem:[%s2211 + $0x18] sm:$0xff]
    %v4122 = vpack.c.bf16 %v4117, %v4117
    %4123 = vmatprep.subr.bf16.mxu0 %v3370
    %4124 = vmatpush1.bf16.msra.mxu0 %v3369
    %4125 = vmatprep.subr.bf16.mxu0 %v3374
    %4126 = vmatpush1.bf16.msra.mxu0 %v3373
    %4127 = vmatprep.subr.bf16.mxu0 %v3378
    %4128 = vmatpush1.bf16.msra.mxu0 %v3377
    %4129 = vmatprep.subr.bf16.mxu0 %v3382
    %4130 = vmatpush1.bf16.msra.mxu0 %v3381
    %4131 = vmatprep.subr.bf16.mxu0 %v3386
    %4132 = vmatpush1.bf16.msra.mxu0 %v3385
    %4133 = vmatprep.subr.bf16.mxu0 %v3390
    %4134 = vmatpush1.bf16.msra.mxu0 %v3389
    %4135 = vmatprep.subr.bf16.mxu0 %v3394
    %4136 = vmatpush1.bf16.msra.mxu0 %v3393
    %4137 = vmatprep.subr.bf16.mxu0 %v3398
    %4138 = vmatpush1.bf16.msra.mxu0 %v3397
    %4139 = vmatprep.subr.bf16.mxu0 0
    %4140 = vmatpush1.bf16.msra.mxu0 0
    %4141 = vmatprep.subr.bf16.mxu0 0
    %4142 = vmatpush1.bf16.msra.mxu0 0
    %4143 = vmatprep.subr.bf16.mxu0 0
    %4144 = vmatpush1.bf16.msra.mxu0 0
    %4145 = vmatprep.subr.bf16.mxu0 0
    %4146 = vmatpush1.bf16.msra.mxu0 0
    %4147 = vmatprep.subr.bf16.mxu0 0
    %4148 = vmatpush1.bf16.msra.mxu0 0
    %4149 = vmatprep.subr.bf16.mxu0 0
    %4150 = vmatpush1.bf16.msra.mxu0 0
    %4151 = vmatprep.subr.bf16.mxu0 0
    %4152 = vmatpush1.bf16.msra.mxu0 0
    %4153 = vmatprep.subr.bf16.mxu0 0
    %4154 = vmatpush1.bf16.msra.mxu0 0
    %4155 = vmatprep.mubr.bf16.mxu0 0
    %4156 = vmatmul.mubr.bf16.gmra.mrb[0].mxu0 %v4122
    %v4157 = vpop.f32.mrb[0].mxu0
    %v4158 = vadd.f32 0.0, %v4157
    %v4159 = vpop.f32.mrb[0].mxu0
    %v4160 = vadd.f32 0.0, %v4159
    %v4161 = vpop.f32.mrb[0].mxu0
    %v4162 = vpop.f32.mrb[0].mxu0
    %4163 = vdwg.mxu0
    %4164 = vmatprep.subr.bf16.mxu0 %v3372
    %4165 = vmatpush1.bf16.msra.mxu0 %v3371
    %4166 = vmatprep.subr.bf16.mxu0 %v3376
    %4167 = vmatpush1.bf16.msra.mxu0 %v3375
    %4168 = vmatprep.subr.bf16.mxu0 %v3380
    %4169 = vmatpush1.bf16.msra.mxu0 %v3379
    %4170 = vmatprep.subr.bf16.mxu0 %v3384
    %4171 = vmatpush1.bf16.msra.mxu0 %v3383
    %4172 = vmatprep.subr.bf16.mxu0 %v3388
    %4173 = vmatpush1.bf16.msra.mxu0 %v3387
    %4174 = vmatprep.subr.bf16.mxu0 %v3392
    %4175 = vmatpush1.bf16.msra.mxu0 %v3391
    %4176 = vmatprep.subr.bf16.mxu0 %v3396
    %4177 = vmatpush1.bf16.msra.mxu0 %v3395
    %4178 = vmatprep.subr.bf16.mxu0 %v3400
    %4179 = vmatpush1.bf16.msra.mxu0 %v3399
    %4180 = vmatprep.subr.bf16.mxu0 0
    %4181 = vmatpush1.bf16.msra.mxu0 0
    %4182 = vmatprep.subr.bf16.mxu0 0
    %4183 = vmatpush1.bf16.msra.mxu0 0
    %4184 = vmatprep.subr.bf16.mxu0 0
    %4185 = vmatpush1.bf16.msra.mxu0 0
    %4186 = vmatprep.subr.bf16.mxu0 0
    %4187 = vmatpush1.bf16.msra.mxu0 0
    %4188 = vmatprep.subr.bf16.mxu0 0
    %4189 = vmatpush1.bf16.msra.mxu0 0
    %4190 = vmatprep.subr.bf16.mxu0 0
    %4191 = vmatpush1.bf16.msra.mxu0 0
    %4192 = vmatprep.subr.bf16.mxu0 0
    %4193 = vmatpush1.bf16.msra.mxu0 0
    %4194 = vmatprep.subr.bf16.mxu0 0
    %4195 = vmatpush1.bf16.msra.mxu0 0
    %4196 = vmatprep.mubr.bf16.mxu0 0
    %4197 = vmatmul.mubr.bf16.gmra.mrb[0].mxu0 %v4122
    %v4198 = vpop.f32.mrb[0].mxu0
    %v4199 = vadd.f32 0.0, %v4198
    %v4200 = vpop.f32.mrb[0].mxu0
    %v4201 = vadd.f32 0.0, %v4200
    %v4202 = vpop.f32.mrb[0].mxu0
    %v4203 = vpop.f32.mrb[0].mxu0
    %4204 = vdwg.mxu0
    %v4205 = vadd.f32 %v4118, %v4158
    %v4206 = vadd.f32 %v4119, %v4160
    %v4207 = vadd.f32 %v4120, %v4199
    %v4208 = vadd.f32 %v4121, %v4201
    %v4209 = vxor.u32 %v4205, 2147483648
    %v4210 = vxor.u32 %v4206, 2147483648
    %v4211 = vxor.u32 %v4207, 2147483648
    %v4212 = vmul.f32 %v4209, 1.442695
    %v4213 = vpow.pop %v4212
    %v4214 = vmul.f32 %v4210, 1.442695
    %v4215 = vpow.pop %v4214
    %v4216 = vmul.f32 %v4211, 1.442695
    %v4217 = vpow.pop %v4216
    %v4218 = vadd.f32 %v4213, 1.0
    %v4219 = vadd.f32 %v4215, 1.0
    %v4220 = vadd.f32 %v4217, 1.0
    %v4221 = vrcp.pop %v4218
    %v4222 = vmul.f32 1.0, %v4221
    %v4223 = vrcp.pop %v4219
    %v4224 = vmul.f32 1.0, %v4223
    %v4225 = vrcp.pop %v4220
    %v4226 = vmul.f32 1.0, %v4225
    %v4227 = vtanh.pop %v4208
    %v4228 = vmul.f32 %v4224, %v4115
    %v4229 = vmul.f32 %v4222, %v4227
    %v4230 = vadd.f32 %v4228, %v4229
    %v4231 = vtanh.pop %v4230
    %v4232 = vmul.f32 %v4226, %v4231
    %v4233 = vld [vmem:[%s2523] sm:$0xff]
    %v4234 = vld [vmem:[%s2523 + $0x8] sm:$0xff]
    %v4235 = vld [vmem:[%s2523 + $0x10] sm:$0xff]
    %v4236 = vld [vmem:[%s2523 + $0x18] sm:$0xff]
    %v4237 = vpack.c.bf16 %v4232, %v4232
    %4238 = vmatprep.subr.bf16.mxu0 %v3370
    %4239 = vmatpush1.bf16.msra.mxu0 %v3369
    %4240 = vmatprep.subr.bf16.mxu0 %v3374
    %4241 = vmatpush1.bf16.msra.mxu0 %v3373
    %4242 = vmatprep.subr.bf16.mxu0 %v3378
    %4243 = vmatpush1.bf16.msra.mxu0 %v3377
    %4244 = vmatprep.subr.bf16.mxu0 %v3382
    %4245 = vmatpush1.bf16.msra.mxu0 %v3381
    %4246 = vmatprep.subr.bf16.mxu0 %v3386
    %4247 = vmatpush1.bf16.msra.mxu0 %v3385
    %4248 = vmatprep.subr.bf16.mxu0 %v3390
    %4249 = vmatpush1.bf16.msra.mxu0 %v3389
    %4250 = vmatprep.subr.bf16.mxu0 %v3394
    %4251 = vmatpush1.bf16.msra.mxu0 %v3393
    %4252 = vmatprep.subr.bf16.mxu0 %v3398
    %4253 = vmatpush1.bf16.msra.mxu0 %v3397
    %4254 = vmatprep.subr.bf16.mxu0 0
    %4255 = vmatpush1.bf16.msra.mxu0 0
    %4256 = vmatprep.subr.bf16.mxu0 0
    %4257 = vmatpush1.bf16.msra.mxu0 0
    %4258 = vmatprep.subr.bf16.mxu0 0
    %4259 = vmatpush1.bf16.msra.mxu0 0
    %4260 = vmatprep.subr.bf16.mxu0 0
    %4261 = vmatpush1.bf16.msra.mxu0 0
    %4262 = vmatprep.subr.bf16.mxu0 0
    %4263 = vmatpush1.bf16.msra.mxu0 0
    %4264 = vmatprep.subr.bf16.mxu0 0
    %4265 = vmatpush1.bf16.msra.mxu0 0
    %4266 = vmatprep.subr.bf16.mxu0 0
    %4267 = vmatpush1.bf16.msra.mxu0 0
    %4268 = vmatprep.subr.bf16.mxu0 0
    %4269 = vmatpush1.bf16.msra.mxu0 0
    %4270 = vmatprep.mubr.bf16.mxu0 0
    %4271 = vmatmul.mubr.bf16.gmra.mrb[0].mxu0 %v4237
    %v4272 = vpop.f32.mrb[0].mxu0
    %v4273 = vadd.f32 0.0, %v4272
    %v4274 = vpop.f32.mrb[0].mxu0
    %v4275 = vadd.f32 0.0, %v4274
    %v4276 = vpop.f32.mrb[0].mxu0
    %v4277 = vpop.f32.mrb[0].mxu0
    %4278 = vdwg.mxu0
    %4279 = vmatprep.subr.bf16.mxu0 %v3372
    %4280 = vmatpush1.bf16.msra.mxu0 %v3371
    %4281 = vmatprep.subr.bf16.mxu0 %v3376
    %4282 = vmatpush1.bf16.msra.mxu0 %v3375
    %4283 = vmatprep.subr.bf16.mxu0 %v3380
    %4284 = vmatpush1.bf16.msra.mxu0 %v3379
    %4285 = vmatprep.subr.bf16.mxu0 %v3384
    %4286 = vmatpush1.bf16.msra.mxu0 %v3383
    %4287 = vmatprep.subr.bf16.mxu0 %v3388
    %4288 = vmatpush1.bf16.msra.mxu0 %v3387
    %4289 = vmatprep.subr.bf16.mxu0 %v3392
    %4290 = vmatpush1.bf16.msra.mxu0 %v3391
    %4291 = vmatprep.subr.bf16.mxu0 %v3396
    %4292 = vmatpush1.bf16.msra.mxu0 %v3395
    %4293 = vmatprep.subr.bf16.mxu0 %v3400
    %4294 = vmatpush1.bf16.msra.mxu0 %v3399
    %4295 = vmatprep.subr.bf16.mxu0 0
    %4296 = vmatpush1.bf16.msra.mxu0 0
    %4297 = vmatprep.subr.bf16.mxu0 0
    %4298 = vmatpush1.bf16.msra.mxu0 0
    %4299 = vmatprep.subr.bf16.mxu0 0
    %4300 = vmatpush1.bf16.msra.mxu0 0
    %4301 = vmatprep.subr.bf16.mxu0 0
    %4302 = vmatpush1.bf16.msra.mxu0 0
    %4303 = vmatprep.subr.bf16.mxu0 0
    %4304 = vmatpush1.bf16.msra.mxu0 0
    %4305 = vmatprep.subr.bf16.mxu0 0
    %4306 = vmatpush1.bf16.msra.mxu0 0
    %4307 = vmatprep.subr.bf16.mxu0 0
    %4308 = vmatpush1.bf16.msra.mxu0 0
    %4309 = vmatprep.subr.bf16.mxu0 0
    %4310 = vmatpush1.bf16.msra.mxu0 0
    %4311 = vmatprep.mubr.bf16.mxu0 0
    %4312 = vmatmul.mubr.bf16.gmra.mrb[0].mxu0 %v4237
    %v4313 = vpop.f32.mrb[0].mxu0
    %v4314 = vadd.f32 0.0, %v4313
    %v4315 = vpop.f32.mrb[0].mxu0
    %v4316 = vadd.f32 0.0, %v4315
    %v4317 = vpop.f32.mrb[0].mxu0
    %v4318 = vpop.f32.mrb[0].mxu0
    %4319 = vdwg.mxu0
    %v4320 = vadd.f32 %v4233, %v4273
    %v4321 = vadd.f32 %v4234, %v4275
    %v4322 = vadd.f32 %v4235, %v4314
    %v4323 = vadd.f32 %v4236, %v4316
    %v4324 = vxor.u32 %v4320, 2147483648
    %v4325 = vxor.u32 %v4321, 2147483648
    %v4326 = vxor.u32 %v4322, 2147483648
    %v4327 = vmul.f32 %v4324, 1.442695
    %v4328 = vpow.pop %v4327
    %v4329 = vmul.f32 %v4325, 1.442695
    %v4330 = vpow.pop %v4329
    %v4331 = vmul.f32 %v4326, 1.442695
    %v4332 = vpow.pop %v4331
    %v4333 = vadd.f32 %v4328, 1.0
    %v4334 = vadd.f32 %v4330, 1.0
    %v4335 = vadd.f32 %v4332, 1.0
    %v4336 = vrcp.pop %v4333
    %v4337 = vmul.f32 1.0, %v4336
    %v4338 = vrcp.pop %v4334
    %v4339 = vmul.f32 1.0, %v4338
    %v4340 = vrcp.pop %v4335
    %v4341 = vmul.f32 1.0, %v4340
    %v4342 = vtanh.pop %v4323
    %v4343 = vmul.f32 %v4339, %v4230
    %v4344 = vmul.f32 %v4337, %v4342
    %v4345 = vadd.f32 %v4343, %v4344
    %v4346 = vtanh.pop %v4345
    %v4347 = vmul.f32 %v4341, %v4346
    %v4348 = vpack.c.bf16 %v4347, %v4347
    %v4349 = vld [vmem:[%s7] sm:$0xf]
    %v4350 = vld [vmem:[%s7 + $0x4] sm:$0xf]
    %v4351 = vld [vmem:[%s7 + $0x8] sm:$0xf]
    %v4352 = vld [vmem:[%s7 + $0xc] sm:$0xf]
    %v4353 = vld [vmem:[%s7 + $0x10] sm:$0xf]
    %v4354 = vld [vmem:[%s7 + $0x14] sm:$0xf]
    %v4355 = vld [vmem:[%s7 + $0x18] sm:$0xf]
    %v4356 = vld [vmem:[%s7 + $0x1c] sm:$0xf]
    %v4357 = vld [vmem:[%s7 + $0x20] sm:$0xf]
    %v4358 = vld [vmem:[%s7 + $0x24] sm:$0xf]
    %v4359 = vld [vmem:[%s7 + $0x28] sm:$0xf]
    %v4360 = vld [vmem:[%s7 + $0x2c] sm:$0xf]
    %v4361 = vld [vmem:[%s7 + $0x30] sm:$0xf]
    %v4362 = vld [vmem:[%s7 + $0x34] sm:$0xf]
    %v4363 = vld [vmem:[%s7 + $0x38] sm:$0xf]
    %v4364 = vld [vmem:[%s7 + $0x3c] sm:$0xf]
    %v4365 = vld [vmem:[%s8] sm:$0x1]
    %v4367 = vlaneseq
    %v4368 = vshrl.u32 %v4367, 7
    %v4369 = vsub.s32 0, %v4368
    %v4370 = vrot.slane %v4365, %v4369
    %v4388 = vunpack.c.l.b16 %v4349
    %v4389 = vunpack.c.l.b16 %v4350
    %v4390 = vunpack.c.l.b16 %v4351
    %v4391 = vunpack.c.l.b16 %v4352
    %v4392 = vunpack.c.l.b16 %v4353
    %v4393 = vunpack.c.l.b16 %v4354
    %v4394 = vunpack.c.l.b16 %v4355
    %v4395 = vunpack.c.l.b16 %v4356
    %v4396 = vunpack.c.l.b16 %v4357
    %v4397 = vunpack.c.l.b16 %v4358
    %v4398 = vunpack.c.l.b16 %v4359
    %v4399 = vunpack.c.l.b16 %v4360
    %v4400 = vunpack.c.l.b16 %v4361
    %v4401 = vunpack.c.l.b16 %v4362
    %v4402 = vunpack.c.l.b16 %v4363
    %v4403 = vunpack.c.l.b16 %v4364
    %v4404 = vpack.c.b16 %v4389, %v4388
    %v4405 = vpack.c.b16 %v4391, %v4390
    %v4406 = vpack.c.b16 %v4393, %v4392
    %v4407 = vpack.c.b16 %v4395, %v4394
    %v4408 = vpack.c.b16 %v4397, %v4396
    %v4409 = vpack.c.b16 %v4399, %v4398
    %v4410 = vpack.c.b16 %v4401, %v4400
    %v4411 = vpack.c.b16 %v4403, %v4402
    %4420 = vmatprep.subr.bf16.mxu0 0
    %4421 = vmatpush1.bf16.msra.mxu0 %v4404
    %4422 = vmatprep.subr.bf16.mxu0 0
    %4423 = vmatpush1.bf16.msra.mxu0 %v4405
    %4424 = vmatprep.subr.bf16.mxu0 0
    %4425 = vmatpush1.bf16.msra.mxu0 %v4406
    %4426 = vmatprep.subr.bf16.mxu0 0
    %4427 = vmatpush1.bf16.msra.mxu0 %v4407
    %4428 = vmatprep.subr.bf16.mxu0 0
    %4429 = vmatpush1.bf16.msra.mxu0 %v4408
    %4430 = vmatprep.subr.bf16.mxu0 0
    %4431 = vmatpush1.bf16.msra.mxu0 %v4409
    %4432 = vmatprep.subr.bf16.mxu0 0
    %4433 = vmatpush1.bf16.msra.mxu0 %v4410
    %4434 = vmatprep.subr.bf16.mxu0 0
    %4435 = vmatpush1.bf16.msra.mxu0 %v4411
    %4436 = vmatprep.subr.bf16.mxu0 0
    %4437 = vmatpush1.bf16.msra.mxu0 0
    %4438 = vmatprep.subr.bf16.mxu0 0
    %4439 = vmatpush1.bf16.msra.mxu0 0
    %4440 = vmatprep.subr.bf16.mxu0 0
    %4441 = vmatpush1.bf16.msra.mxu0 0
    %4442 = vmatprep.subr.bf16.mxu0 0
    %4443 = vmatpush1.bf16.msra.mxu0 0
    %4444 = vmatprep.subr.bf16.mxu0 0
    %4445 = vmatpush1.bf16.msra.mxu0 0
    %4446 = vmatprep.subr.bf16.mxu0 0
    %4447 = vmatpush1.bf16.msra.mxu0 0
    %4448 = vmatprep.subr.bf16.mxu0 0
    %4449 = vmatpush1.bf16.msra.mxu0 0
    %4450 = vmatprep.subr.bf16.mxu0 0
    %4451 = vmatpush1.bf16.msra.mxu0 0
    %4452 = vmatprep.mubr.bf16.mxu0 0
    %4453 = vmatmul.mubr.bf16.gmra.mrb[0].mxu0 %v4348
    %v4454 = vpop.f32.mrb[0].mxu0
    %v4455 = vadd.f32 %v4370, %v4454
    %v4456 = vpop.f32.mrb[0].mxu0
    %v4457 = vpop.f32.mrb[0].mxu0
    %v4458 = vpop.f32.mrb[0].mxu0
    %4459 = vdwg.mxu0
    %vm4460 = vcmask 31744
    %4461 = vst.msk [vmem:[%s9] sm:$0xff] %vm4460, %v4455
    // Predicated region
    $region50: #{tpu_custom_call.1} parent=1 // pred_check
      _
    $region51: #{tpu_custom_call.1} parent=1 // pred_check_branch
      %4463 = sbr.rel (0) target = $region53
    $region52: #{tpu_custom_call.1} parent=1 // pred_region
      _
    $region53: #{tpu_custom_call.1} parent=1 // pred_fallthru
      _
    // Predicated region
    $region54: #{tpu_custom_call.1} parent=1 // pred_check
      _
    $region55: #{tpu_custom_call.1} parent=1 // pred_check_branch
      %4465 = sbr.rel (0) target = $region57
    $region56: #{tpu_custom_call.1} parent=1 // pred_region
      _
    $region57: #{tpu_custom_call.1} parent=1 // pred_fallthru
      _
    %4466 = vsyncpa [#allocation5], 1
    %4467 = vsyncpa [#allocation7], 1

</llo_original>
